<compile_context>
chip_gen: v6e
topology: v6e:2x2x1
jax: 0.10.0
libtpu: 0.0.40
codegen_flags: <defaults>
</compile_context>

<pallas_src>
import functools

import jax
import jax.numpy as jnp
from jax.experimental import pallas as pl
from jax.experimental.pallas import tpu as pltpu


def _round_up(x: int, m: int) -> int:
    return (x + m - 1) // m * m


def _decoder_fused_kernel(x_ref,
                          w1_ref, b1_ref,
                          w2_ref, b2_ref,
                          w3_ref, b3_ref,
                          w4_ref, b4_ref,
                          o_ref):
    """All four Linear(+ReLU) layers fused; activations stay on-chip.

    x_ref : (TB, F_p) f32      w*_ref : (K_p, N_p) bf16     b*_ref : (1, N_p) f32
    o_ref : (TB, OUT_p) f32    All padded dims are multiples of (8, 128).
    """
    tb = x_ref.shape[0]
    x = x_ref[...].astype(jnp.bfloat16)

    # --- layers 1+2 fused with K-chunking over the 2048-wide hidden dim ------
    n1 = w1_ref.shape[1]
    chunk = 512 if (n1 % 512 == 0) else n1
    n_chunks = n1 // chunk

    acc2 = jnp.zeros((tb, w2_ref.shape[1]), jnp.float32)
    for c in range(n_chunks):                      # static unrolled loop
        lo, hi = c * chunk, (c + 1) * chunk
        h1c = jnp.dot(x, w1_ref[:, lo:hi],
                      preferred_element_type=jnp.float32)
        h1c = jnp.maximum(h1c + b1_ref[:, lo:hi], 0.0)
        acc2 = acc2 + jnp.dot(h1c.astype(jnp.bfloat16), w2_ref[lo:hi, :],
                              preferred_element_type=jnp.float32)
    h2 = jnp.maximum(acc2 + b2_ref[...], 0.0)

    # --- layer 3 -------------------------------------------------------------
    h3 = jnp.maximum(
        jnp.dot(h2.astype(jnp.bfloat16), w3_ref[...],
                preferred_element_type=jnp.float32) + b3_ref[...], 0.0)

    # --- layer 4 (no ReLU) ---------------------------------------------------
    h4 = jnp.dot(h3.astype(jnp.bfloat16), w4_ref[...],
                 preferred_element_type=jnp.float32) + b4_ref[...]
    o_ref[...] = h4.astype(o_ref.dtype)


def prepare_decoder_params(params):
    """Pad every feature dim to a multiple of 128 (zero fill -> exact math) and
    cast weights to bf16. Done ONCE at init; the result should be cached."""
    in_p = _round_up(params[0][0].shape[0], 128)
    padded = []
    for w, b in params:
        k, n = w.shape
        n_p = _round_up(n, 128)
        w_p = jnp.zeros((in_p, n_p), jnp.float32).at[:k, :n].set(
            w.astype(jnp.float32)).astype(jnp.bfloat16)
        b_p = jnp.zeros((1, n_p), jnp.float32).at[0, :n].set(
            b.astype(jnp.float32))
        padded.append((w_p, b_p))
        in_p = n_p
    return tuple(padded)


@functools.partial(jax.jit, static_argnames=("out_dim", "block_b"))
def decoder_forward(x, padded_params, *, out_dim, block_b: int = 256):
    """Run the fused decoder. x: (B, feature_dim); padded_params from
    prepare_decoder_params(); out_dim = input_dim of the original module."""
    B, F = x.shape
    F_p = padded_params[0][0].shape[0]
    OUT_p = padded_params[-1][0].shape[1]

    # Batch tile: multiple of 8 (f32 sublane).  Keep >= 2 grid steps when the
    # batch allows so both TensorCores (v7x megacore) get work.
    TB = _round_up(min(block_b, max(B, 1)), 8)
    num_tiles = -(-B // TB)
    if num_tiles < 2 and TB > 8:
        TB = _round_up(-(-TB // 2), 8)
        num_tiles = -(-B // TB)
    B_p = num_tiles * TB

    x_p = jnp.zeros((B_p, F_p), jnp.float32).at[:B, :F].set(x.astype(jnp.float32))

    in_specs = [pl.BlockSpec((TB, F_p), lambda i: (i, 0))]
    flat_args = []
    for (w_p, b_p) in padded_params:
        kp, npad = w_p.shape
        # Constant block index -> weights/biases stay resident in VMEM across tiles.
        in_specs.append(pl.BlockSpec((kp, npad), lambda i: (0, 0)))
        in_specs.append(pl.BlockSpec((1, npad), lambda i: (0, 0)))
        flat_args += [w_p, b_p]

    flops = 2 * B_p * sum(w.shape[0] * w.shape[1] for w, _ in padded_params)
    bytes_accessed = (x_p.size * 4
                      + sum(w.size * 2 + b.size * 4 for w, b in padded_params)
                      + B_p * OUT_p * 4)

    out_padded = pl.pallas_call(
        _decoder_fused_kernel,
        out_shape=jax.ShapeDtypeStruct((B_p, OUT_p), jnp.float32),
        grid=(num_tiles,),
        in_specs=in_specs,
        out_specs=pl.BlockSpec((TB, OUT_p), lambda i: (i, 0)),
        compiler_params=pltpu.CompilerParams(
            dimension_semantics=("parallel",),
            vmem_limit_bytes=32 * 1024 * 1024,
        ),
        cost_estimate=pl.CostEstimate(flops=flops, transcendentals=0,
                                      bytes_accessed=bytes_accessed),
    )(x_p, *flat_args)

    return out_padded[:B, :out_dim]


def init_decoder_params(key, input_dim, feature_dim):
    """Deterministic synthetic params, PyTorch-style uniform(-1/sqrt(fan_in), +)."""
    dims = [feature_dim, 2000, 500, 500, input_dim]
    params = []
    for i in range(4):
        fan_in, fan_out = dims[i], dims[i + 1]
        key, kw, kb = jax.random.split(key, 3)
        bound = 1.0 / jnp.sqrt(jnp.float32(fan_in))
        w = jax.random.uniform(kw, (fan_in, fan_out), jnp.float32, -bound, bound)
        b = jax.random.uniform(kb, (fan_out,), jnp.float32, -bound, bound)
        params.append((w, b))
    return params


def decoder_reference(x, params):
    h = x
    for idx, (w, b) in enumerate(params):
        h = h @ w + b
        if idx < len(params) - 1:
            h = jnp.maximum(h, 0.0)
    return h


if __name__ == "__main__":
    key = jax.random.PRNGKey(0)
    batch = 8
    feature_dim = 32
    input_dim = 64

    key, kx = jax.random.split(key)
    x = jax.random.normal(kx, (batch, feature_dim), jnp.float32)

    params = init_decoder_params(key, input_dim, feature_dim)
    padded_params = prepare_decoder_params(params)   # pad + bf16 cast, once

    out = decoder_forward(x, padded_params, out_dim=input_dim)
    out = jax.block_until_ready(out)

    ref = decoder_reference(x, params)
    assert out.shape == (batch, input_dim)
    # bf16 weights -> ~1e-3 abs error on outputs of magnitude ~1e-1; f32 ref.
    assert jnp.allclose(out, ref, atol=3e-2, rtol=3e-2), \
        float(jnp.max(jnp.abs(out - ref)))

    print("KERNEL_OK")
</pallas_src>

<mosaic_0001>
module attributes {stable_mosaic.version = 11 : i64} {
  func.func @_decoder_fused_kernel(%arg0: i32, %arg1: memref<8x128xf32, #tpu.memory_space<vmem>>, %arg2: memref<128x2048xbf16, #tpu.memory_space<vmem>>, %arg3: memref<1x2048xf32, #tpu.memory_space<vmem>>, %arg4: memref<2048x512xbf16, #tpu.memory_space<vmem>>, %arg5: memref<1x512xf32, #tpu.memory_space<vmem>>, %arg6: memref<512x512xbf16, #tpu.memory_space<vmem>>, %arg7: memref<1x512xf32, #tpu.memory_space<vmem>>, %arg8: memref<512x128xbf16, #tpu.memory_space<vmem>>, %arg9: memref<1x128xf32, #tpu.memory_space<vmem>>, %arg10: memref<8x128xf32, #tpu.memory_space<vmem>>) attributes {dimension_semantics = [#tpu.dimension_semantics<parallel>], iteration_bounds = array<i64: 1>, scalar_prefetch = 0 : i64, scratch_operands = 0 : i64, tpu.core_type = #tpu.core_type<tc>, window_params = [{transform_indices = @transform_0, window_bounds = array<i64: 8, 128>}, {pipeline_mode = #tpu.pipeline_mode<synchronous>, transform_indices = @transform_1, window_bounds = array<i64: 128, 2048>}, {pipeline_mode = #tpu.pipeline_mode<synchronous>, transform_indices = @transform_2, window_bounds = array<i64: 1, 2048>}, {pipeline_mode = #tpu.pipeline_mode<synchronous>, transform_indices = @transform_3, window_bounds = array<i64: 2048, 512>}, {pipeline_mode = #tpu.pipeline_mode<synchronous>, transform_indices = @transform_4, window_bounds = array<i64: 1, 512>}, {pipeline_mode = #tpu.pipeline_mode<synchronous>, transform_indices = @transform_5, window_bounds = array<i64: 512, 512>}, {pipeline_mode = #tpu.pipeline_mode<synchronous>, transform_indices = @transform_6, window_bounds = array<i64: 1, 512>}, {pipeline_mode = #tpu.pipeline_mode<synchronous>, transform_indices = @transform_7, window_bounds = array<i64: 512, 128>}, {pipeline_mode = #tpu.pipeline_mode<synchronous>, transform_indices = @transform_8, window_bounds = array<i64: 1, 128>}, {transform_indices = @transform_9, window_bounds = array<i64: 8, 128>}]} {
    %c0 = arith.constant 0 : index
    %c0_0 = arith.constant 0 : index
    %0 = vector.load %arg1[%c0, %c0_0] : memref<8x128xf32, #tpu.memory_space<vmem>>, vector<8x128xf32>
    %1 = arith.truncf %0 : vector<8x128xf32> to vector<8x128xbf16>
    %cst = arith.constant 0.000000e+00 : f32
    %2 = vector.broadcast %cst : f32 to vector<8x512xf32>
    %c0_1 = arith.constant 0 : index
    %c0_2 = arith.constant 0 : index
    %3 = vector.load %arg2[%c0_1, %c0_2] : memref<128x2048xbf16, #tpu.memory_space<vmem>>, vector<128x512xbf16>
    %cst_3 = arith.constant dense<0.000000e+00> : vector<8x512xf32>
    %4 = tpu.matmul %1, %3, %cst_3 {dimension_numbers = #tpu.dot_dimension_numbers<[1], [0], [0], [1], [0, 0, 1, 1], [], []>} : vector<8x128xbf16>, vector<128x512xbf16>, vector<8x512xf32> -> vector<8x512xf32>
    %c0_4 = arith.constant 0 : index
    %c0_5 = arith.constant 0 : index
    %5 = vector.load %arg3[%c0_4, %c0_5] : memref<1x2048xf32, #tpu.memory_space<vmem>>, vector<1x512xf32>
    %6 = vector.broadcast %5 : vector<1x512xf32> to vector<8x512xf32>
    %7 = arith.addf %4, %6 : vector<8x512xf32>
    %cst_6 = arith.constant 0.000000e+00 : f32
    %8 = vector.broadcast %cst_6 : f32 to vector<8x512xf32>
    %9 = arith.maximumf %7, %8 : vector<8x512xf32>
    %10 = arith.truncf %9 : vector<8x512xf32> to vector<8x512xbf16>
    %c0_7 = arith.constant 0 : index
    %c0_8 = arith.constant 0 : index
    %11 = vector.load %arg4[%c0_7, %c0_8] : memref<2048x512xbf16, #tpu.memory_space<vmem>>, vector<512x512xbf16>
    %cst_9 = arith.constant dense<0.000000e+00> : vector<8x512xf32>
    %12 = tpu.matmul %10, %11, %cst_9 {dimension_numbers = #tpu.dot_dimension_numbers<[1], [0], [0], [1], [0, 0, 1, 1], [], []>} : vector<8x512xbf16>, vector<512x512xbf16>, vector<8x512xf32> -> vector<8x512xf32>
    %13 = arith.addf %2, %12 : vector<8x512xf32>
    %c0_10 = arith.constant 0 : index
    %c512 = arith.constant 512 : index
    %14 = vector.load %arg2[%c0_10, %c512] : memref<128x2048xbf16, #tpu.memory_space<vmem>>, vector<128x512xbf16>
    %cst_11 = arith.constant dense<0.000000e+00> : vector<8x512xf32>
    %15 = tpu.matmul %1, %14, %cst_11 {dimension_numbers = #tpu.dot_dimension_numbers<[1], [0], [0], [1], [0, 0, 1, 1], [], []>} : vector<8x128xbf16>, vector<128x512xbf16>, vector<8x512xf32> -> vector<8x512xf32>
    %c0_12 = arith.constant 0 : index
    %c512_13 = arith.constant 512 : index
    %16 = vector.load %arg3[%c0_12, %c512_13] : memref<1x2048xf32, #tpu.memory_space<vmem>>, vector<1x512xf32>
    %17 = vector.broadcast %16 : vector<1x512xf32> to vector<8x512xf32>
    %18 = arith.addf %15, %17 : vector<8x512xf32>
    %cst_14 = arith.constant 0.000000e+00 : f32
    %19 = vector.broadcast %cst_14 : f32 to vector<8x512xf32>
    %20 = arith.maximumf %18, %19 : vector<8x512xf32>
    %21 = arith.truncf %20 : vector<8x512xf32> to vector<8x512xbf16>
    %c512_15 = arith.constant 512 : index
    %c0_16 = arith.constant 0 : index
    %22 = vector.load %arg4[%c512_15, %c0_16] : memref<2048x512xbf16, #tpu.memory_space<vmem>>, vector<512x512xbf16>
    %cst_17 = arith.constant dense<0.000000e+00> : vector<8x512xf32>
    %23 = tpu.matmul %21, %22, %cst_17 {dimension_numbers = #tpu.dot_dimension_numbers<[1], [0], [0], [1], [0, 0, 1, 1], [], []>} : vector<8x512xbf16>, vector<512x512xbf16>, vector<8x512xf32> -> vector<8x512xf32>
    %24 = arith.addf %13, %23 : vector<8x512xf32>
    %c0_18 = arith.constant 0 : index
    %c1024 = arith.constant 1024 : index
    %25 = vector.load %arg2[%c0_18, %c1024] : memref<128x2048xbf16, #tpu.memory_space<vmem>>, vector<128x512xbf16>
    %cst_19 = arith.constant dense<0.000000e+00> : vector<8x512xf32>
    %26 = tpu.matmul %1, %25, %cst_19 {dimension_numbers = #tpu.dot_dimension_numbers<[1], [0], [0], [1], [0, 0, 1, 1], [], []>} : vector<8x128xbf16>, vector<128x512xbf16>, vector<8x512xf32> -> vector<8x512xf32>
    %c0_20 = arith.constant 0 : index
    %c1024_21 = arith.constant 1024 : index
    %27 = vector.load %arg3[%c0_20, %c1024_21] : memref<1x2048xf32, #tpu.memory_space<vmem>>, vector<1x512xf32>
    %28 = vector.broadcast %27 : vector<1x512xf32> to vector<8x512xf32>
    %29 = arith.addf %26, %28 : vector<8x512xf32>
    %cst_22 = arith.constant 0.000000e+00 : f32
    %30 = vector.broadcast %cst_22 : f32 to vector<8x512xf32>
    %31 = arith.maximumf %29, %30 : vector<8x512xf32>
    %32 = arith.truncf %31 : vector<8x512xf32> to vector<8x512xbf16>
    %c1024_23 = arith.constant 1024 : index
    %c0_24 = arith.constant 0 : index
    %33 = vector.load %arg4[%c1024_23, %c0_24] : memref<2048x512xbf16, #tpu.memory_space<vmem>>, vector<512x512xbf16>
    %cst_25 = arith.constant dense<0.000000e+00> : vector<8x512xf32>
    %34 = tpu.matmul %32, %33, %cst_25 {dimension_numbers = #tpu.dot_dimension_numbers<[1], [0], [0], [1], [0, 0, 1, 1], [], []>} : vector<8x512xbf16>, vector<512x512xbf16>, vector<8x512xf32> -> vector<8x512xf32>
    %35 = arith.addf %24, %34 : vector<8x512xf32>
    %c0_26 = arith.constant 0 : index
    %c1536 = arith.constant 1536 : index
    %36 = vector.load %arg2[%c0_26, %c1536] : memref<128x2048xbf16, #tpu.memory_space<vmem>>, vector<128x512xbf16>
    %cst_27 = arith.constant dense<0.000000e+00> : vector<8x512xf32>
    %37 = tpu.matmul %1, %36, %cst_27 {dimension_numbers = #tpu.dot_dimension_numbers<[1], [0], [0], [1], [0, 0, 1, 1], [], []>} : vector<8x128xbf16>, vector<128x512xbf16>, vector<8x512xf32> -> vector<8x512xf32>
    %c0_28 = arith.constant 0 : index
    %c1536_29 = arith.constant 1536 : index
    %38 = vector.load %arg3[%c0_28, %c1536_29] : memref<1x2048xf32, #tpu.memory_space<vmem>>, vector<1x512xf32>
    %39 = vector.broadcast %38 : vector<1x512xf32> to vector<8x512xf32>
    %40 = arith.addf %37, %39 : vector<8x512xf32>
    %cst_30 = arith.constant 0.000000e+00 : f32
    %41 = vector.broadcast %cst_30 : f32 to vector<8x512xf32>
    %42 = arith.maximumf %40, %41 : vector<8x512xf32>
    %43 = arith.truncf %42 : vector<8x512xf32> to vector<8x512xbf16>
    %c1536_31 = arith.constant 1536 : index
    %c0_32 = arith.constant 0 : index
    %44 = vector.load %arg4[%c1536_31, %c0_32] : memref<2048x512xbf16, #tpu.memory_space<vmem>>, vector<512x512xbf16>
    %cst_33 = arith.constant dense<0.000000e+00> : vector<8x512xf32>
    %45 = tpu.matmul %43, %44, %cst_33 {dimension_numbers = #tpu.dot_dimension_numbers<[1], [0], [0], [1], [0, 0, 1, 1], [], []>} : vector<8x512xbf16>, vector<512x512xbf16>, vector<8x512xf32> -> vector<8x512xf32>
    %46 = arith.addf %35, %45 : vector<8x512xf32>
    %c0_34 = arith.constant 0 : index
    %c0_35 = arith.constant 0 : index
    %47 = vector.load %arg5[%c0_34, %c0_35] : memref<1x512xf32, #tpu.memory_space<vmem>>, vector<1x512xf32>
    %48 = vector.broadcast %47 : vector<1x512xf32> to vector<8x512xf32>
    %49 = arith.addf %46, %48 : vector<8x512xf32>
    %cst_36 = arith.constant 0.000000e+00 : f32
    %50 = vector.broadcast %cst_36 : f32 to vector<8x512xf32>
    %51 = arith.maximumf %49, %50 : vector<8x512xf32>
    %52 = arith.truncf %51 : vector<8x512xf32> to vector<8x512xbf16>
    %c0_37 = arith.constant 0 : index
    %c0_38 = arith.constant 0 : index
    %53 = vector.load %arg6[%c0_37, %c0_38] : memref<512x512xbf16, #tpu.memory_space<vmem>>, vector<512x512xbf16>
    %cst_39 = arith.constant dense<0.000000e+00> : vector<8x512xf32>
    %54 = tpu.matmul %52, %53, %cst_39 {dimension_numbers = #tpu.dot_dimension_numbers<[1], [0], [0], [1], [0, 0, 1, 1], [], []>} : vector<8x512xbf16>, vector<512x512xbf16>, vector<8x512xf32> -> vector<8x512xf32>
    %c0_40 = arith.constant 0 : index
    %c0_41 = arith.constant 0 : index
    %55 = vector.load %arg7[%c0_40, %c0_41] : memref<1x512xf32, #tpu.memory_space<vmem>>, vector<1x512xf32>
    %56 = vector.broadcast %55 : vector<1x512xf32> to vector<8x512xf32>
    %57 = arith.addf %54, %56 : vector<8x512xf32>
    %cst_42 = arith.constant 0.000000e+00 : f32
    %58 = vector.broadcast %cst_42 : f32 to vector<8x512xf32>
    %59 = arith.maximumf %57, %58 : vector<8x512xf32>
    %60 = arith.truncf %59 : vector<8x512xf32> to vector<8x512xbf16>
    %c0_43 = arith.constant 0 : index
    %c0_44 = arith.constant 0 : index
    %61 = vector.load %arg8[%c0_43, %c0_44] : memref<512x128xbf16, #tpu.memory_space<vmem>>, vector<512x128xbf16>
    %cst_45 = arith.constant dense<0.000000e+00> : vector<8x128xf32>
    %62 = tpu.matmul %60, %61, %cst_45 {dimension_numbers = #tpu.dot_dimension_numbers<[1], [0], [0], [1], [0, 0, 1, 1], [], []>} : vector<8x512xbf16>, vector<512x128xbf16>, vector<8x128xf32> -> vector<8x128xf32>
    %c0_46 = arith.constant 0 : index
    %c0_47 = arith.constant 0 : index
    %63 = vector.load %arg9[%c0_46, %c0_47] : memref<1x128xf32, #tpu.memory_space<vmem>>, vector<1x128xf32>
    %64 = vector.broadcast %63 : vector<1x128xf32> to vector<8x128xf32>
    %65 = arith.addf %62, %64 : vector<8x128xf32>
    %c0_48 = arith.constant 0 : index
    %c0_49 = arith.constant 0 : index
    %66 = vector.load %arg10[%c0_48, %c0_49] : memref<8x128xf32, #tpu.memory_space<vmem>>, vector<8x128xf32>
    tpu.vector_store %arg10[%c0_48, %c0_49], %65 {strides = array<i32>} : memref<8x128xf32, #tpu.memory_space<vmem>>, vector<8x128xf32>,
    return
  }
  func.func @transform_0(%arg0: i32) -> (i32, i32) {
    %c0_i32 = arith.constant 0 : i32
    %c0_i32_0 = arith.constant 0 : i32
    return %arg0, %c0_i32 : i32, i32
  }
  func.func @transform_1(%arg0: i32) -> (i32, i32) {
    %c0_i32 = arith.constant 0 : i32
    %c0_i32_0 = arith.constant 0 : i32
    %c0_i32_1 = arith.constant 0 : i32
    return %c0_i32, %c0_i32_0 : i32, i32
  }
  func.func @transform_2(%arg0: i32) -> (i32, i32) {
    %c0_i32 = arith.constant 0 : i32
    %c0_i32_0 = arith.constant 0 : i32
    %c0_i32_1 = arith.constant 0 : i32
    return %c0_i32, %c0_i32_0 : i32, i32
  }
  func.func @transform_3(%arg0: i32) -> (i32, i32) {
    %c0_i32 = arith.constant 0 : i32
    %c0_i32_0 = arith.constant 0 : i32
    %c0_i32_1 = arith.constant 0 : i32
    return %c0_i32, %c0_i32_0 : i32, i32
  }
  func.func @transform_4(%arg0: i32) -> (i32, i32) {
    %c0_i32 = arith.constant 0 : i32
    %c0_i32_0 = arith.constant 0 : i32
    %c0_i32_1 = arith.constant 0 : i32
    return %c0_i32, %c0_i32_0 : i32, i32
  }
  func.func @transform_5(%arg0: i32) -> (i32, i32) {
    %c0_i32 = arith.constant 0 : i32
    %c0_i32_0 = arith.constant 0 : i32
    %c0_i32_1 = arith.constant 0 : i32
    return %c0_i32, %c0_i32_0 : i32, i32
  }
  func.func @transform_6(%arg0: i32) -> (i32, i32) {
    %c0_i32 = arith.constant 0 : i32
    %c0_i32_0 = arith.constant 0 : i32
    %c0_i32_1 = arith.constant 0 : i32
    return %c0_i32, %c0_i32_0 : i32, i32
  }
  func.func @transform_7(%arg0: i32) -> (i32, i32) {
    %c0_i32 = arith.constant 0 : i32
    %c0_i32_0 = arith.constant 0 : i32
    %c0_i32_1 = arith.constant 0 : i32
    return %c0_i32, %c0_i32_0 : i32, i32
  }
  func.func @transform_8(%arg0: i32) -> (i32, i32) {
    %c0_i32 = arith.constant 0 : i32
    %c0_i32_0 = arith.constant 0 : i32
    %c0_i32_1 = arith.constant 0 : i32
    return %c0_i32, %c0_i32_0 : i32, i32
  }
  func.func @transform_9(%arg0: i32) -> (i32, i32) {
    %c0_i32 = arith.constant 0 : i32
    %c0_i32_0 = arith.constant 0 : i32
    return %arg0, %c0_i32 : i32, i32
  }
}

</mosaic_0001>

<llo_original>
// kernel: decoder_forward.1
$region0: #{decoder_forward.1}
  #allocation0 [shape = 'u32[]', space=smem, size = 0x4, offset = 0x4, fixed_abs, tag = 'smem constant byte address 0x4 - core index']
  #allocation1 [shape = 'u32[144,128]{1,0:T(1,128)}', space=vmem, size = 0x12000, scoped, tag = 'internal scratch']
  %s0 = inlined_call_operand.vmem [shape: f32[8,128], index: 0, kind: input, shape index: {}]
  %s1 = inlined_call_operand.hbm [shape: bf16[128,2048], index: 1, kind: input, shape index: {}]
  %s2 = inlined_call_operand.hbm [shape: f32[1,2048], index: 2, kind: input, shape index: {}]
  %s3 = inlined_call_operand.hbm [shape: bf16[2048,512], index: 3, kind: input, shape index: {}]
  %s4 = inlined_call_operand.hbm [shape: f32[1,512], index: 4, kind: input, shape index: {}]
  %s5 = inlined_call_operand.hbm [shape: bf16[512,512], index: 5, kind: input, shape index: {}]
  %s6 = inlined_call_operand.hbm [shape: f32[1,512], index: 6, kind: input, shape index: {}]
  %s7 = inlined_call_operand.hbm [shape: bf16[512,128], index: 7, kind: input, shape index: {}]
  %s8 = inlined_call_operand.hbm [shape: f32[1,128], index: 8, kind: input, shape index: {}]
  %s9 = inlined_call_operand.hbm [shape: f32[8,128], index: 9, kind: output, shape index: {}]
  %s10 = sld [smem:[#allocation0]]
  $region78: #{decoder_forward.1} parent=0
    _
  %s12 = ssub.s32 1, %s10
  %s13 = scalar_select 0, %s12, %s10
  $region1: #{decoder_forward.1} parent=0
    #allocation2 [shape = 'u8[524288]{0}', space=vmem, size = 0x80000, scoped, tag = 'input window, operand 1, single buffered']
    #allocation3 [shape = 's32[1]{0}', space=sflag, size = 0x4, scoped, tag = 'scoped memory for decoder_forward.1']
    #allocation4 [shape = 's32[1]{0}', space=sflag, size = 0x4, scoped, tag = 'scoped memory for decoder_forward.1']
    #allocation5 [shape = 'u8[8192]{0}', space=vmem, size = 0x2000, scoped, tag = 'input window, operand 2, single buffered']
    #allocation6 [shape = 's32[1]{0}', space=sflag, size = 0x4, scoped, tag = 'scoped memory for decoder_forward.1']
    #allocation7 [shape = 'u8[2097152]{0}', space=vmem, size = 0x200000, scoped, tag = 'input window, operand 3, single buffered']
    #allocation8 [shape = 'u8[2048]{0}', space=vmem, size = 0x800, scoped, tag = 'input window, operand 4, single buffered']
    #allocation9 [shape = 's32[1]{0}', space=sflag, size = 0x4, scoped, tag = 'scoped memory for decoder_forward.1']
    #allocation10 [shape = 'u8[524288]{0}', space=vmem, size = 0x80000, scoped, tag = 'input window, operand 5, single buffered']
    #allocation11 [shape = 'u8[2048]{0}', space=vmem, size = 0x800, scoped, tag = 'input window, operand 6, single buffered']
    #allocation12 [shape = 's32[1]{0}', space=sflag, size = 0x4, scoped, tag = 'scoped memory for decoder_forward.1']
    #allocation13 [shape = 'u8[131072]{0}', space=vmem, size = 0x20000, scoped, tag = 'input window, operand 7, single buffered']
    #allocation14 [shape = 'u8[512]{0}', space=vmem, size = 0x400, scoped, tag = 'input window, operand 8, single buffered']
    #allocation15 [shape = 's32[1]{0}', space=sflag, size = 0x4, scoped, tag = 'scoped memory for decoder_forward.1']
    #allocation16 [shape = 'u8[4096]{0}', space=vmem, size = 0x1000, scoped, tag = 'output window, operand 0, single buffered']
    %14 = vsyncpa [#allocation3], 0
    %15 = vsyncpa [#allocation6], 0
    %16 = vsyncpa [#allocation9], 0
    %17 = vsyncpa [#allocation12], 0
    %18 = vsyncpa [#allocation15], 0
    %19 = vsyncpa [#allocation4], 0
    // Predicated region
    $region2: #{decoder_forward.1} parent=1 // pred_check
      _
    $region3: #{decoder_forward.1} parent=1 // pred_check_branch
      %21 = sbr.rel (0) target = $region5
    $region4: #{decoder_forward.1} parent=1 // pred_region
      _
    $region5: #{decoder_forward.1} parent=1 // pred_fallthru
      _
    // Predicated region
    $region6: #{decoder_forward.1} parent=1 // pred_check
      _
    $region7: #{decoder_forward.1} parent=1 // pred_check_branch
      %23 = sbr.rel (0) target = $region9
    $region8: #{decoder_forward.1} parent=1 // pred_region
      %s25 = ssub.s32 16384, 16384
      %26 = vsyncadd [#allocation3], %s25
      %s27 = sshll.u32 [#allocation2], 4
      %s28 = int_to_ptr.vmem [resolvable:$true] %s27
      %33 = dma.hbm_to_vmem [thread:$0]  %s1, 16384, %s28, [#allocation3], 1024, 1024, 64
    $region9: #{decoder_forward.1} parent=1 // pred_fallthru
      _
    // Predicated region
    $region10: #{decoder_forward.1} parent=1 // pred_check
      _
    $region11: #{decoder_forward.1} parent=1 // pred_check_branch
      %35 = sbr.rel (0) target = $region13
    $region12: #{decoder_forward.1} parent=1 // pred_region
      %s37 = ssub.s32 256, 256
      %38 = vsyncadd [#allocation6], %s37
      %s40 = sshll.u32 [#allocation5], 4
      %s41 = int_to_ptr.vmem [resolvable:$true] %s40
      %43 = dma.hbm_to_vmem [thread:$0]  %s2, 256, %s41, [#allocation6]
    $region13: #{decoder_forward.1} parent=1 // pred_fallthru
      _
    // Predicated region
    $region14: #{decoder_forward.1} parent=1 // pred_check
      _
    $region15: #{decoder_forward.1} parent=1 // pred_check_branch
      %45 = sbr.rel (0) target = $region17
    $region16: #{decoder_forward.1} parent=1 // pred_region
      %s47 = ssub.s32 65536, 65536
      %48 = vsyncadd [#allocation6], %s47
      %s49 = sshll.u32 [#allocation7], 4
      %s50 = int_to_ptr.vmem [resolvable:$true] %s49
      %55 = dma.hbm_to_vmem [thread:$0]  %s3, 65536, %s50, [#allocation6], 256, 256, 16
    $region17: #{decoder_forward.1} parent=1 // pred_fallthru
      _
    // Predicated region
    $region18: #{decoder_forward.1} parent=1 // pred_check
      _
    $region19: #{decoder_forward.1} parent=1 // pred_check_branch
      %57 = sbr.rel (0) target = $region21
    $region20: #{decoder_forward.1} parent=1 // pred_region
      %s59 = ssub.s32 64, 64
      %60 = vsyncadd [#allocation9], %s59
      %s62 = sshll.u32 [#allocation8], 4
      %s63 = int_to_ptr.vmem [resolvable:$true] %s62
      %65 = dma.hbm_to_vmem [thread:$0]  %s4, 64, %s63, [#allocation9]
    $region21: #{decoder_forward.1} parent=1 // pred_fallthru
      _
    // Predicated region
    $region22: #{decoder_forward.1} parent=1 // pred_check
      _
    $region23: #{decoder_forward.1} parent=1 // pred_check_branch
      %67 = sbr.rel (0) target = $region25
    $region24: #{decoder_forward.1} parent=1 // pred_region
      %s69 = ssub.s32 16384, 16384
      %70 = vsyncadd [#allocation9], %s69
      %s71 = sshll.u32 [#allocation10], 4
      %s72 = int_to_ptr.vmem [resolvable:$true] %s71
      %77 = dma.hbm_to_vmem [thread:$0]  %s5, 16384, %s72, [#allocation9], 256, 256, 16
    $region25: #{decoder_forward.1} parent=1 // pred_fallthru
      _
    // Predicated region
    $region26: #{decoder_forward.1} parent=1 // pred_check
      _
    $region27: #{decoder_forward.1} parent=1 // pred_check_branch
      %79 = sbr.rel (0) target = $region29
    $region28: #{decoder_forward.1} parent=1 // pred_region
      %s81 = ssub.s32 64, 64
      %82 = vsyncadd [#allocation12], %s81
      %s84 = sshll.u32 [#allocation11], 4
      %s85 = int_to_ptr.vmem [resolvable:$true] %s84
      %87 = dma.hbm_to_vmem [thread:$0]  %s6, 64, %s85, [#allocation12]
    $region29: #{decoder_forward.1} parent=1 // pred_fallthru
      _
    // Predicated region
    $region30: #{decoder_forward.1} parent=1 // pred_check
      _
    $region31: #{decoder_forward.1} parent=1 // pred_check_branch
      %89 = sbr.rel (0) target = $region33
    $region32: #{decoder_forward.1} parent=1 // pred_region
      %s91 = ssub.s32 4096, 4096
      %92 = vsyncadd [#allocation12], %s91
      %s93 = sshll.u32 [#allocation13], 4
      %s94 = int_to_ptr.vmem [resolvable:$true] %s93
      %99 = dma.hbm_to_vmem [thread:$0]  %s7, 4096, %s94, [#allocation12], 64, 64, 4
    $region33: #{decoder_forward.1} parent=1 // pred_fallthru
      _
    // Predicated region
    $region34: #{decoder_forward.1} parent=1 // pred_check
      _
    $region35: #{decoder_forward.1} parent=1 // pred_check_branch
      %101 = sbr.rel (0) target = $region37
    $region36: #{decoder_forward.1} parent=1 // pred_region
      %s103 = ssub.s32 16, 16
      %104 = vsyncadd [#allocation15], %s103
      %s106 = sshll.u32 [#allocation14], 4
      %s107 = int_to_ptr.vmem [resolvable:$true] %s106
      %109 = dma.hbm_to_vmem [thread:$0]  %s8, 16, %s107, [#allocation15]
    $region37: #{decoder_forward.1} parent=1 // pred_fallthru
      _
    // Predicated region
    $region38: #{decoder_forward.1} parent=1 // pred_check
      _
    $region39: #{decoder_forward.1} parent=1 // pred_check_branch
      %111 = sbr.rel (0) target = $region41
    $region40: #{decoder_forward.1} parent=1 // pred_region
      %112 = dma.done [#allocation3], 16384
    $region41: #{decoder_forward.1} parent=1 // pred_fallthru
      _
    // Predicated region
    $region42: #{decoder_forward.1} parent=1 // pred_check
      _
    $region43: #{decoder_forward.1} parent=1 // pred_check_branch
      %114 = sbr.rel (0) target = $region45
    $region44: #{decoder_forward.1} parent=1 // pred_region
      %115 = dma.done [#allocation6], 256
    $region45: #{decoder_forward.1} parent=1 // pred_fallthru
      _
    // Predicated region
    $region46: #{decoder_forward.1} parent=1 // pred_check
      _
    $region47: #{decoder_forward.1} parent=1 // pred_check_branch
      %117 = sbr.rel (0) target = $region49
    $region48: #{decoder_forward.1} parent=1 // pred_region
      %118 = dma.done [#allocation6], 65536
    $region49: #{decoder_forward.1} parent=1 // pred_fallthru
      _
    // Predicated region
    $region50: #{decoder_forward.1} parent=1 // pred_check
      _
    $region51: #{decoder_forward.1} parent=1 // pred_check_branch
      %120 = sbr.rel (0) target = $region53
    $region52: #{decoder_forward.1} parent=1 // pred_region
      %121 = dma.done [#allocation9], 64
    $region53: #{decoder_forward.1} parent=1 // pred_fallthru
      _
    // Predicated region
    $region54: #{decoder_forward.1} parent=1 // pred_check
      _
    $region55: #{decoder_forward.1} parent=1 // pred_check_branch
      %123 = sbr.rel (0) target = $region57
    $region56: #{decoder_forward.1} parent=1 // pred_region
      %124 = dma.done [#allocation9], 16384
    $region57: #{decoder_forward.1} parent=1 // pred_fallthru
      _
    // Predicated region
    $region58: #{decoder_forward.1} parent=1 // pred_check
      _
    $region59: #{decoder_forward.1} parent=1 // pred_check_branch
      %126 = sbr.rel (0) target = $region61
    $region60: #{decoder_forward.1} parent=1 // pred_region
      %127 = dma.done [#allocation12], 64
    $region61: #{decoder_forward.1} parent=1 // pred_fallthru
      _
    // Predicated region
    $region62: #{decoder_forward.1} parent=1 // pred_check
      _
    $region63: #{decoder_forward.1} parent=1 // pred_check_branch
      %129 = sbr.rel (0) target = $region65
    $region64: #{decoder_forward.1} parent=1 // pred_region
      %130 = dma.done [#allocation12], 4096
    $region65: #{decoder_forward.1} parent=1 // pred_fallthru
      _
    // Predicated region
    $region66: #{decoder_forward.1} parent=1 // pred_check
      _
    $region67: #{decoder_forward.1} parent=1 // pred_check_branch
      %132 = sbr.rel (0) target = $region69
    $region68: #{decoder_forward.1} parent=1 // pred_region
      %133 = dma.done [#allocation15], 16
    $region69: #{decoder_forward.1} parent=1 // pred_fallthru
      _
    %v135 = vld [vmem:[%s0] sm:$0xff]
    %v136 = vpack.c.bf16 %v135, %v135
    %v137 = vld [vmem:[#allocation2] sm:$0xff]
    %v138 = vld [vmem:[#allocation2 + $0x8] sm:$0xff]
    %v139 = vld [vmem:[#allocation2 + $0x40] sm:$0xff]
    %v140 = vld [vmem:[#allocation2 + $0x48] sm:$0xff]
    %v141 = vld [vmem:[#allocation2 + $0x80] sm:$0xff]
    %v142 = vld [vmem:[#allocation2 + $0x88] sm:$0xff]
    %v143 = vld [vmem:[#allocation2 + $0xc0] sm:$0xff]
    %v144 = vld [vmem:[#allocation2 + $0xc8] sm:$0xff]
    %v145 = vld [vmem:[#allocation2 + $0x100] sm:$0xff]
    %v146 = vld [vmem:[#allocation2 + $0x108] sm:$0xff]
    %v147 = vld [vmem:[#allocation2 + $0x140] sm:$0xff]
    %v148 = vld [vmem:[#allocation2 + $0x148] sm:$0xff]
    %v149 = vld [vmem:[#allocation2 + $0x180] sm:$0xff]
    %v150 = vld [vmem:[#allocation2 + $0x188] sm:$0xff]
    %v151 = vld [vmem:[#allocation2 + $0x1c0] sm:$0xff]
    %v152 = vld [vmem:[#allocation2 + $0x1c8] sm:$0xff]
    %v153 = vld [vmem:[#allocation2 + $0x200] sm:$0xff]
    %v154 = vld [vmem:[#allocation2 + $0x208] sm:$0xff]
    %v155 = vld [vmem:[#allocation2 + $0x240] sm:$0xff]
    %v156 = vld [vmem:[#allocation2 + $0x248] sm:$0xff]
    %v157 = vld [vmem:[#allocation2 + $0x280] sm:$0xff]
    %v158 = vld [vmem:[#allocation2 + $0x288] sm:$0xff]
    %v159 = vld [vmem:[#allocation2 + $0x2c0] sm:$0xff]
    %v160 = vld [vmem:[#allocation2 + $0x2c8] sm:$0xff]
    %v161 = vld [vmem:[#allocation2 + $0x300] sm:$0xff]
    %v162 = vld [vmem:[#allocation2 + $0x308] sm:$0xff]
    %v163 = vld [vmem:[#allocation2 + $0x340] sm:$0xff]
    %v164 = vld [vmem:[#allocation2 + $0x348] sm:$0xff]
    %v165 = vld [vmem:[#allocation2 + $0x380] sm:$0xff]
    %v166 = vld [vmem:[#allocation2 + $0x388] sm:$0xff]
    %v167 = vld [vmem:[#allocation2 + $0x3c0] sm:$0xff]
    %v168 = vld [vmem:[#allocation2 + $0x3c8] sm:$0xff]
    %v169 = vld [vmem:[#allocation5] sm:$0xf]
    %v171 = vlaneseq
    %v172 = vshrl.u32 %v171, 7
    %v173 = vsub.s32 0, %v172
    %v174 = vrot.slane %v169, %v173
    %v175 = vlaneseq
    %v176 = vshrl.u32 %v175, 7
    %v177 = vsub.s32 1, %v176
    %v178 = vrot.slane %v169, %v177
    %v179 = vlaneseq
    %v180 = vshrl.u32 %v179, 7
    %v181 = vsub.s32 2, %v180
    %v182 = vrot.slane %v169, %v181
    %v183 = vlaneseq
    %v184 = vshrl.u32 %v183, 7
    %v185 = vsub.s32 3, %v184
    %v186 = vrot.slane %v169, %v185
    %v223 = vunpack.c.l.b16 %v137
    %v224 = vunpack.c.h.b16 %v137
    %v225 = vunpack.c.l.b16 %v138
    %v226 = vunpack.c.h.b16 %v138
    %v227 = vunpack.c.l.b16 %v139
    %v228 = vunpack.c.h.b16 %v139
    %v229 = vunpack.c.l.b16 %v140
    %v230 = vunpack.c.h.b16 %v140
    %v231 = vunpack.c.l.b16 %v141
    %v232 = vunpack.c.h.b16 %v141
    %v233 = vunpack.c.l.b16 %v142
    %v234 = vunpack.c.h.b16 %v142
    %v235 = vunpack.c.l.b16 %v143
    %v236 = vunpack.c.h.b16 %v143
    %v237 = vunpack.c.l.b16 %v144
    %v238 = vunpack.c.h.b16 %v144
    %v239 = vunpack.c.l.b16 %v145
    %v240 = vunpack.c.h.b16 %v145
    %v241 = vunpack.c.l.b16 %v146
    %v242 = vunpack.c.h.b16 %v146
    %v243 = vunpack.c.l.b16 %v147
    %v244 = vunpack.c.h.b16 %v147
    %v245 = vunpack.c.l.b16 %v148
    %v246 = vunpack.c.h.b16 %v148
    %v247 = vunpack.c.l.b16 %v149
    %v248 = vunpack.c.h.b16 %v149
    %v249 = vunpack.c.l.b16 %v150
    %v250 = vunpack.c.h.b16 %v150
    %v251 = vunpack.c.l.b16 %v151
    %v252 = vunpack.c.h.b16 %v151
    %v253 = vunpack.c.l.b16 %v152
    %v254 = vunpack.c.h.b16 %v152
    %v255 = vunpack.c.l.b16 %v153
    %v256 = vunpack.c.h.b16 %v153
    %v257 = vunpack.c.l.b16 %v154
    %v258 = vunpack.c.h.b16 %v154
    %v259 = vunpack.c.l.b16 %v155
    %v260 = vunpack.c.h.b16 %v155
    %v261 = vunpack.c.l.b16 %v156
    %v262 = vunpack.c.h.b16 %v156
    %v263 = vunpack.c.l.b16 %v157
    %v264 = vunpack.c.h.b16 %v157
    %v265 = vunpack.c.l.b16 %v158
    %v266 = vunpack.c.h.b16 %v158
    %v267 = vunpack.c.l.b16 %v159
    %v268 = vunpack.c.h.b16 %v159
    %v269 = vunpack.c.l.b16 %v160
    %v270 = vunpack.c.h.b16 %v160
    %v271 = vunpack.c.l.b16 %v161
    %v272 = vunpack.c.h.b16 %v161
    %v273 = vunpack.c.l.b16 %v162
    %v274 = vunpack.c.h.b16 %v162
    %v275 = vunpack.c.l.b16 %v163
    %v276 = vunpack.c.h.b16 %v163
    %v277 = vunpack.c.l.b16 %v164
    %v278 = vunpack.c.h.b16 %v164
    %v279 = vunpack.c.l.b16 %v165
    %v280 = vunpack.c.h.b16 %v165
    %v281 = vunpack.c.l.b16 %v166
    %v282 = vunpack.c.h.b16 %v166
    %v283 = vunpack.c.l.b16 %v167
    %v284 = vunpack.c.h.b16 %v167
    %v285 = vunpack.c.l.b16 %v168
    %v286 = vunpack.c.h.b16 %v168
    %v287 = vpack.c.b16 %v227, %v223
    %v288 = vpack.c.b16 %v228, %v224
    %v289 = vpack.c.b16 %v229, %v225
    %v290 = vpack.c.b16 %v230, %v226
    %v291 = vpack.c.b16 %v235, %v231
    %v292 = vpack.c.b16 %v236, %v232
    %v293 = vpack.c.b16 %v237, %v233
    %v294 = vpack.c.b16 %v238, %v234
    %v295 = vpack.c.b16 %v243, %v239
    %v296 = vpack.c.b16 %v244, %v240
    %v297 = vpack.c.b16 %v245, %v241
    %v298 = vpack.c.b16 %v246, %v242
    %v299 = vpack.c.b16 %v251, %v247
    %v300 = vpack.c.b16 %v252, %v248
    %v301 = vpack.c.b16 %v253, %v249
    %v302 = vpack.c.b16 %v254, %v250
    %v303 = vpack.c.b16 %v259, %v255
    %v304 = vpack.c.b16 %v260, %v256
    %v305 = vpack.c.b16 %v261, %v257
    %v306 = vpack.c.b16 %v262, %v258
    %v307 = vpack.c.b16 %v267, %v263
    %v308 = vpack.c.b16 %v268, %v264
    %v309 = vpack.c.b16 %v269, %v265
    %v310 = vpack.c.b16 %v270, %v266
    %v311 = vpack.c.b16 %v275, %v271
    %v312 = vpack.c.b16 %v276, %v272
    %v313 = vpack.c.b16 %v277, %v273
    %v314 = vpack.c.b16 %v278, %v274
    %v315 = vpack.c.b16 %v283, %v279
    %v316 = vpack.c.b16 %v284, %v280
    %v317 = vpack.c.b16 %v285, %v281
    %v318 = vpack.c.b16 %v286, %v282
    %351 = vmatprep.subr.bf16.mxu0 %v316
    %352 = vmatpush1.bf16.msra.mxu0 %v315
    %353 = vmatprep.subr.bf16.mxu0 %v312
    %354 = vmatpush1.bf16.msra.mxu0 %v311
    %355 = vmatprep.subr.bf16.mxu0 %v308
    %356 = vmatpush1.bf16.msra.mxu0 %v307
    %357 = vmatprep.subr.bf16.mxu0 %v304
    %358 = vmatpush1.bf16.msra.mxu0 %v303
    %359 = vmatprep.subr.bf16.mxu0 %v300
    %360 = vmatpush1.bf16.msra.mxu0 %v299
    %361 = vmatprep.subr.bf16.mxu0 %v296
    %362 = vmatpush1.bf16.msra.mxu0 %v295
    %363 = vmatprep.subr.bf16.mxu0 %v292
    %364 = vmatpush1.bf16.msra.mxu0 %v291
    %365 = vmatprep.subr.bf16.mxu0 %v288
    %366 = vmatpush1.bf16.msra.mxu0 %v287
    %367 = vmatprep.subr.bf16.mxu0 0
    %368 = vmatpush2.bf16.msra.mxu0 0
    %369 = vmatprep.subr.bf16.mxu0 0
    %370 = vmatpush2.bf16.msra.mxu0 0
    %371 = vmatprep.subr.bf16.mxu0 0
    %372 = vmatpush2.bf16.msra.mxu0 0
    %373 = vmatprep.subr.bf16.mxu0 0
    %374 = vmatpush2.bf16.msra.mxu0 0
    %375 = vmatprep.subr.bf16.mxu0 0
    %376 = vmatpush2.bf16.msra.mxu0 0
    %377 = vmatprep.subr.bf16.mxu0 0
    %378 = vmatpush2.bf16.msra.mxu0 0
    %379 = vmatprep.subr.bf16.mxu0 0
    %380 = vmatpush2.bf16.msra.mxu0 0
    %381 = vmatprep.subr.bf16.mxu0 0
    %382 = vmatpush2.bf16.msra.mxu0 0
    %383 = vmatprep.mubr.bf16.mxu0 0
    %384 = vmatmul.mubr.bf16.gmra.mxu0 %v136
    %v385 = vpop.f32.mrf.mxu0
    %v386 = vadd.f32 %v174, %v385
    %v387 = vpop.f32.mrf.mxu0
    %v388 = vadd.f32 %v178, %v387
    %v389 = vpop.f32.mrf.mxu0
    %v390 = vpop.f32.mrf.mxu0
    %391 = vdwg.mxu0
    %392 = vmatprep.subr.bf16.mxu0 %v318
    %393 = vmatpush1.bf16.msra.mxu0 %v317
    %394 = vmatprep.subr.bf16.mxu0 %v314
    %395 = vmatpush1.bf16.msra.mxu0 %v313
    %396 = vmatprep.subr.bf16.mxu0 %v310
    %397 = vmatpush1.bf16.msra.mxu0 %v309
    %398 = vmatprep.subr.bf16.mxu0 %v306
    %399 = vmatpush1.bf16.msra.mxu0 %v305
    %400 = vmatprep.subr.bf16.mxu0 %v302
    %401 = vmatpush1.bf16.msra.mxu0 %v301
    %402 = vmatprep.subr.bf16.mxu0 %v298
    %403 = vmatpush1.bf16.msra.mxu0 %v297
    %404 = vmatprep.subr.bf16.mxu0 %v294
    %405 = vmatpush1.bf16.msra.mxu0 %v293
    %406 = vmatprep.subr.bf16.mxu0 %v290
    %407 = vmatpush1.bf16.msra.mxu0 %v289
    %408 = vmatprep.subr.bf16.mxu0 0
    %409 = vmatpush2.bf16.msra.mxu0 0
    %410 = vmatprep.subr.bf16.mxu0 0
    %411 = vmatpush2.bf16.msra.mxu0 0
    %412 = vmatprep.subr.bf16.mxu0 0
    %413 = vmatpush2.bf16.msra.mxu0 0
    %414 = vmatprep.subr.bf16.mxu0 0
    %415 = vmatpush2.bf16.msra.mxu0 0
    %416 = vmatprep.subr.bf16.mxu0 0
    %417 = vmatpush2.bf16.msra.mxu0 0
    %418 = vmatprep.subr.bf16.mxu0 0
    %419 = vmatpush2.bf16.msra.mxu0 0
    %420 = vmatprep.subr.bf16.mxu0 0
    %421 = vmatpush2.bf16.msra.mxu0 0
    %422 = vmatprep.subr.bf16.mxu0 0
    %423 = vmatpush2.bf16.msra.mxu0 0
    %424 = vmatprep.mubr.bf16.mxu0 0
    %425 = vmatmul.mubr.bf16.gmra.mxu0 %v136
    %v426 = vpop.f32.mrf.mxu0
    %v427 = vadd.f32 %v182, %v426
    %v428 = vpop.f32.mrf.mxu0
    %v429 = vadd.f32 %v186, %v428
    %v430 = vpop.f32.mrf.mxu0
    %v431 = vpop.f32.mrf.mxu0
    %432 = vdwg.mxu0
    %v433 = vmax.f32 %v386, 0.0
    %v434 = vmax.f32 %v388, 0.0
    %v435 = vmax.f32 %v427, 0.0
    %v436 = vmax.f32 %v429, 0.0
    %v437 = vpack.c.bf16 %v433, %v433
    %v438 = vpack.c.bf16 %v434, %v434
    %v439 = vpack.c.bf16 %v435, %v435
    %v440 = vpack.c.bf16 %v436, %v436
    %v441 = vld [vmem:[#allocation7] sm:$0xff]
    %v442 = vld [vmem:[#allocation7 + $0x8] sm:$0xff]
    %v443 = vld [vmem:[#allocation7 + $0x10] sm:$0xff]
    %v444 = vld [vmem:[#allocation7 + $0x18] sm:$0xff]
    %v445 = vld [vmem:[#allocation7 + $0x20] sm:$0xff]
    %v446 = vld [vmem:[#allocation7 + $0x28] sm:$0xff]
    %v447 = vld [vmem:[#allocation7 + $0x30] sm:$0xff]
    %v448 = vld [vmem:[#allocation7 + $0x38] sm:$0xff]
    %v449 = vld [vmem:[#allocation7 + $0x40] sm:$0xff]
    %v450 = vld [vmem:[#allocation7 + $0x48] sm:$0xff]
    %v451 = vld [vmem:[#allocation7 + $0x50] sm:$0xff]
    %v452 = vld [vmem:[#allocation7 + $0x58] sm:$0xff]
    %v453 = vld [vmem:[#allocation7 + $0x60] sm:$0xff]
    %v454 = vld [vmem:[#allocation7 + $0x68] sm:$0xff]
    %v455 = vld [vmem:[#allocation7 + $0x70] sm:$0xff]
    %v456 = vld [vmem:[#allocation7 + $0x78] sm:$0xff]
    %v457 = vld [vmem:[#allocation7 + $0x80] sm:$0xff]
    %v458 = vld [vmem:[#allocation7 + $0x88] sm:$0xff]
    %v459 = vld [vmem:[#allocation7 + $0x90] sm:$0xff]
    %v460 = vld [vmem:[#allocation7 + $0x98] sm:$0xff]
    %v461 = vld [vmem:[#allocation7 + $0xa0] sm:$0xff]
    %v462 = vld [vmem:[#allocation7 + $0xa8] sm:$0xff]
    %v463 = vld [vmem:[#allocation7 + $0xb0] sm:$0xff]
    %v464 = vld [vmem:[#allocation7 + $0xb8] sm:$0xff]
    %v465 = vld [vmem:[#allocation7 + $0xc0] sm:$0xff]
    %v466 = vld [vmem:[#allocation7 + $0xc8] sm:$0xff]
    %v467 = vld [vmem:[#allocation7 + $0xd0] sm:$0xff]
    %v468 = vld [vmem:[#allocation7 + $0xd8] sm:$0xff]
    %v469 = vld [vmem:[#allocation7 + $0xe0] sm:$0xff]
    %v470 = vld [vmem:[#allocation7 + $0xe8] sm:$0xff]
    %v471 = vld [vmem:[#allocation7 + $0xf0] sm:$0xff]
    %v472 = vld [vmem:[#allocation7 + $0xf8] sm:$0xff]
    %v473 = vld [vmem:[#allocation7 + $0x100] sm:$0xff]
    %v474 = vld [vmem:[#allocation7 + $0x108] sm:$0xff]
    %v475 = vld [vmem:[#allocation7 + $0x110] sm:$0xff]
    %v476 = vld [vmem:[#allocation7 + $0x118] sm:$0xff]
    %v477 = vld [vmem:[#allocation7 + $0x120] sm:$0xff]
    %v478 = vld [vmem:[#allocation7 + $0x128] sm:$0xff]
    %v479 = vld [vmem:[#allocation7 + $0x130] sm:$0xff]
    %v480 = vld [vmem:[#allocation7 + $0x138] sm:$0xff]
    %v481 = vld [vmem:[#allocation7 + $0x140] sm:$0xff]
    %v482 = vld [vmem:[#allocation7 + $0x148] sm:$0xff]
    %v483 = vld [vmem:[#allocation7 + $0x150] sm:$0xff]
    %v484 = vld [vmem:[#allocation7 + $0x158] sm:$0xff]
    %v485 = vld [vmem:[#allocation7 + $0x160] sm:$0xff]
    %v486 = vld [vmem:[#allocation7 + $0x168] sm:$0xff]
    %v487 = vld [vmem:[#allocation7 + $0x170] sm:$0xff]
    %v488 = vld [vmem:[#allocation7 + $0x178] sm:$0xff]
    %v489 = vld [vmem:[#allocation7 + $0x180] sm:$0xff]
    %v490 = vld [vmem:[#allocation7 + $0x188] sm:$0xff]
    %v491 = vld [vmem:[#allocation7 + $0x190] sm:$0xff]
    %v492 = vld [vmem:[#allocation7 + $0x198] sm:$0xff]
    %v493 = vld [vmem:[#allocation7 + $0x1a0] sm:$0xff]
    %v494 = vld [vmem:[#allocation7 + $0x1a8] sm:$0xff]
    %v495 = vld [vmem:[#allocation7 + $0x1b0] sm:$0xff]
    %v496 = vld [vmem:[#allocation7 + $0x1b8] sm:$0xff]
    %v497 = vld [vmem:[#allocation7 + $0x1c0] sm:$0xff]
    %v498 = vld [vmem:[#allocation7 + $0x1c8] sm:$0xff]
    %v499 = vld [vmem:[#allocation7 + $0x1d0] sm:$0xff]
    %v500 = vld [vmem:[#allocation7 + $0x1d8] sm:$0xff]
    %v501 = vld [vmem:[#allocation7 + $0x1e0] sm:$0xff]
    %v502 = vld [vmem:[#allocation7 + $0x1e8] sm:$0xff]
    %v503 = vld [vmem:[#allocation7 + $0x1f0] sm:$0xff]
    %v504 = vld [vmem:[#allocation7 + $0x1f8] sm:$0xff]
    %v505 = vld [vmem:[#allocation7 + $0x200] sm:$0xff]
    %v506 = vld [vmem:[#allocation7 + $0x208] sm:$0xff]
    %v507 = vld [vmem:[#allocation7 + $0x210] sm:$0xff]
    %v508 = vld [vmem:[#allocation7 + $0x218] sm:$0xff]
    %v509 = vld [vmem:[#allocation7 + $0x220] sm:$0xff]
    %v510 = vld [vmem:[#allocation7 + $0x228] sm:$0xff]
    %v511 = vld [vmem:[#allocation7 + $0x230] sm:$0xff]
    %v512 = vld [vmem:[#allocation7 + $0x238] sm:$0xff]
    %v513 = vld [vmem:[#allocation7 + $0x240] sm:$0xff]
    %v514 = vld [vmem:[#allocation7 + $0x248] sm:$0xff]
    %v515 = vld [vmem:[#allocation7 + $0x250] sm:$0xff]
    %v516 = vld [vmem:[#allocation7 + $0x258] sm:$0xff]
    %v517 = vld [vmem:[#allocation7 + $0x260] sm:$0xff]
    %v518 = vld [vmem:[#allocation7 + $0x268] sm:$0xff]
    %v519 = vld [vmem:[#allocation7 + $0x270] sm:$0xff]
    %v520 = vld [vmem:[#allocation7 + $0x278] sm:$0xff]
    %v521 = vld [vmem:[#allocation7 + $0x280] sm:$0xff]
    %v522 = vld [vmem:[#allocation7 + $0x288] sm:$0xff]
    %v523 = vld [vmem:[#allocation7 + $0x290] sm:$0xff]
    %v524 = vld [vmem:[#allocation7 + $0x298] sm:$0xff]
    %v525 = vld [vmem:[#allocation7 + $0x2a0] sm:$0xff]
    %v526 = vld [vmem:[#allocation7 + $0x2a8] sm:$0xff]
    %v527 = vld [vmem:[#allocation7 + $0x2b0] sm:$0xff]
    %v528 = vld [vmem:[#allocation7 + $0x2b8] sm:$0xff]
    %v529 = vld [vmem:[#allocation7 + $0x2c0] sm:$0xff]
    %v530 = vld [vmem:[#allocation7 + $0x2c8] sm:$0xff]
    %v531 = vld [vmem:[#allocation7 + $0x2d0] sm:$0xff]
    %v532 = vld [vmem:[#allocation7 + $0x2d8] sm:$0xff]
    %v533 = vld [vmem:[#allocation7 + $0x2e0] sm:$0xff]
    %v534 = vld [vmem:[#allocation7 + $0x2e8] sm:$0xff]
    %v535 = vld [vmem:[#allocation7 + $0x2f0] sm:$0xff]
    %v536 = vld [vmem:[#allocation7 + $0x2f8] sm:$0xff]
    %v537 = vld [vmem:[#allocation7 + $0x300] sm:$0xff]
    %v538 = vld [vmem:[#allocation7 + $0x308] sm:$0xff]
    %v539 = vld [vmem:[#allocation7 + $0x310] sm:$0xff]
    %v540 = vld [vmem:[#allocation7 + $0x318] sm:$0xff]
    %v541 = vld [vmem:[#allocation7 + $0x320] sm:$0xff]
    %v542 = vld [vmem:[#allocation7 + $0x328] sm:$0xff]
    %v543 = vld [vmem:[#allocation7 + $0x330] sm:$0xff]
    %v544 = vld [vmem:[#allocation7 + $0x338] sm:$0xff]
    %v545 = vld [vmem:[#allocation7 + $0x340] sm:$0xff]
    %v546 = vld [vmem:[#allocation7 + $0x348] sm:$0xff]
    %v547 = vld [vmem:[#allocation7 + $0x350] sm:$0xff]
    %v548 = vld [vmem:[#allocation7 + $0x358] sm:$0xff]
    %v549 = vld [vmem:[#allocation7 + $0x360] sm:$0xff]
    %v550 = vld [vmem:[#allocation7 + $0x368] sm:$0xff]
    %v551 = vld [vmem:[#allocation7 + $0x370] sm:$0xff]
    %v552 = vld [vmem:[#allocation7 + $0x378] sm:$0xff]
    %v553 = vld [vmem:[#allocation7 + $0x380] sm:$0xff]
    %v554 = vld [vmem:[#allocation7 + $0x388] sm:$0xff]
    %v555 = vld [vmem:[#allocation7 + $0x390] sm:$0xff]
    %v556 = vld [vmem:[#allocation7 + $0x398] sm:$0xff]
    %v557 = vld [vmem:[#allocation7 + $0x3a0] sm:$0xff]
    %v558 = vld [vmem:[#allocation7 + $0x3a8] sm:$0xff]
    %v559 = vld [vmem:[#allocation7 + $0x3b0] sm:$0xff]
    %v560 = vld [vmem:[#allocation7 + $0x3b8] sm:$0xff]
    %v561 = vld [vmem:[#allocation7 + $0x3c0] sm:$0xff]
    %v562 = vld [vmem:[#allocation7 + $0x3c8] sm:$0xff]
    %v563 = vld [vmem:[#allocation7 + $0x3d0] sm:$0xff]
    %v564 = vld [vmem:[#allocation7 + $0x3d8] sm:$0xff]
    %v565 = vld [vmem:[#allocation7 + $0x3e0] sm:$0xff]
    %v566 = vld [vmem:[#allocation7 + $0x3e8] sm:$0xff]
    %v567 = vld [vmem:[#allocation7 + $0x3f0] sm:$0xff]
    %v568 = vld [vmem:[#allocation7 + $0x3f8] sm:$0xff]
    %v569 = vld [vmem:[#allocation2 + $0x10] sm:$0xff]
    %v570 = vld [vmem:[#allocation2 + $0x18] sm:$0xff]
    %v571 = vld [vmem:[#allocation2 + $0x50] sm:$0xff]
    %v572 = vld [vmem:[#allocation2 + $0x58] sm:$0xff]
    %v573 = vld [vmem:[#allocation2 + $0x90] sm:$0xff]
    %v574 = vld [vmem:[#allocation2 + $0x98] sm:$0xff]
    %v575 = vld [vmem:[#allocation2 + $0xd0] sm:$0xff]
    %v576 = vld [vmem:[#allocation2 + $0xd8] sm:$0xff]
    %v577 = vld [vmem:[#allocation2 + $0x110] sm:$0xff]
    %v578 = vld [vmem:[#allocation2 + $0x118] sm:$0xff]
    %v579 = vld [vmem:[#allocation2 + $0x150] sm:$0xff]
    %v580 = vld [vmem:[#allocation2 + $0x158] sm:$0xff]
    %v581 = vld [vmem:[#allocation2 + $0x190] sm:$0xff]
    %v582 = vld [vmem:[#allocation2 + $0x198] sm:$0xff]
    %v583 = vld [vmem:[#allocation2 + $0x1d0] sm:$0xff]
    %v584 = vld [vmem:[#allocation2 + $0x1d8] sm:$0xff]
    %v585 = vld [vmem:[#allocation2 + $0x210] sm:$0xff]
    %v586 = vld [vmem:[#allocation2 + $0x218] sm:$0xff]
    %v587 = vld [vmem:[#allocation2 + $0x250] sm:$0xff]
    %v588 = vld [vmem:[#allocation2 + $0x258] sm:$0xff]
    %v589 = vld [vmem:[#allocation2 + $0x290] sm:$0xff]
    %v590 = vld [vmem:[#allocation2 + $0x298] sm:$0xff]
    %v591 = vld [vmem:[#allocation2 + $0x2d0] sm:$0xff]
    %v592 = vld [vmem:[#allocation2 + $0x2d8] sm:$0xff]
    %v593 = vld [vmem:[#allocation2 + $0x310] sm:$0xff]
    %v594 = vld [vmem:[#allocation2 + $0x318] sm:$0xff]
    %v595 = vld [vmem:[#allocation2 + $0x350] sm:$0xff]
    %v596 = vld [vmem:[#allocation2 + $0x358] sm:$0xff]
    %v597 = vld [vmem:[#allocation2 + $0x390] sm:$0xff]
    %v598 = vld [vmem:[#allocation2 + $0x398] sm:$0xff]
    %v599 = vld [vmem:[#allocation2 + $0x3d0] sm:$0xff]
    %v600 = vld [vmem:[#allocation2 + $0x3d8] sm:$0xff]
    %v601 = vld [vmem:[#allocation5 + $0x4] sm:$0xf]
    %v603 = vlaneseq
    %v604 = vshrl.u32 %v603, 7
    %v605 = vsub.s32 0, %v604
    %v606 = vrot.slane %v601, %v605
    %v607 = vlaneseq
    %v608 = vshrl.u32 %v607, 7
    %v609 = vsub.s32 1, %v608
    %v610 = vrot.slane %v601, %v609
    %v611 = vlaneseq
    %v612 = vshrl.u32 %v611, 7
    %v613 = vsub.s32 2, %v612
    %v614 = vrot.slane %v601, %v613
    %v615 = vlaneseq
    %v616 = vshrl.u32 %v615, 7
    %v617 = vsub.s32 3, %v616
    %v618 = vrot.slane %v601, %v617
    %v655 = vunpack.c.l.b16 %v569
    %v656 = vunpack.c.h.b16 %v569
    %v657 = vunpack.c.l.b16 %v570
    %v658 = vunpack.c.h.b16 %v570
    %v659 = vunpack.c.l.b16 %v571
    %v660 = vunpack.c.h.b16 %v571
    %v661 = vunpack.c.l.b16 %v572
    %v662 = vunpack.c.h.b16 %v572
    %v663 = vunpack.c.l.b16 %v573
    %v664 = vunpack.c.h.b16 %v573
    %v665 = vunpack.c.l.b16 %v574
    %v666 = vunpack.c.h.b16 %v574
    %v667 = vunpack.c.l.b16 %v575
    %v668 = vunpack.c.h.b16 %v575
    %v669 = vunpack.c.l.b16 %v576
    %v670 = vunpack.c.h.b16 %v576
    %v671 = vunpack.c.l.b16 %v577
    %v672 = vunpack.c.h.b16 %v577
    %v673 = vunpack.c.l.b16 %v578
    %v674 = vunpack.c.h.b16 %v578
    %v675 = vunpack.c.l.b16 %v579
    %v676 = vunpack.c.h.b16 %v579
    %v677 = vunpack.c.l.b16 %v580
    %v678 = vunpack.c.h.b16 %v580
    %v679 = vunpack.c.l.b16 %v581
    %v680 = vunpack.c.h.b16 %v581
    %v681 = vunpack.c.l.b16 %v582
    %v682 = vunpack.c.h.b16 %v582
    %v683 = vunpack.c.l.b16 %v583
    %v684 = vunpack.c.h.b16 %v583
    %v685 = vunpack.c.l.b16 %v584
    %v686 = vunpack.c.h.b16 %v584
    %v687 = vunpack.c.l.b16 %v585
    %v688 = vunpack.c.h.b16 %v585
    %v689 = vunpack.c.l.b16 %v586
    %v690 = vunpack.c.h.b16 %v586
    %v691 = vunpack.c.l.b16 %v587
    %v692 = vunpack.c.h.b16 %v587
    %v693 = vunpack.c.l.b16 %v588
    %v694 = vunpack.c.h.b16 %v588
    %v695 = vunpack.c.l.b16 %v589
    %v696 = vunpack.c.h.b16 %v589
    %v697 = vunpack.c.l.b16 %v590
    %v698 = vunpack.c.h.b16 %v590
    %v699 = vunpack.c.l.b16 %v591
    %v700 = vunpack.c.h.b16 %v591
    %v701 = vunpack.c.l.b16 %v592
    %v702 = vunpack.c.h.b16 %v592
    %v703 = vunpack.c.l.b16 %v593
    %v704 = vunpack.c.h.b16 %v593
    %v705 = vunpack.c.l.b16 %v594
    %v706 = vunpack.c.h.b16 %v594
    %v707 = vunpack.c.l.b16 %v595
    %v708 = vunpack.c.h.b16 %v595
    %v709 = vunpack.c.l.b16 %v596
    %v710 = vunpack.c.h.b16 %v596
    %v711 = vunpack.c.l.b16 %v597
    %v712 = vunpack.c.h.b16 %v597
    %v713 = vunpack.c.l.b16 %v598
    %v714 = vunpack.c.h.b16 %v598
    %v715 = vunpack.c.l.b16 %v599
    %v716 = vunpack.c.h.b16 %v599
    %v717 = vunpack.c.l.b16 %v600
    %v718 = vunpack.c.h.b16 %v600
    %v719 = vpack.c.b16 %v659, %v655
    %v720 = vpack.c.b16 %v660, %v656
    %v721 = vpack.c.b16 %v661, %v657
    %v722 = vpack.c.b16 %v662, %v658
    %v723 = vpack.c.b16 %v667, %v663
    %v724 = vpack.c.b16 %v668, %v664
    %v725 = vpack.c.b16 %v669, %v665
    %v726 = vpack.c.b16 %v670, %v666
    %v727 = vpack.c.b16 %v675, %v671
    %v728 = vpack.c.b16 %v676, %v672
    %v729 = vpack.c.b16 %v677, %v673
    %v730 = vpack.c.b16 %v678, %v674
    %v731 = vpack.c.b16 %v683, %v679
    %v732 = vpack.c.b16 %v684, %v680
    %v733 = vpack.c.b16 %v685, %v681
    %v734 = vpack.c.b16 %v686, %v682
    %v735 = vpack.c.b16 %v691, %v687
    %v736 = vpack.c.b16 %v692, %v688
    %v737 = vpack.c.b16 %v693, %v689
    %v738 = vpack.c.b16 %v694, %v690
    %v739 = vpack.c.b16 %v699, %v695
    %v740 = vpack.c.b16 %v700, %v696
    %v741 = vpack.c.b16 %v701, %v697
    %v742 = vpack.c.b16 %v702, %v698
    %v743 = vpack.c.b16 %v707, %v703
    %v744 = vpack.c.b16 %v708, %v704
    %v745 = vpack.c.b16 %v709, %v705
    %v746 = vpack.c.b16 %v710, %v706
    %v747 = vpack.c.b16 %v715, %v711
    %v748 = vpack.c.b16 %v716, %v712
    %v749 = vpack.c.b16 %v717, %v713
    %v750 = vpack.c.b16 %v718, %v714
    %783 = vmatprep.subr.bf16.mxu0 %v748
    %784 = vmatpush1.bf16.msra.mxu0 %v747
    %785 = vmatprep.subr.bf16.mxu0 %v744
    %786 = vmatpush1.bf16.msra.mxu0 %v743
    %787 = vmatprep.subr.bf16.mxu0 %v740
    %788 = vmatpush1.bf16.msra.mxu0 %v739
    %789 = vmatprep.subr.bf16.mxu0 %v736
    %790 = vmatpush1.bf16.msra.mxu0 %v735
    %791 = vmatprep.subr.bf16.mxu0 %v732
    %792 = vmatpush1.bf16.msra.mxu0 %v731
    %793 = vmatprep.subr.bf16.mxu0 %v728
    %794 = vmatpush1.bf16.msra.mxu0 %v727
    %795 = vmatprep.subr.bf16.mxu0 %v724
    %796 = vmatpush1.bf16.msra.mxu0 %v723
    %797 = vmatprep.subr.bf16.mxu0 %v720
    %798 = vmatpush1.bf16.msra.mxu0 %v719
    %799 = vmatprep.subr.bf16.mxu0 0
    %800 = vmatpush2.bf16.msra.mxu0 0
    %801 = vmatprep.subr.bf16.mxu0 0
    %802 = vmatpush2.bf16.msra.mxu0 0
    %803 = vmatprep.subr.bf16.mxu0 0
    %804 = vmatpush2.bf16.msra.mxu0 0
    %805 = vmatprep.subr.bf16.mxu0 0
    %806 = vmatpush2.bf16.msra.mxu0 0
    %807 = vmatprep.subr.bf16.mxu0 0
    %808 = vmatpush2.bf16.msra.mxu0 0
    %809 = vmatprep.subr.bf16.mxu0 0
    %810 = vmatpush2.bf16.msra.mxu0 0
    %811 = vmatprep.subr.bf16.mxu0 0
    %812 = vmatpush2.bf16.msra.mxu0 0
    %813 = vmatprep.subr.bf16.mxu0 0
    %814 = vmatpush2.bf16.msra.mxu0 0
    %815 = vmatprep.mubr.bf16.mxu0 0
    %816 = vmatmul.mubr.bf16.gmra.mxu0 %v136
    %v817 = vpop.f32.mrf.mxu0
    %v818 = vadd.f32 %v606, %v817
    %v819 = vpop.f32.mrf.mxu0
    %v820 = vadd.f32 %v610, %v819
    %v821 = vpop.f32.mrf.mxu0
    %v822 = vpop.f32.mrf.mxu0
    %823 = vdwg.mxu0
    %824 = vmatprep.subr.bf16.mxu0 %v750
    %825 = vmatpush1.bf16.msra.mxu0 %v749
    %826 = vmatprep.subr.bf16.mxu0 %v746
    %827 = vmatpush1.bf16.msra.mxu0 %v745
    %828 = vmatprep.subr.bf16.mxu0 %v742
    %829 = vmatpush1.bf16.msra.mxu0 %v741
    %830 = vmatprep.subr.bf16.mxu0 %v738
    %831 = vmatpush1.bf16.msra.mxu0 %v737
    %832 = vmatprep.subr.bf16.mxu0 %v734
    %833 = vmatpush1.bf16.msra.mxu0 %v733
    %834 = vmatprep.subr.bf16.mxu0 %v730
    %835 = vmatpush1.bf16.msra.mxu0 %v729
    %836 = vmatprep.subr.bf16.mxu0 %v726
    %837 = vmatpush1.bf16.msra.mxu0 %v725
    %838 = vmatprep.subr.bf16.mxu0 %v722
    %839 = vmatpush1.bf16.msra.mxu0 %v721
    %840 = vmatprep.subr.bf16.mxu0 0
    %841 = vmatpush2.bf16.msra.mxu0 0
    %842 = vmatprep.subr.bf16.mxu0 0
    %843 = vmatpush2.bf16.msra.mxu0 0
    %844 = vmatprep.subr.bf16.mxu0 0
    %845 = vmatpush2.bf16.msra.mxu0 0
    %846 = vmatprep.subr.bf16.mxu0 0
    %847 = vmatpush2.bf16.msra.mxu0 0
    %848 = vmatprep.subr.bf16.mxu0 0
    %849 = vmatpush2.bf16.msra.mxu0 0
    %850 = vmatprep.subr.bf16.mxu0 0
    %851 = vmatpush2.bf16.msra.mxu0 0
    %852 = vmatprep.subr.bf16.mxu0 0
    %853 = vmatpush2.bf16.msra.mxu0 0
    %854 = vmatprep.subr.bf16.mxu0 0
    %855 = vmatpush2.bf16.msra.mxu0 0
    %856 = vmatprep.mubr.bf16.mxu0 0
    %857 = vmatmul.mubr.bf16.gmra.mxu0 %v136
    %v858 = vpop.f32.mrf.mxu0
    %v859 = vadd.f32 %v614, %v858
    %v860 = vpop.f32.mrf.mxu0
    %v861 = vadd.f32 %v618, %v860
    %v862 = vpop.f32.mrf.mxu0
    %v863 = vpop.f32.mrf.mxu0
    %864 = vdwg.mxu0
    %v865 = vmax.f32 %v818, 0.0
    %v866 = vmax.f32 %v820, 0.0
    %v867 = vmax.f32 %v859, 0.0
    %v868 = vmax.f32 %v861, 0.0
    %v869 = vpack.c.bf16 %v865, %v865
    %v870 = vpack.c.bf16 %v866, %v866
    %v871 = vpack.c.bf16 %v867, %v867
    %v872 = vpack.c.bf16 %v868, %v868
    %v873 = vld [vmem:[#allocation7 + $0x400] sm:$0xff]
    %v874 = vld [vmem:[#allocation7 + $0x408] sm:$0xff]
    %v875 = vld [vmem:[#allocation7 + $0x410] sm:$0xff]
    %v876 = vld [vmem:[#allocation7 + $0x418] sm:$0xff]
    %v877 = vld [vmem:[#allocation7 + $0x420] sm:$0xff]
    %v878 = vld [vmem:[#allocation7 + $0x428] sm:$0xff]
    %v879 = vld [vmem:[#allocation7 + $0x430] sm:$0xff]
    %v880 = vld [vmem:[#allocation7 + $0x438] sm:$0xff]
    %v881 = vld [vmem:[#allocation7 + $0x440] sm:$0xff]
    %v882 = vld [vmem:[#allocation7 + $0x448] sm:$0xff]
    %v883 = vld [vmem:[#allocation7 + $0x450] sm:$0xff]
    %v884 = vld [vmem:[#allocation7 + $0x458] sm:$0xff]
    %v885 = vld [vmem:[#allocation7 + $0x460] sm:$0xff]
    %v886 = vld [vmem:[#allocation7 + $0x468] sm:$0xff]
    %v887 = vld [vmem:[#allocation7 + $0x470] sm:$0xff]
    %v888 = vld [vmem:[#allocation7 + $0x478] sm:$0xff]
    %v889 = vld [vmem:[#allocation7 + $0x480] sm:$0xff]
    %v890 = vld [vmem:[#allocation7 + $0x488] sm:$0xff]
    %v891 = vld [vmem:[#allocation7 + $0x490] sm:$0xff]
    %v892 = vld [vmem:[#allocation7 + $0x498] sm:$0xff]
    %v893 = vld [vmem:[#allocation7 + $0x4a0] sm:$0xff]
    %v894 = vld [vmem:[#allocation7 + $0x4a8] sm:$0xff]
    %v895 = vld [vmem:[#allocation7 + $0x4b0] sm:$0xff]
    %v896 = vld [vmem:[#allocation7 + $0x4b8] sm:$0xff]
    %v897 = vld [vmem:[#allocation7 + $0x4c0] sm:$0xff]
    %v898 = vld [vmem:[#allocation7 + $0x4c8] sm:$0xff]
    %v899 = vld [vmem:[#allocation7 + $0x4d0] sm:$0xff]
    %v900 = vld [vmem:[#allocation7 + $0x4d8] sm:$0xff]
    %v901 = vld [vmem:[#allocation7 + $0x4e0] sm:$0xff]
    %v902 = vld [vmem:[#allocation7 + $0x4e8] sm:$0xff]
    %v903 = vld [vmem:[#allocation7 + $0x4f0] sm:$0xff]
    %v904 = vld [vmem:[#allocation7 + $0x4f8] sm:$0xff]
    %v905 = vld [vmem:[#allocation7 + $0x500] sm:$0xff]
    %v906 = vld [vmem:[#allocation7 + $0x508] sm:$0xff]
    %v907 = vld [vmem:[#allocation7 + $0x510] sm:$0xff]
    %v908 = vld [vmem:[#allocation7 + $0x518] sm:$0xff]
    %v909 = vld [vmem:[#allocation7 + $0x520] sm:$0xff]
    %v910 = vld [vmem:[#allocation7 + $0x528] sm:$0xff]
    %v911 = vld [vmem:[#allocation7 + $0x530] sm:$0xff]
    %v912 = vld [vmem:[#allocation7 + $0x538] sm:$0xff]
    %v913 = vld [vmem:[#allocation7 + $0x540] sm:$0xff]
    %v914 = vld [vmem:[#allocation7 + $0x548] sm:$0xff]
    %v915 = vld [vmem:[#allocation7 + $0x550] sm:$0xff]
    %v916 = vld [vmem:[#allocation7 + $0x558] sm:$0xff]
    %v917 = vld [vmem:[#allocation7 + $0x560] sm:$0xff]
    %v918 = vld [vmem:[#allocation7 + $0x568] sm:$0xff]
    %v919 = vld [vmem:[#allocation7 + $0x570] sm:$0xff]
    %v920 = vld [vmem:[#allocation7 + $0x578] sm:$0xff]
    %v921 = vld [vmem:[#allocation7 + $0x580] sm:$0xff]
    %v922 = vld [vmem:[#allocation7 + $0x588] sm:$0xff]
    %v923 = vld [vmem:[#allocation7 + $0x590] sm:$0xff]
    %v924 = vld [vmem:[#allocation7 + $0x598] sm:$0xff]
    %v925 = vld [vmem:[#allocation7 + $0x5a0] sm:$0xff]
    %v926 = vld [vmem:[#allocation7 + $0x5a8] sm:$0xff]
    %v927 = vld [vmem:[#allocation7 + $0x5b0] sm:$0xff]
    %v928 = vld [vmem:[#allocation7 + $0x5b8] sm:$0xff]
    %v929 = vld [vmem:[#allocation7 + $0x5c0] sm:$0xff]
    %v930 = vld [vmem:[#allocation7 + $0x5c8] sm:$0xff]
    %v931 = vld [vmem:[#allocation7 + $0x5d0] sm:$0xff]
    %v932 = vld [vmem:[#allocation7 + $0x5d8] sm:$0xff]
    %v933 = vld [vmem:[#allocation7 + $0x5e0] sm:$0xff]
    %v934 = vld [vmem:[#allocation7 + $0x5e8] sm:$0xff]
    %v935 = vld [vmem:[#allocation7 + $0x5f0] sm:$0xff]
    %v936 = vld [vmem:[#allocation7 + $0x5f8] sm:$0xff]
    %v937 = vld [vmem:[#allocation7 + $0x600] sm:$0xff]
    %v938 = vld [vmem:[#allocation7 + $0x608] sm:$0xff]
    %v939 = vld [vmem:[#allocation7 + $0x610] sm:$0xff]
    %v940 = vld [vmem:[#allocation7 + $0x618] sm:$0xff]
    %v941 = vld [vmem:[#allocation7 + $0x620] sm:$0xff]
    %v942 = vld [vmem:[#allocation7 + $0x628] sm:$0xff]
    %v943 = vld [vmem:[#allocation7 + $0x630] sm:$0xff]
    %v944 = vld [vmem:[#allocation7 + $0x638] sm:$0xff]
    %v945 = vld [vmem:[#allocation7 + $0x640] sm:$0xff]
    %v946 = vld [vmem:[#allocation7 + $0x648] sm:$0xff]
    %v947 = vld [vmem:[#allocation7 + $0x650] sm:$0xff]
    %v948 = vld [vmem:[#allocation7 + $0x658] sm:$0xff]
    %v949 = vld [vmem:[#allocation7 + $0x660] sm:$0xff]
    %v950 = vld [vmem:[#allocation7 + $0x668] sm:$0xff]
    %v951 = vld [vmem:[#allocation7 + $0x670] sm:$0xff]
    %v952 = vld [vmem:[#allocation7 + $0x678] sm:$0xff]
    %v953 = vld [vmem:[#allocation7 + $0x680] sm:$0xff]
    %v954 = vld [vmem:[#allocation7 + $0x688] sm:$0xff]
    %v955 = vld [vmem:[#allocation7 + $0x690] sm:$0xff]
    %v956 = vld [vmem:[#allocation7 + $0x698] sm:$0xff]
    %v957 = vld [vmem:[#allocation7 + $0x6a0] sm:$0xff]
    %v958 = vld [vmem:[#allocation7 + $0x6a8] sm:$0xff]
    %v959 = vld [vmem:[#allocation7 + $0x6b0] sm:$0xff]
    %v960 = vld [vmem:[#allocation7 + $0x6b8] sm:$0xff]
    %v961 = vld [vmem:[#allocation7 + $0x6c0] sm:$0xff]
    %v962 = vld [vmem:[#allocation7 + $0x6c8] sm:$0xff]
    %v963 = vld [vmem:[#allocation7 + $0x6d0] sm:$0xff]
    %v964 = vld [vmem:[#allocation7 + $0x6d8] sm:$0xff]
    %v965 = vld [vmem:[#allocation7 + $0x6e0] sm:$0xff]
    %v966 = vld [vmem:[#allocation7 + $0x6e8] sm:$0xff]
    %v967 = vld [vmem:[#allocation7 + $0x6f0] sm:$0xff]
    %v968 = vld [vmem:[#allocation7 + $0x6f8] sm:$0xff]
    %v969 = vld [vmem:[#allocation7 + $0x700] sm:$0xff]
    %v970 = vld [vmem:[#allocation7 + $0x708] sm:$0xff]
    %v971 = vld [vmem:[#allocation7 + $0x710] sm:$0xff]
    %v972 = vld [vmem:[#allocation7 + $0x718] sm:$0xff]
    %v973 = vld [vmem:[#allocation7 + $0x720] sm:$0xff]
    %v974 = vld [vmem:[#allocation7 + $0x728] sm:$0xff]
    %v975 = vld [vmem:[#allocation7 + $0x730] sm:$0xff]
    %v976 = vld [vmem:[#allocation7 + $0x738] sm:$0xff]
    %v977 = vld [vmem:[#allocation7 + $0x740] sm:$0xff]
    %v978 = vld [vmem:[#allocation7 + $0x748] sm:$0xff]
    %v979 = vld [vmem:[#allocation7 + $0x750] sm:$0xff]
    %v980 = vld [vmem:[#allocation7 + $0x758] sm:$0xff]
    %v981 = vld [vmem:[#allocation7 + $0x760] sm:$0xff]
    %v982 = vld [vmem:[#allocation7 + $0x768] sm:$0xff]
    %v983 = vld [vmem:[#allocation7 + $0x770] sm:$0xff]
    %v984 = vld [vmem:[#allocation7 + $0x778] sm:$0xff]
    %v985 = vld [vmem:[#allocation7 + $0x780] sm:$0xff]
    %v986 = vld [vmem:[#allocation7 + $0x788] sm:$0xff]
    %v987 = vld [vmem:[#allocation7 + $0x790] sm:$0xff]
    %v988 = vld [vmem:[#allocation7 + $0x798] sm:$0xff]
    %v989 = vld [vmem:[#allocation7 + $0x7a0] sm:$0xff]
    %v990 = vld [vmem:[#allocation7 + $0x7a8] sm:$0xff]
    %v991 = vld [vmem:[#allocation7 + $0x7b0] sm:$0xff]
    %v992 = vld [vmem:[#allocation7 + $0x7b8] sm:$0xff]
    %v993 = vld [vmem:[#allocation7 + $0x7c0] sm:$0xff]
    %v994 = vld [vmem:[#allocation7 + $0x7c8] sm:$0xff]
    %v995 = vld [vmem:[#allocation7 + $0x7d0] sm:$0xff]
    %v996 = vld [vmem:[#allocation7 + $0x7d8] sm:$0xff]
    %v997 = vld [vmem:[#allocation7 + $0x7e0] sm:$0xff]
    %v998 = vld [vmem:[#allocation7 + $0x7e8] sm:$0xff]
    %v999 = vld [vmem:[#allocation7 + $0x7f0] sm:$0xff]
    %v1000 = vld [vmem:[#allocation7 + $0x7f8] sm:$0xff]
    %v1129 = vunpack.c.l.b16 %v873
    %v1130 = vunpack.c.h.b16 %v873
    %v1131 = vunpack.c.l.b16 %v874
    %v1132 = vunpack.c.h.b16 %v874
    %v1133 = vunpack.c.l.b16 %v875
    %v1134 = vunpack.c.h.b16 %v875
    %v1135 = vunpack.c.l.b16 %v876
    %v1136 = vunpack.c.h.b16 %v876
    %v1137 = vunpack.c.l.b16 %v877
    %v1138 = vunpack.c.h.b16 %v877
    %v1139 = vunpack.c.l.b16 %v878
    %v1140 = vunpack.c.h.b16 %v878
    %v1141 = vunpack.c.l.b16 %v879
    %v1142 = vunpack.c.h.b16 %v879
    %v1143 = vunpack.c.l.b16 %v880
    %v1144 = vunpack.c.h.b16 %v880
    %v1145 = vunpack.c.l.b16 %v881
    %v1146 = vunpack.c.h.b16 %v881
    %v1147 = vunpack.c.l.b16 %v882
    %v1148 = vunpack.c.h.b16 %v882
    %v1149 = vunpack.c.l.b16 %v883
    %v1150 = vunpack.c.h.b16 %v883
    %v1151 = vunpack.c.l.b16 %v884
    %v1152 = vunpack.c.h.b16 %v884
    %v1153 = vunpack.c.l.b16 %v885
    %v1154 = vunpack.c.h.b16 %v885
    %v1155 = vunpack.c.l.b16 %v886
    %v1156 = vunpack.c.h.b16 %v886
    %v1157 = vunpack.c.l.b16 %v887
    %v1158 = vunpack.c.h.b16 %v887
    %v1159 = vunpack.c.l.b16 %v888
    %v1160 = vunpack.c.h.b16 %v888
    %v1161 = vunpack.c.l.b16 %v889
    %v1162 = vunpack.c.h.b16 %v889
    %v1163 = vunpack.c.l.b16 %v890
    %v1164 = vunpack.c.h.b16 %v890
    %v1165 = vunpack.c.l.b16 %v891
    %v1166 = vunpack.c.h.b16 %v891
    %v1167 = vunpack.c.l.b16 %v892
    %v1168 = vunpack.c.h.b16 %v892
    %v1169 = vunpack.c.l.b16 %v893
    %v1170 = vunpack.c.h.b16 %v893
    %v1171 = vunpack.c.l.b16 %v894
    %v1172 = vunpack.c.h.b16 %v894
    %v1173 = vunpack.c.l.b16 %v895
    %v1174 = vunpack.c.h.b16 %v895
    %v1175 = vunpack.c.l.b16 %v896
    %v1176 = vunpack.c.h.b16 %v896
    %v1177 = vunpack.c.l.b16 %v897
    %v1178 = vunpack.c.h.b16 %v897
    %v1179 = vunpack.c.l.b16 %v898
    %v1180 = vunpack.c.h.b16 %v898
    %v1181 = vunpack.c.l.b16 %v899
    %v1182 = vunpack.c.h.b16 %v899
    %v1183 = vunpack.c.l.b16 %v900
    %v1184 = vunpack.c.h.b16 %v900
    %v1185 = vunpack.c.l.b16 %v901
    %v1186 = vunpack.c.h.b16 %v901
    %v1187 = vunpack.c.l.b16 %v902
    %v1188 = vunpack.c.h.b16 %v902
    %v1189 = vunpack.c.l.b16 %v903
    %v1190 = vunpack.c.h.b16 %v903
    %v1191 = vunpack.c.l.b16 %v904
    %v1192 = vunpack.c.h.b16 %v904
    %v1193 = vunpack.c.l.b16 %v905
    %v1194 = vunpack.c.h.b16 %v905
    %v1195 = vunpack.c.l.b16 %v906
    %v1196 = vunpack.c.h.b16 %v906
    %v1197 = vunpack.c.l.b16 %v907
    %v1198 = vunpack.c.h.b16 %v907
    %v1199 = vunpack.c.l.b16 %v908
    %v1200 = vunpack.c.h.b16 %v908
    %v1201 = vunpack.c.l.b16 %v909
    %v1202 = vunpack.c.h.b16 %v909
    %v1203 = vunpack.c.l.b16 %v910
    %v1204 = vunpack.c.h.b16 %v910
    %v1205 = vunpack.c.l.b16 %v911
    %v1206 = vunpack.c.h.b16 %v911
    %v1207 = vunpack.c.l.b16 %v912
    %v1208 = vunpack.c.h.b16 %v912
    %v1209 = vunpack.c.l.b16 %v913
    %v1210 = vunpack.c.h.b16 %v913
    %v1211 = vunpack.c.l.b16 %v914
    %v1212 = vunpack.c.h.b16 %v914
    %v1213 = vunpack.c.l.b16 %v915
    %v1214 = vunpack.c.h.b16 %v915
    %v1215 = vunpack.c.l.b16 %v916
    %v1216 = vunpack.c.h.b16 %v916
    %v1217 = vunpack.c.l.b16 %v917
    %v1218 = vunpack.c.h.b16 %v917
    %v1219 = vunpack.c.l.b16 %v918
    %v1220 = vunpack.c.h.b16 %v918
    %v1221 = vunpack.c.l.b16 %v919
    %v1222 = vunpack.c.h.b16 %v919
    %v1223 = vunpack.c.l.b16 %v920
    %v1224 = vunpack.c.h.b16 %v920
    %v1225 = vunpack.c.l.b16 %v921
    %v1226 = vunpack.c.h.b16 %v921
    %v1227 = vunpack.c.l.b16 %v922
    %v1228 = vunpack.c.h.b16 %v922
    %v1229 = vunpack.c.l.b16 %v923
    %v1230 = vunpack.c.h.b16 %v923
    %v1231 = vunpack.c.l.b16 %v924
    %v1232 = vunpack.c.h.b16 %v924
    %v1233 = vunpack.c.l.b16 %v925
    %v1234 = vunpack.c.h.b16 %v925
    %v1235 = vunpack.c.l.b16 %v926
    %v1236 = vunpack.c.h.b16 %v926
    %v1237 = vunpack.c.l.b16 %v927
    %v1238 = vunpack.c.h.b16 %v927
    %v1239 = vunpack.c.l.b16 %v928
    %v1240 = vunpack.c.h.b16 %v928
    %v1241 = vunpack.c.l.b16 %v929
    %v1242 = vunpack.c.h.b16 %v929
    %v1243 = vunpack.c.l.b16 %v930
    %v1244 = vunpack.c.h.b16 %v930
    %v1245 = vunpack.c.l.b16 %v931
    %v1246 = vunpack.c.h.b16 %v931
    %v1247 = vunpack.c.l.b16 %v932
    %v1248 = vunpack.c.h.b16 %v932
    %v1249 = vunpack.c.l.b16 %v933
    %v1250 = vunpack.c.h.b16 %v933
    %v1251 = vunpack.c.l.b16 %v934
    %v1252 = vunpack.c.h.b16 %v934
    %v1253 = vunpack.c.l.b16 %v935
    %v1254 = vunpack.c.h.b16 %v935
    %v1255 = vunpack.c.l.b16 %v936
    %v1256 = vunpack.c.h.b16 %v936
    %v1257 = vunpack.c.l.b16 %v937
    %v1258 = vunpack.c.h.b16 %v937
    %v1259 = vunpack.c.l.b16 %v938
    %v1260 = vunpack.c.h.b16 %v938
    %v1261 = vunpack.c.l.b16 %v939
    %v1262 = vunpack.c.h.b16 %v939
    %v1263 = vunpack.c.l.b16 %v940
    %v1264 = vunpack.c.h.b16 %v940
    %v1265 = vunpack.c.l.b16 %v941
    %v1266 = vunpack.c.h.b16 %v941
    %v1267 = vunpack.c.l.b16 %v942
    %v1268 = vunpack.c.h.b16 %v942
    %v1269 = vunpack.c.l.b16 %v943
    %v1270 = vunpack.c.h.b16 %v943
    %v1271 = vunpack.c.l.b16 %v944
    %v1272 = vunpack.c.h.b16 %v944
    %v1273 = vunpack.c.l.b16 %v945
    %v1274 = vunpack.c.h.b16 %v945
    %v1275 = vunpack.c.l.b16 %v946
    %v1276 = vunpack.c.h.b16 %v946
    %v1277 = vunpack.c.l.b16 %v947
    %v1278 = vunpack.c.h.b16 %v947
    %v1279 = vunpack.c.l.b16 %v948
    %v1280 = vunpack.c.h.b16 %v948
    %v1281 = vunpack.c.l.b16 %v949
    %v1282 = vunpack.c.h.b16 %v949
    %v1283 = vunpack.c.l.b16 %v950
    %v1284 = vunpack.c.h.b16 %v950
    %v1285 = vunpack.c.l.b16 %v951
    %v1286 = vunpack.c.h.b16 %v951
    %v1287 = vunpack.c.l.b16 %v952
    %v1288 = vunpack.c.h.b16 %v952
    %v1289 = vunpack.c.l.b16 %v953
    %v1290 = vunpack.c.h.b16 %v953
    %v1291 = vunpack.c.l.b16 %v954
    %v1292 = vunpack.c.h.b16 %v954
    %v1293 = vunpack.c.l.b16 %v955
    %v1294 = vunpack.c.h.b16 %v955
    %v1295 = vunpack.c.l.b16 %v956
    %v1296 = vunpack.c.h.b16 %v956
    %v1297 = vunpack.c.l.b16 %v957
    %v1298 = vunpack.c.h.b16 %v957
    %v1299 = vunpack.c.l.b16 %v958
    %v1300 = vunpack.c.h.b16 %v958
    %v1301 = vunpack.c.l.b16 %v959
    %v1302 = vunpack.c.h.b16 %v959
    %v1303 = vunpack.c.l.b16 %v960
    %v1304 = vunpack.c.h.b16 %v960
    %v1305 = vunpack.c.l.b16 %v961
    %v1306 = vunpack.c.h.b16 %v961
    %v1307 = vunpack.c.l.b16 %v962
    %v1308 = vunpack.c.h.b16 %v962
    %v1309 = vunpack.c.l.b16 %v963
    %v1310 = vunpack.c.h.b16 %v963
    %v1311 = vunpack.c.l.b16 %v964
    %v1312 = vunpack.c.h.b16 %v964
    %v1313 = vunpack.c.l.b16 %v965
    %v1314 = vunpack.c.h.b16 %v965
    %v1315 = vunpack.c.l.b16 %v966
    %v1316 = vunpack.c.h.b16 %v966
    %v1317 = vunpack.c.l.b16 %v967
    %v1318 = vunpack.c.h.b16 %v967
    %v1319 = vunpack.c.l.b16 %v968
    %v1320 = vunpack.c.h.b16 %v968
    %v1321 = vunpack.c.l.b16 %v969
    %v1322 = vunpack.c.h.b16 %v969
    %v1323 = vunpack.c.l.b16 %v970
    %v1324 = vunpack.c.h.b16 %v970
    %v1325 = vunpack.c.l.b16 %v971
    %v1326 = vunpack.c.h.b16 %v971
    %v1327 = vunpack.c.l.b16 %v972
    %v1328 = vunpack.c.h.b16 %v972
    %v1329 = vunpack.c.l.b16 %v973
    %v1330 = vunpack.c.h.b16 %v973
    %v1331 = vunpack.c.l.b16 %v974
    %v1332 = vunpack.c.h.b16 %v974
    %v1333 = vunpack.c.l.b16 %v975
    %v1334 = vunpack.c.h.b16 %v975
    %v1335 = vunpack.c.l.b16 %v976
    %v1336 = vunpack.c.h.b16 %v976
    %v1337 = vunpack.c.l.b16 %v977
    %v1338 = vunpack.c.h.b16 %v977
    %v1339 = vunpack.c.l.b16 %v978
    %v1340 = vunpack.c.h.b16 %v978
    %v1341 = vunpack.c.l.b16 %v979
    %v1342 = vunpack.c.h.b16 %v979
    %v1343 = vunpack.c.l.b16 %v980
    %v1344 = vunpack.c.h.b16 %v980
    %v1345 = vunpack.c.l.b16 %v981
    %v1346 = vunpack.c.h.b16 %v981
    %v1347 = vunpack.c.l.b16 %v982
    %v1348 = vunpack.c.h.b16 %v982
    %v1349 = vunpack.c.l.b16 %v983
    %v1350 = vunpack.c.h.b16 %v983
    %v1351 = vunpack.c.l.b16 %v984
    %v1352 = vunpack.c.h.b16 %v984
    %v1353 = vunpack.c.l.b16 %v985
    %v1354 = vunpack.c.h.b16 %v985
    %v1355 = vunpack.c.l.b16 %v986
    %v1356 = vunpack.c.h.b16 %v986
    %v1357 = vunpack.c.l.b16 %v987
    %v1358 = vunpack.c.h.b16 %v987
    %v1359 = vunpack.c.l.b16 %v988
    %v1360 = vunpack.c.h.b16 %v988
    %v1361 = vunpack.c.l.b16 %v989
    %v1362 = vunpack.c.h.b16 %v989
    %v1363 = vunpack.c.l.b16 %v990
    %v1364 = vunpack.c.h.b16 %v990
    %v1365 = vunpack.c.l.b16 %v991
    %v1366 = vunpack.c.h.b16 %v991
    %v1367 = vunpack.c.l.b16 %v992
    %v1368 = vunpack.c.h.b16 %v992
    %v1369 = vunpack.c.l.b16 %v993
    %v1370 = vunpack.c.h.b16 %v993
    %v1371 = vunpack.c.l.b16 %v994
    %v1372 = vunpack.c.h.b16 %v994
    %v1373 = vunpack.c.l.b16 %v995
    %v1374 = vunpack.c.h.b16 %v995
    %v1375 = vunpack.c.l.b16 %v996
    %v1376 = vunpack.c.h.b16 %v996
    %v1377 = vunpack.c.l.b16 %v997
    %v1378 = vunpack.c.h.b16 %v997
    %v1379 = vunpack.c.l.b16 %v998
    %v1380 = vunpack.c.h.b16 %v998
    %v1381 = vunpack.c.l.b16 %v999
    %v1382 = vunpack.c.h.b16 %v999
    %v1383 = vunpack.c.l.b16 %v1000
    %v1384 = vunpack.c.h.b16 %v1000
    %v1385 = vpack.c.b16 %v1133, %v1129
    %v1386 = vpack.c.b16 %v1134, %v1130
    %v1387 = vpack.c.b16 %v1135, %v1131
    %v1388 = vpack.c.b16 %v1136, %v1132
    %v1389 = vpack.c.b16 %v1141, %v1137
    %v1390 = vpack.c.b16 %v1142, %v1138
    %v1391 = vpack.c.b16 %v1143, %v1139
    %v1392 = vpack.c.b16 %v1144, %v1140
    %v1393 = vpack.c.b16 %v1149, %v1145
    %v1394 = vpack.c.b16 %v1150, %v1146
    %v1395 = vpack.c.b16 %v1151, %v1147
    %v1396 = vpack.c.b16 %v1152, %v1148
    %v1397 = vpack.c.b16 %v1157, %v1153
    %v1398 = vpack.c.b16 %v1158, %v1154
    %v1399 = vpack.c.b16 %v1159, %v1155
    %v1400 = vpack.c.b16 %v1160, %v1156
    %v1401 = vpack.c.b16 %v1165, %v1161
    %v1402 = vpack.c.b16 %v1166, %v1162
    %v1403 = vpack.c.b16 %v1167, %v1163
    %v1404 = vpack.c.b16 %v1168, %v1164
    %v1405 = vpack.c.b16 %v1173, %v1169
    %v1406 = vpack.c.b16 %v1174, %v1170
    %v1407 = vpack.c.b16 %v1175, %v1171
    %v1408 = vpack.c.b16 %v1176, %v1172
    %v1409 = vpack.c.b16 %v1181, %v1177
    %v1410 = vpack.c.b16 %v1182, %v1178
    %v1411 = vpack.c.b16 %v1183, %v1179
    %v1412 = vpack.c.b16 %v1184, %v1180
    %v1413 = vpack.c.b16 %v1189, %v1185
    %v1414 = vpack.c.b16 %v1190, %v1186
    %v1415 = vpack.c.b16 %v1191, %v1187
    %v1416 = vpack.c.b16 %v1192, %v1188
    %v1417 = vpack.c.b16 %v1197, %v1193
    %v1418 = vpack.c.b16 %v1198, %v1194
    %v1419 = vpack.c.b16 %v1199, %v1195
    %v1420 = vpack.c.b16 %v1200, %v1196
    %v1421 = vpack.c.b16 %v1205, %v1201
    %v1422 = vpack.c.b16 %v1206, %v1202
    %v1423 = vpack.c.b16 %v1207, %v1203
    %v1424 = vpack.c.b16 %v1208, %v1204
    %v1425 = vpack.c.b16 %v1213, %v1209
    %v1426 = vpack.c.b16 %v1214, %v1210
    %v1427 = vpack.c.b16 %v1215, %v1211
    %v1428 = vpack.c.b16 %v1216, %v1212
    %v1429 = vpack.c.b16 %v1221, %v1217
    %v1430 = vpack.c.b16 %v1222, %v1218
    %v1431 = vpack.c.b16 %v1223, %v1219
    %v1432 = vpack.c.b16 %v1224, %v1220
    %v1433 = vpack.c.b16 %v1229, %v1225
    %v1434 = vpack.c.b16 %v1230, %v1226
    %v1435 = vpack.c.b16 %v1231, %v1227
    %v1436 = vpack.c.b16 %v1232, %v1228
    %v1437 = vpack.c.b16 %v1237, %v1233
    %v1438 = vpack.c.b16 %v1238, %v1234
    %v1439 = vpack.c.b16 %v1239, %v1235
    %v1440 = vpack.c.b16 %v1240, %v1236
    %v1441 = vpack.c.b16 %v1245, %v1241
    %v1442 = vpack.c.b16 %v1246, %v1242
    %v1443 = vpack.c.b16 %v1247, %v1243
    %v1444 = vpack.c.b16 %v1248, %v1244
    %v1445 = vpack.c.b16 %v1253, %v1249
    %v1446 = vpack.c.b16 %v1254, %v1250
    %v1447 = vpack.c.b16 %v1255, %v1251
    %v1448 = vpack.c.b16 %v1256, %v1252
    %v1449 = vpack.c.b16 %v1261, %v1257
    %v1450 = vpack.c.b16 %v1262, %v1258
    %v1451 = vpack.c.b16 %v1263, %v1259
    %v1452 = vpack.c.b16 %v1264, %v1260
    %v1453 = vpack.c.b16 %v1269, %v1265
    %v1454 = vpack.c.b16 %v1270, %v1266
    %v1455 = vpack.c.b16 %v1271, %v1267
    %v1456 = vpack.c.b16 %v1272, %v1268
    %v1457 = vpack.c.b16 %v1277, %v1273
    %v1458 = vpack.c.b16 %v1278, %v1274
    %v1459 = vpack.c.b16 %v1279, %v1275
    %v1460 = vpack.c.b16 %v1280, %v1276
    %v1461 = vpack.c.b16 %v1285, %v1281
    %v1462 = vpack.c.b16 %v1286, %v1282
    %v1463 = vpack.c.b16 %v1287, %v1283
    %v1464 = vpack.c.b16 %v1288, %v1284
    %v1465 = vpack.c.b16 %v1293, %v1289
    %v1466 = vpack.c.b16 %v1294, %v1290
    %v1467 = vpack.c.b16 %v1295, %v1291
    %v1468 = vpack.c.b16 %v1296, %v1292
    %v1469 = vpack.c.b16 %v1301, %v1297
    %v1470 = vpack.c.b16 %v1302, %v1298
    %v1471 = vpack.c.b16 %v1303, %v1299
    %v1472 = vpack.c.b16 %v1304, %v1300
    %v1473 = vpack.c.b16 %v1309, %v1305
    %v1474 = vpack.c.b16 %v1310, %v1306
    %v1475 = vpack.c.b16 %v1311, %v1307
    %v1476 = vpack.c.b16 %v1312, %v1308
    %v1477 = vpack.c.b16 %v1317, %v1313
    %v1478 = vpack.c.b16 %v1318, %v1314
    %v1479 = vpack.c.b16 %v1319, %v1315
    %v1480 = vpack.c.b16 %v1320, %v1316
    %v1481 = vpack.c.b16 %v1325, %v1321
    %v1482 = vpack.c.b16 %v1326, %v1322
    %v1483 = vpack.c.b16 %v1327, %v1323
    %v1484 = vpack.c.b16 %v1328, %v1324
    %v1485 = vpack.c.b16 %v1333, %v1329
    %v1486 = vpack.c.b16 %v1334, %v1330
    %v1487 = vpack.c.b16 %v1335, %v1331
    %v1488 = vpack.c.b16 %v1336, %v1332
    %v1489 = vpack.c.b16 %v1341, %v1337
    %v1490 = vpack.c.b16 %v1342, %v1338
    %v1491 = vpack.c.b16 %v1343, %v1339
    %v1492 = vpack.c.b16 %v1344, %v1340
    %v1493 = vpack.c.b16 %v1349, %v1345
    %v1494 = vpack.c.b16 %v1350, %v1346
    %v1495 = vpack.c.b16 %v1351, %v1347
    %v1496 = vpack.c.b16 %v1352, %v1348
    %v1497 = vpack.c.b16 %v1357, %v1353
    %v1498 = vpack.c.b16 %v1358, %v1354
    %v1499 = vpack.c.b16 %v1359, %v1355
    %v1500 = vpack.c.b16 %v1360, %v1356
    %v1501 = vpack.c.b16 %v1365, %v1361
    %v1502 = vpack.c.b16 %v1366, %v1362
    %v1503 = vpack.c.b16 %v1367, %v1363
    %v1504 = vpack.c.b16 %v1368, %v1364
    %v1505 = vpack.c.b16 %v1373, %v1369
    %v1506 = vpack.c.b16 %v1374, %v1370
    %v1507 = vpack.c.b16 %v1375, %v1371
    %v1508 = vpack.c.b16 %v1376, %v1372
    %v1509 = vpack.c.b16 %v1381, %v1377
    %v1510 = vpack.c.b16 %v1382, %v1378
    %v1511 = vpack.c.b16 %v1383, %v1379
    %v1512 = vpack.c.b16 %v1384, %v1380
    %1641 = vmatprep.subr.bf16.mxu0 %v1414
    %1642 = vmatpush1.bf16.msra.mxu0 %v1413
    %1643 = vmatprep.subr.bf16.mxu0 %v1410
    %1644 = vmatpush1.bf16.msra.mxu0 %v1409
    %1645 = vmatprep.subr.bf16.mxu0 %v1406
    %1646 = vmatpush1.bf16.msra.mxu0 %v1405
    %1647 = vmatprep.subr.bf16.mxu0 %v1402
    %1648 = vmatpush1.bf16.msra.mxu0 %v1401
    %1649 = vmatprep.subr.bf16.mxu0 %v1398
    %1650 = vmatpush1.bf16.msra.mxu0 %v1397
    %1651 = vmatprep.subr.bf16.mxu0 %v1394
    %1652 = vmatpush1.bf16.msra.mxu0 %v1393
    %1653 = vmatprep.subr.bf16.mxu0 %v1390
    %1654 = vmatpush1.bf16.msra.mxu0 %v1389
    %1655 = vmatprep.subr.bf16.mxu0 %v1386
    %1656 = vmatpush1.bf16.msra.mxu0 %v1385
    %1657 = vmatprep.subr.bf16.mxu0 %v1446
    %1658 = vmatpush2.bf16.msra.mxu0 %v1445
    %1659 = vmatprep.subr.bf16.mxu0 %v1442
    %1660 = vmatpush2.bf16.msra.mxu0 %v1441
    %1661 = vmatprep.subr.bf16.mxu0 %v1438
    %1662 = vmatpush2.bf16.msra.mxu0 %v1437
    %1663 = vmatprep.subr.bf16.mxu0 %v1434
    %1664 = vmatpush2.bf16.msra.mxu0 %v1433
    %1665 = vmatprep.subr.bf16.mxu0 %v1430
    %1666 = vmatpush2.bf16.msra.mxu0 %v1429
    %1667 = vmatprep.subr.bf16.mxu0 %v1426
    %1668 = vmatpush2.bf16.msra.mxu0 %v1425
    %1669 = vmatprep.subr.bf16.mxu0 %v1422
    %1670 = vmatpush2.bf16.msra.mxu0 %v1421
    %1671 = vmatprep.subr.bf16.mxu0 %v1418
    %1672 = vmatpush2.bf16.msra.mxu0 %v1417
    %1673 = vmatprep.mubr.bf16.mxu0 %v870
    %1674 = vmatmul.mubr.bf16.gmra.mxu0 %v869
    %v1675 = vpop.f32.mrf.mxu0
    %v1676 = vadd.f32 0.0, %v1675
    %v1677 = vpop.f32.mrf.mxu0
    %v1678 = vadd.f32 0.0, %v1677
    %v1679 = vpop.f32.mrf.mxu0
    %v1680 = vpop.f32.mrf.mxu0
    %1681 = vdwg.mxu0
    %1682 = vmatprep.subr.bf16.mxu0 %v1478
    %1683 = vmatpush1.bf16.msra.mxu0 %v1477
    %1684 = vmatprep.subr.bf16.mxu0 %v1474
    %1685 = vmatpush1.bf16.msra.mxu0 %v1473
    %1686 = vmatprep.subr.bf16.mxu0 %v1470
    %1687 = vmatpush1.bf16.msra.mxu0 %v1469
    %1688 = vmatprep.subr.bf16.mxu0 %v1466
    %1689 = vmatpush1.bf16.msra.mxu0 %v1465
    %1690 = vmatprep.subr.bf16.mxu0 %v1462
    %1691 = vmatpush1.bf16.msra.mxu0 %v1461
    %1692 = vmatprep.subr.bf16.mxu0 %v1458
    %1693 = vmatpush1.bf16.msra.mxu0 %v1457
    %1694 = vmatprep.subr.bf16.mxu0 %v1454
    %1695 = vmatpush1.bf16.msra.mxu0 %v1453
    %1696 = vmatprep.subr.bf16.mxu0 %v1450
    %1697 = vmatpush1.bf16.msra.mxu0 %v1449
    %1698 = vmatprep.subr.bf16.mxu0 %v1510
    %1699 = vmatpush2.bf16.msra.mxu0 %v1509
    %1700 = vmatprep.subr.bf16.mxu0 %v1506
    %1701 = vmatpush2.bf16.msra.mxu0 %v1505
    %1702 = vmatprep.subr.bf16.mxu0 %v1502
    %1703 = vmatpush2.bf16.msra.mxu0 %v1501
    %1704 = vmatprep.subr.bf16.mxu0 %v1498
    %1705 = vmatpush2.bf16.msra.mxu0 %v1497
    %1706 = vmatprep.subr.bf16.mxu0 %v1494
    %1707 = vmatpush2.bf16.msra.mxu0 %v1493
    %1708 = vmatprep.subr.bf16.mxu0 %v1490
    %1709 = vmatpush2.bf16.msra.mxu0 %v1489
    %1710 = vmatprep.subr.bf16.mxu0 %v1486
    %1711 = vmatpush2.bf16.msra.mxu0 %v1485
    %1712 = vmatprep.subr.bf16.mxu0 %v1482
    %1713 = vmatpush2.bf16.msra.mxu0 %v1481
    %1714 = vmatprep.mubr.bf16.mxu0 %v872
    %1715 = vmatmul.mubr.bf16.gmra.mxu0 %v871
    %v1716 = vpop.f32.mrf.mxu0
    %v1717 = vadd.f32 %v1676, %v1716
    %v1718 = vpop.f32.mrf.mxu0
    %v1719 = vadd.f32 %v1678, %v1718
    %v1720 = vpop.f32.mrf.mxu0
    %v1721 = vpop.f32.mrf.mxu0
    %1722 = vdwg.mxu0
    %1723 = vmatprep.subr.bf16.mxu0 %v1416
    %1724 = vmatpush1.bf16.msra.mxu0 %v1415
    %1725 = vmatprep.subr.bf16.mxu0 %v1412
    %1726 = vmatpush1.bf16.msra.mxu0 %v1411
    %1727 = vmatprep.subr.bf16.mxu0 %v1408
    %1728 = vmatpush1.bf16.msra.mxu0 %v1407
    %1729 = vmatprep.subr.bf16.mxu0 %v1404
    %1730 = vmatpush1.bf16.msra.mxu0 %v1403
    %1731 = vmatprep.subr.bf16.mxu0 %v1400
    %1732 = vmatpush1.bf16.msra.mxu0 %v1399
    %1733 = vmatprep.subr.bf16.mxu0 %v1396
    %1734 = vmatpush1.bf16.msra.mxu0 %v1395
    %1735 = vmatprep.subr.bf16.mxu0 %v1392
    %1736 = vmatpush1.bf16.msra.mxu0 %v1391
    %1737 = vmatprep.subr.bf16.mxu0 %v1388
    %1738 = vmatpush1.bf16.msra.mxu0 %v1387
    %1739 = vmatprep.subr.bf16.mxu0 %v1448
    %1740 = vmatpush2.bf16.msra.mxu0 %v1447
    %1741 = vmatprep.subr.bf16.mxu0 %v1444
    %1742 = vmatpush2.bf16.msra.mxu0 %v1443
    %1743 = vmatprep.subr.bf16.mxu0 %v1440
    %1744 = vmatpush2.bf16.msra.mxu0 %v1439
    %1745 = vmatprep.subr.bf16.mxu0 %v1436
    %1746 = vmatpush2.bf16.msra.mxu0 %v1435
    %1747 = vmatprep.subr.bf16.mxu0 %v1432
    %1748 = vmatpush2.bf16.msra.mxu0 %v1431
    %1749 = vmatprep.subr.bf16.mxu0 %v1428
    %1750 = vmatpush2.bf16.msra.mxu0 %v1427
    %1751 = vmatprep.subr.bf16.mxu0 %v1424
    %1752 = vmatpush2.bf16.msra.mxu0 %v1423
    %1753 = vmatprep.subr.bf16.mxu0 %v1420
    %1754 = vmatpush2.bf16.msra.mxu0 %v1419
    %1755 = vmatprep.mubr.bf16.mxu0 %v870
    %1756 = vmatmul.mubr.bf16.gmra.mxu0 %v869
    %v1757 = vpop.f32.mrf.mxu0
    %v1758 = vadd.f32 0.0, %v1757
    %v1759 = vpop.f32.mrf.mxu0
    %v1760 = vadd.f32 0.0, %v1759
    %v1761 = vpop.f32.mrf.mxu0
    %v1762 = vpop.f32.mrf.mxu0
    %1763 = vdwg.mxu0
    %1764 = vmatprep.subr.bf16.mxu0 %v1480
    %1765 = vmatpush1.bf16.msra.mxu0 %v1479
    %1766 = vmatprep.subr.bf16.mxu0 %v1476
    %1767 = vmatpush1.bf16.msra.mxu0 %v1475
    %1768 = vmatprep.subr.bf16.mxu0 %v1472
    %1769 = vmatpush1.bf16.msra.mxu0 %v1471
    %1770 = vmatprep.subr.bf16.mxu0 %v1468
    %1771 = vmatpush1.bf16.msra.mxu0 %v1467
    %1772 = vmatprep.subr.bf16.mxu0 %v1464
    %1773 = vmatpush1.bf16.msra.mxu0 %v1463
    %1774 = vmatprep.subr.bf16.mxu0 %v1460
    %1775 = vmatpush1.bf16.msra.mxu0 %v1459
    %1776 = vmatprep.subr.bf16.mxu0 %v1456
    %1777 = vmatpush1.bf16.msra.mxu0 %v1455
    %1778 = vmatprep.subr.bf16.mxu0 %v1452
    %1779 = vmatpush1.bf16.msra.mxu0 %v1451
    %1780 = vmatprep.subr.bf16.mxu0 %v1512
    %1781 = vmatpush2.bf16.msra.mxu0 %v1511
    %1782 = vmatprep.subr.bf16.mxu0 %v1508
    %1783 = vmatpush2.bf16.msra.mxu0 %v1507
    %1784 = vmatprep.subr.bf16.mxu0 %v1504
    %1785 = vmatpush2.bf16.msra.mxu0 %v1503
    %1786 = vmatprep.subr.bf16.mxu0 %v1500
    %1787 = vmatpush2.bf16.msra.mxu0 %v1499
    %1788 = vmatprep.subr.bf16.mxu0 %v1496
    %1789 = vmatpush2.bf16.msra.mxu0 %v1495
    %1790 = vmatprep.subr.bf16.mxu0 %v1492
    %1791 = vmatpush2.bf16.msra.mxu0 %v1491
    %1792 = vmatprep.subr.bf16.mxu0 %v1488
    %1793 = vmatpush2.bf16.msra.mxu0 %v1487
    %1794 = vmatprep.subr.bf16.mxu0 %v1484
    %1795 = vmatpush2.bf16.msra.mxu0 %v1483
    %1796 = vmatprep.mubr.bf16.mxu0 %v872
    %1797 = vmatmul.mubr.bf16.gmra.mxu0 %v871
    %v1798 = vpop.f32.mrf.mxu0
    %v1799 = vadd.f32 %v1758, %v1798
    %v1800 = vpop.f32.mrf.mxu0
    %v1801 = vadd.f32 %v1760, %v1800
    %v1802 = vpop.f32.mrf.mxu0
    %v1803 = vpop.f32.mrf.mxu0
    %1804 = vdwg.mxu0
    %v1933 = vunpack.c.l.b16 %v441
    %v1934 = vunpack.c.h.b16 %v441
    %v1935 = vunpack.c.l.b16 %v442
    %v1936 = vunpack.c.h.b16 %v442
    %v1937 = vunpack.c.l.b16 %v443
    %v1938 = vunpack.c.h.b16 %v443
    %v1939 = vunpack.c.l.b16 %v444
    %v1940 = vunpack.c.h.b16 %v444
    %v1941 = vunpack.c.l.b16 %v445
    %v1942 = vunpack.c.h.b16 %v445
    %v1943 = vunpack.c.l.b16 %v446
    %v1944 = vunpack.c.h.b16 %v446
    %v1945 = vunpack.c.l.b16 %v447
    %v1946 = vunpack.c.h.b16 %v447
    %v1947 = vunpack.c.l.b16 %v448
    %v1948 = vunpack.c.h.b16 %v448
    %v1949 = vunpack.c.l.b16 %v449
    %v1950 = vunpack.c.h.b16 %v449
    %v1951 = vunpack.c.l.b16 %v450
    %v1952 = vunpack.c.h.b16 %v450
    %v1953 = vunpack.c.l.b16 %v451
    %v1954 = vunpack.c.h.b16 %v451
    %v1955 = vunpack.c.l.b16 %v452
    %v1956 = vunpack.c.h.b16 %v452
    %v1957 = vunpack.c.l.b16 %v453
    %v1958 = vunpack.c.h.b16 %v453
    %v1959 = vunpack.c.l.b16 %v454
    %v1960 = vunpack.c.h.b16 %v454
    %v1961 = vunpack.c.l.b16 %v455
    %v1962 = vunpack.c.h.b16 %v455
    %v1963 = vunpack.c.l.b16 %v456
    %v1964 = vunpack.c.h.b16 %v456
    %v1965 = vunpack.c.l.b16 %v457
    %v1966 = vunpack.c.h.b16 %v457
    %v1967 = vunpack.c.l.b16 %v458
    %v1968 = vunpack.c.h.b16 %v458
    %v1969 = vunpack.c.l.b16 %v459
    %v1970 = vunpack.c.h.b16 %v459
    %v1971 = vunpack.c.l.b16 %v460
    %v1972 = vunpack.c.h.b16 %v460
    %v1973 = vunpack.c.l.b16 %v461
    %v1974 = vunpack.c.h.b16 %v461
    %v1975 = vunpack.c.l.b16 %v462
    %v1976 = vunpack.c.h.b16 %v462
    %v1977 = vunpack.c.l.b16 %v463
    %v1978 = vunpack.c.h.b16 %v463
    %v1979 = vunpack.c.l.b16 %v464
    %v1980 = vunpack.c.h.b16 %v464
    %v1981 = vunpack.c.l.b16 %v465
    %v1982 = vunpack.c.h.b16 %v465
    %v1983 = vunpack.c.l.b16 %v466
    %v1984 = vunpack.c.h.b16 %v466
    %v1985 = vunpack.c.l.b16 %v467
    %v1986 = vunpack.c.h.b16 %v467
    %v1987 = vunpack.c.l.b16 %v468
    %v1988 = vunpack.c.h.b16 %v468
    %v1989 = vunpack.c.l.b16 %v469
    %v1990 = vunpack.c.h.b16 %v469
    %v1991 = vunpack.c.l.b16 %v470
    %v1992 = vunpack.c.h.b16 %v470
    %v1993 = vunpack.c.l.b16 %v471
    %v1994 = vunpack.c.h.b16 %v471
    %v1995 = vunpack.c.l.b16 %v472
    %v1996 = vunpack.c.h.b16 %v472
    %v1997 = vunpack.c.l.b16 %v473
    %v1998 = vunpack.c.h.b16 %v473
    %v1999 = vunpack.c.l.b16 %v474
    %v2000 = vunpack.c.h.b16 %v474
    %v2001 = vunpack.c.l.b16 %v475
    %v2002 = vunpack.c.h.b16 %v475
    %v2003 = vunpack.c.l.b16 %v476
    %v2004 = vunpack.c.h.b16 %v476
    %v2005 = vunpack.c.l.b16 %v477
    %v2006 = vunpack.c.h.b16 %v477
    %v2007 = vunpack.c.l.b16 %v478
    %v2008 = vunpack.c.h.b16 %v478
    %v2009 = vunpack.c.l.b16 %v479
    %v2010 = vunpack.c.h.b16 %v479
    %v2011 = vunpack.c.l.b16 %v480
    %v2012 = vunpack.c.h.b16 %v480
    %v2013 = vunpack.c.l.b16 %v481
    %v2014 = vunpack.c.h.b16 %v481
    %v2015 = vunpack.c.l.b16 %v482
    %v2016 = vunpack.c.h.b16 %v482
    %v2017 = vunpack.c.l.b16 %v483
    %v2018 = vunpack.c.h.b16 %v483
    %v2019 = vunpack.c.l.b16 %v484
    %v2020 = vunpack.c.h.b16 %v484
    %v2021 = vunpack.c.l.b16 %v485
    %v2022 = vunpack.c.h.b16 %v485
    %v2023 = vunpack.c.l.b16 %v486
    %v2024 = vunpack.c.h.b16 %v486
    %v2025 = vunpack.c.l.b16 %v487
    %v2026 = vunpack.c.h.b16 %v487
    %v2027 = vunpack.c.l.b16 %v488
    %v2028 = vunpack.c.h.b16 %v488
    %v2029 = vunpack.c.l.b16 %v489
    %v2030 = vunpack.c.h.b16 %v489
    %v2031 = vunpack.c.l.b16 %v490
    %v2032 = vunpack.c.h.b16 %v490
    %v2033 = vunpack.c.l.b16 %v491
    %v2034 = vunpack.c.h.b16 %v491
    %v2035 = vunpack.c.l.b16 %v492
    %v2036 = vunpack.c.h.b16 %v492
    %v2037 = vunpack.c.l.b16 %v493
    %v2038 = vunpack.c.h.b16 %v493
    %v2039 = vunpack.c.l.b16 %v494
    %v2040 = vunpack.c.h.b16 %v494
    %v2041 = vunpack.c.l.b16 %v495
    %v2042 = vunpack.c.h.b16 %v495
    %v2043 = vunpack.c.l.b16 %v496
    %v2044 = vunpack.c.h.b16 %v496
    %v2045 = vunpack.c.l.b16 %v497
    %v2046 = vunpack.c.h.b16 %v497
    %v2047 = vunpack.c.l.b16 %v498
    %v2048 = vunpack.c.h.b16 %v498
    %v2049 = vunpack.c.l.b16 %v499
    %v2050 = vunpack.c.h.b16 %v499
    %v2051 = vunpack.c.l.b16 %v500
    %v2052 = vunpack.c.h.b16 %v500
    %v2053 = vunpack.c.l.b16 %v501
    %v2054 = vunpack.c.h.b16 %v501
    %v2055 = vunpack.c.l.b16 %v502
    %v2056 = vunpack.c.h.b16 %v502
    %v2057 = vunpack.c.l.b16 %v503
    %v2058 = vunpack.c.h.b16 %v503
    %v2059 = vunpack.c.l.b16 %v504
    %v2060 = vunpack.c.h.b16 %v504
    %v2061 = vunpack.c.l.b16 %v505
    %v2062 = vunpack.c.h.b16 %v505
    %v2063 = vunpack.c.l.b16 %v506
    %v2064 = vunpack.c.h.b16 %v506
    %v2065 = vunpack.c.l.b16 %v507
    %v2066 = vunpack.c.h.b16 %v507
    %v2067 = vunpack.c.l.b16 %v508
    %v2068 = vunpack.c.h.b16 %v508
    %v2069 = vunpack.c.l.b16 %v509
    %v2070 = vunpack.c.h.b16 %v509
    %v2071 = vunpack.c.l.b16 %v510
    %v2072 = vunpack.c.h.b16 %v510
    %v2073 = vunpack.c.l.b16 %v511
    %v2074 = vunpack.c.h.b16 %v511
    %v2075 = vunpack.c.l.b16 %v512
    %v2076 = vunpack.c.h.b16 %v512
    %v2077 = vunpack.c.l.b16 %v513
    %v2078 = vunpack.c.h.b16 %v513
    %v2079 = vunpack.c.l.b16 %v514
    %v2080 = vunpack.c.h.b16 %v514
    %v2081 = vunpack.c.l.b16 %v515
    %v2082 = vunpack.c.h.b16 %v515
    %v2083 = vunpack.c.l.b16 %v516
    %v2084 = vunpack.c.h.b16 %v516
    %v2085 = vunpack.c.l.b16 %v517
    %v2086 = vunpack.c.h.b16 %v517
    %v2087 = vunpack.c.l.b16 %v518
    %v2088 = vunpack.c.h.b16 %v518
    %v2089 = vunpack.c.l.b16 %v519
    %v2090 = vunpack.c.h.b16 %v519
    %v2091 = vunpack.c.l.b16 %v520
    %v2092 = vunpack.c.h.b16 %v520
    %v2093 = vunpack.c.l.b16 %v521
    %v2094 = vunpack.c.h.b16 %v521
    %v2095 = vunpack.c.l.b16 %v522
    %v2096 = vunpack.c.h.b16 %v522
    %v2097 = vunpack.c.l.b16 %v523
    %v2098 = vunpack.c.h.b16 %v523
    %v2099 = vunpack.c.l.b16 %v524
    %v2100 = vunpack.c.h.b16 %v524
    %v2101 = vunpack.c.l.b16 %v525
    %v2102 = vunpack.c.h.b16 %v525
    %v2103 = vunpack.c.l.b16 %v526
    %v2104 = vunpack.c.h.b16 %v526
    %v2105 = vunpack.c.l.b16 %v527
    %v2106 = vunpack.c.h.b16 %v527
    %v2107 = vunpack.c.l.b16 %v528
    %v2108 = vunpack.c.h.b16 %v528
    %v2109 = vunpack.c.l.b16 %v529
    %v2110 = vunpack.c.h.b16 %v529
    %v2111 = vunpack.c.l.b16 %v530
    %v2112 = vunpack.c.h.b16 %v530
    %v2113 = vunpack.c.l.b16 %v531
    %v2114 = vunpack.c.h.b16 %v531
    %v2115 = vunpack.c.l.b16 %v532
    %v2116 = vunpack.c.h.b16 %v532
    %v2117 = vunpack.c.l.b16 %v533
    %v2118 = vunpack.c.h.b16 %v533
    %v2119 = vunpack.c.l.b16 %v534
    %v2120 = vunpack.c.h.b16 %v534
    %v2121 = vunpack.c.l.b16 %v535
    %v2122 = vunpack.c.h.b16 %v535
    %v2123 = vunpack.c.l.b16 %v536
    %v2124 = vunpack.c.h.b16 %v536
    %v2125 = vunpack.c.l.b16 %v537
    %v2126 = vunpack.c.h.b16 %v537
    %v2127 = vunpack.c.l.b16 %v538
    %v2128 = vunpack.c.h.b16 %v538
    %v2129 = vunpack.c.l.b16 %v539
    %v2130 = vunpack.c.h.b16 %v539
    %v2131 = vunpack.c.l.b16 %v540
    %v2132 = vunpack.c.h.b16 %v540
    %v2133 = vunpack.c.l.b16 %v541
    %v2134 = vunpack.c.h.b16 %v541
    %v2135 = vunpack.c.l.b16 %v542
    %v2136 = vunpack.c.h.b16 %v542
    %v2137 = vunpack.c.l.b16 %v543
    %v2138 = vunpack.c.h.b16 %v543
    %v2139 = vunpack.c.l.b16 %v544
    %v2140 = vunpack.c.h.b16 %v544
    %v2141 = vunpack.c.l.b16 %v545
    %v2142 = vunpack.c.h.b16 %v545
    %v2143 = vunpack.c.l.b16 %v546
    %v2144 = vunpack.c.h.b16 %v546
    %v2145 = vunpack.c.l.b16 %v547
    %v2146 = vunpack.c.h.b16 %v547
    %v2147 = vunpack.c.l.b16 %v548
    %v2148 = vunpack.c.h.b16 %v548
    %v2149 = vunpack.c.l.b16 %v549
    %v2150 = vunpack.c.h.b16 %v549
    %v2151 = vunpack.c.l.b16 %v550
    %v2152 = vunpack.c.h.b16 %v550
    %v2153 = vunpack.c.l.b16 %v551
    %v2154 = vunpack.c.h.b16 %v551
    %v2155 = vunpack.c.l.b16 %v552
    %v2156 = vunpack.c.h.b16 %v552
    %v2157 = vunpack.c.l.b16 %v553
    %v2158 = vunpack.c.h.b16 %v553
    %v2159 = vunpack.c.l.b16 %v554
    %v2160 = vunpack.c.h.b16 %v554
    %v2161 = vunpack.c.l.b16 %v555
    %v2162 = vunpack.c.h.b16 %v555
    %v2163 = vunpack.c.l.b16 %v556
    %v2164 = vunpack.c.h.b16 %v556
    %v2165 = vunpack.c.l.b16 %v557
    %v2166 = vunpack.c.h.b16 %v557
    %v2167 = vunpack.c.l.b16 %v558
    %v2168 = vunpack.c.h.b16 %v558
    %v2169 = vunpack.c.l.b16 %v559
    %v2170 = vunpack.c.h.b16 %v559
    %v2171 = vunpack.c.l.b16 %v560
    %v2172 = vunpack.c.h.b16 %v560
    %v2173 = vunpack.c.l.b16 %v561
    %v2174 = vunpack.c.h.b16 %v561
    %v2175 = vunpack.c.l.b16 %v562
    %v2176 = vunpack.c.h.b16 %v562
    %v2177 = vunpack.c.l.b16 %v563
    %v2178 = vunpack.c.h.b16 %v563
    %v2179 = vunpack.c.l.b16 %v564
    %v2180 = vunpack.c.h.b16 %v564
    %v2181 = vunpack.c.l.b16 %v565
    %v2182 = vunpack.c.h.b16 %v565
    %v2183 = vunpack.c.l.b16 %v566
    %v2184 = vunpack.c.h.b16 %v566
    %v2185 = vunpack.c.l.b16 %v567
    %v2186 = vunpack.c.h.b16 %v567
    %v2187 = vunpack.c.l.b16 %v568
    %v2188 = vunpack.c.h.b16 %v568
    %v2189 = vpack.c.b16 %v1937, %v1933
    %v2190 = vpack.c.b16 %v1938, %v1934
    %v2191 = vpack.c.b16 %v1939, %v1935
    %v2192 = vpack.c.b16 %v1940, %v1936
    %v2193 = vpack.c.b16 %v1945, %v1941
    %v2194 = vpack.c.b16 %v1946, %v1942
    %v2195 = vpack.c.b16 %v1947, %v1943
    %v2196 = vpack.c.b16 %v1948, %v1944
    %v2197 = vpack.c.b16 %v1953, %v1949
    %v2198 = vpack.c.b16 %v1954, %v1950
    %v2199 = vpack.c.b16 %v1955, %v1951
    %v2200 = vpack.c.b16 %v1956, %v1952
    %v2201 = vpack.c.b16 %v1961, %v1957
    %v2202 = vpack.c.b16 %v1962, %v1958
    %v2203 = vpack.c.b16 %v1963, %v1959
    %v2204 = vpack.c.b16 %v1964, %v1960
    %v2205 = vpack.c.b16 %v1969, %v1965
    %v2206 = vpack.c.b16 %v1970, %v1966
    %v2207 = vpack.c.b16 %v1971, %v1967
    %v2208 = vpack.c.b16 %v1972, %v1968
    %v2209 = vpack.c.b16 %v1977, %v1973
    %v2210 = vpack.c.b16 %v1978, %v1974
    %v2211 = vpack.c.b16 %v1979, %v1975
    %v2212 = vpack.c.b16 %v1980, %v1976
    %v2213 = vpack.c.b16 %v1985, %v1981
    %v2214 = vpack.c.b16 %v1986, %v1982
    %v2215 = vpack.c.b16 %v1987, %v1983
    %v2216 = vpack.c.b16 %v1988, %v1984
    %v2217 = vpack.c.b16 %v1993, %v1989
    %v2218 = vpack.c.b16 %v1994, %v1990
    %v2219 = vpack.c.b16 %v1995, %v1991
    %v2220 = vpack.c.b16 %v1996, %v1992
    %v2221 = vpack.c.b16 %v2001, %v1997
    %v2222 = vpack.c.b16 %v2002, %v1998
    %v2223 = vpack.c.b16 %v2003, %v1999
    %v2224 = vpack.c.b16 %v2004, %v2000
    %v2225 = vpack.c.b16 %v2009, %v2005
    %v2226 = vpack.c.b16 %v2010, %v2006
    %v2227 = vpack.c.b16 %v2011, %v2007
    %v2228 = vpack.c.b16 %v2012, %v2008
    %v2229 = vpack.c.b16 %v2017, %v2013
    %v2230 = vpack.c.b16 %v2018, %v2014
    %v2231 = vpack.c.b16 %v2019, %v2015
    %v2232 = vpack.c.b16 %v2020, %v2016
    %v2233 = vpack.c.b16 %v2025, %v2021
    %v2234 = vpack.c.b16 %v2026, %v2022
    %v2235 = vpack.c.b16 %v2027, %v2023
    %v2236 = vpack.c.b16 %v2028, %v2024
    %v2237 = vpack.c.b16 %v2033, %v2029
    %v2238 = vpack.c.b16 %v2034, %v2030
    %v2239 = vpack.c.b16 %v2035, %v2031
    %v2240 = vpack.c.b16 %v2036, %v2032
    %v2241 = vpack.c.b16 %v2041, %v2037
    %v2242 = vpack.c.b16 %v2042, %v2038
    %v2243 = vpack.c.b16 %v2043, %v2039
    %v2244 = vpack.c.b16 %v2044, %v2040
    %v2245 = vpack.c.b16 %v2049, %v2045
    %v2246 = vpack.c.b16 %v2050, %v2046
    %v2247 = vpack.c.b16 %v2051, %v2047
    %v2248 = vpack.c.b16 %v2052, %v2048
    %v2249 = vpack.c.b16 %v2057, %v2053
    %v2250 = vpack.c.b16 %v2058, %v2054
    %v2251 = vpack.c.b16 %v2059, %v2055
    %v2252 = vpack.c.b16 %v2060, %v2056
    %v2253 = vpack.c.b16 %v2065, %v2061
    %v2254 = vpack.c.b16 %v2066, %v2062
    %v2255 = vpack.c.b16 %v2067, %v2063
    %v2256 = vpack.c.b16 %v2068, %v2064
    %v2257 = vpack.c.b16 %v2073, %v2069
    %v2258 = vpack.c.b16 %v2074, %v2070
    %v2259 = vpack.c.b16 %v2075, %v2071
    %v2260 = vpack.c.b16 %v2076, %v2072
    %v2261 = vpack.c.b16 %v2081, %v2077
    %v2262 = vpack.c.b16 %v2082, %v2078
    %v2263 = vpack.c.b16 %v2083, %v2079
    %v2264 = vpack.c.b16 %v2084, %v2080
    %v2265 = vpack.c.b16 %v2089, %v2085
    %v2266 = vpack.c.b16 %v2090, %v2086
    %v2267 = vpack.c.b16 %v2091, %v2087
    %v2268 = vpack.c.b16 %v2092, %v2088
    %v2269 = vpack.c.b16 %v2097, %v2093
    %v2270 = vpack.c.b16 %v2098, %v2094
    %v2271 = vpack.c.b16 %v2099, %v2095
    %v2272 = vpack.c.b16 %v2100, %v2096
    %v2273 = vpack.c.b16 %v2105, %v2101
    %v2274 = vpack.c.b16 %v2106, %v2102
    %v2275 = vpack.c.b16 %v2107, %v2103
    %v2276 = vpack.c.b16 %v2108, %v2104
    %v2277 = vpack.c.b16 %v2113, %v2109
    %v2278 = vpack.c.b16 %v2114, %v2110
    %v2279 = vpack.c.b16 %v2115, %v2111
    %v2280 = vpack.c.b16 %v2116, %v2112
    %v2281 = vpack.c.b16 %v2121, %v2117
    %v2282 = vpack.c.b16 %v2122, %v2118
    %v2283 = vpack.c.b16 %v2123, %v2119
    %v2284 = vpack.c.b16 %v2124, %v2120
    %v2285 = vpack.c.b16 %v2129, %v2125
    %v2286 = vpack.c.b16 %v2130, %v2126
    %v2287 = vpack.c.b16 %v2131, %v2127
    %v2288 = vpack.c.b16 %v2132, %v2128
    %v2289 = vpack.c.b16 %v2137, %v2133
    %v2290 = vpack.c.b16 %v2138, %v2134
    %v2291 = vpack.c.b16 %v2139, %v2135
    %v2292 = vpack.c.b16 %v2140, %v2136
    %v2293 = vpack.c.b16 %v2145, %v2141
    %v2294 = vpack.c.b16 %v2146, %v2142
    %v2295 = vpack.c.b16 %v2147, %v2143
    %v2296 = vpack.c.b16 %v2148, %v2144
    %v2297 = vpack.c.b16 %v2153, %v2149
    %v2298 = vpack.c.b16 %v2154, %v2150
    %v2299 = vpack.c.b16 %v2155, %v2151
    %v2300 = vpack.c.b16 %v2156, %v2152
    %v2301 = vpack.c.b16 %v2161, %v2157
    %v2302 = vpack.c.b16 %v2162, %v2158
    %v2303 = vpack.c.b16 %v2163, %v2159
    %v2304 = vpack.c.b16 %v2164, %v2160
    %v2305 = vpack.c.b16 %v2169, %v2165
    %v2306 = vpack.c.b16 %v2170, %v2166
    %v2307 = vpack.c.b16 %v2171, %v2167
    %v2308 = vpack.c.b16 %v2172, %v2168
    %v2309 = vpack.c.b16 %v2177, %v2173
    %v2310 = vpack.c.b16 %v2178, %v2174
    %v2311 = vpack.c.b16 %v2179, %v2175
    %v2312 = vpack.c.b16 %v2180, %v2176
    %v2313 = vpack.c.b16 %v2185, %v2181
    %v2314 = vpack.c.b16 %v2186, %v2182
    %v2315 = vpack.c.b16 %v2187, %v2183
    %v2316 = vpack.c.b16 %v2188, %v2184
    %2445 = vmatprep.subr.bf16.mxu0 %v2218
    %2446 = vmatpush1.bf16.msra.mxu0 %v2217
    %2447 = vmatprep.subr.bf16.mxu0 %v2214
    %2448 = vmatpush1.bf16.msra.mxu0 %v2213
    %2449 = vmatprep.subr.bf16.mxu0 %v2210
    %2450 = vmatpush1.bf16.msra.mxu0 %v2209
    %2451 = vmatprep.subr.bf16.mxu0 %v2206
    %2452 = vmatpush1.bf16.msra.mxu0 %v2205
    %2453 = vmatprep.subr.bf16.mxu0 %v2202
    %2454 = vmatpush1.bf16.msra.mxu0 %v2201
    %2455 = vmatprep.subr.bf16.mxu0 %v2198
    %2456 = vmatpush1.bf16.msra.mxu0 %v2197
    %2457 = vmatprep.subr.bf16.mxu0 %v2194
    %2458 = vmatpush1.bf16.msra.mxu0 %v2193
    %2459 = vmatprep.subr.bf16.mxu0 %v2190
    %2460 = vmatpush1.bf16.msra.mxu0 %v2189
    %2461 = vmatprep.subr.bf16.mxu0 %v2250
    %2462 = vmatpush2.bf16.msra.mxu0 %v2249
    %2463 = vmatprep.subr.bf16.mxu0 %v2246
    %2464 = vmatpush2.bf16.msra.mxu0 %v2245
    %2465 = vmatprep.subr.bf16.mxu0 %v2242
    %2466 = vmatpush2.bf16.msra.mxu0 %v2241
    %2467 = vmatprep.subr.bf16.mxu0 %v2238
    %2468 = vmatpush2.bf16.msra.mxu0 %v2237
    %2469 = vmatprep.subr.bf16.mxu0 %v2234
    %2470 = vmatpush2.bf16.msra.mxu0 %v2233
    %2471 = vmatprep.subr.bf16.mxu0 %v2230
    %2472 = vmatpush2.bf16.msra.mxu0 %v2229
    %2473 = vmatprep.subr.bf16.mxu0 %v2226
    %2474 = vmatpush2.bf16.msra.mxu0 %v2225
    %2475 = vmatprep.subr.bf16.mxu0 %v2222
    %2476 = vmatpush2.bf16.msra.mxu0 %v2221
    %2477 = vmatprep.mubr.bf16.mxu0 %v438
    %2478 = vmatmul.mubr.bf16.gmra.mxu0 %v437
    %v2479 = vpop.f32.mrf.mxu0
    %v2480 = vadd.f32 %v1717, %v2479
    %v2481 = vpop.f32.mrf.mxu0
    %v2482 = vadd.f32 %v1719, %v2481
    %v2483 = vpop.f32.mrf.mxu0
    %v2484 = vpop.f32.mrf.mxu0
    %2485 = vdwg.mxu0
    %2486 = vmatprep.subr.bf16.mxu0 %v2282
    %2487 = vmatpush1.bf16.msra.mxu0 %v2281
    %2488 = vmatprep.subr.bf16.mxu0 %v2278
    %2489 = vmatpush1.bf16.msra.mxu0 %v2277
    %2490 = vmatprep.subr.bf16.mxu0 %v2274
    %2491 = vmatpush1.bf16.msra.mxu0 %v2273
    %2492 = vmatprep.subr.bf16.mxu0 %v2270
    %2493 = vmatpush1.bf16.msra.mxu0 %v2269
    %2494 = vmatprep.subr.bf16.mxu0 %v2266
    %2495 = vmatpush1.bf16.msra.mxu0 %v2265
    %2496 = vmatprep.subr.bf16.mxu0 %v2262
    %2497 = vmatpush1.bf16.msra.mxu0 %v2261
    %2498 = vmatprep.subr.bf16.mxu0 %v2258
    %2499 = vmatpush1.bf16.msra.mxu0 %v2257
    %2500 = vmatprep.subr.bf16.mxu0 %v2254
    %2501 = vmatpush1.bf16.msra.mxu0 %v2253
    %2502 = vmatprep.subr.bf16.mxu0 %v2314
    %2503 = vmatpush2.bf16.msra.mxu0 %v2313
    %2504 = vmatprep.subr.bf16.mxu0 %v2310
    %2505 = vmatpush2.bf16.msra.mxu0 %v2309
    %2506 = vmatprep.subr.bf16.mxu0 %v2306
    %2507 = vmatpush2.bf16.msra.mxu0 %v2305
    %2508 = vmatprep.subr.bf16.mxu0 %v2302
    %2509 = vmatpush2.bf16.msra.mxu0 %v2301
    %2510 = vmatprep.subr.bf16.mxu0 %v2298
    %2511 = vmatpush2.bf16.msra.mxu0 %v2297
    %2512 = vmatprep.subr.bf16.mxu0 %v2294
    %2513 = vmatpush2.bf16.msra.mxu0 %v2293
    %2514 = vmatprep.subr.bf16.mxu0 %v2290
    %2515 = vmatpush2.bf16.msra.mxu0 %v2289
    %2516 = vmatprep.subr.bf16.mxu0 %v2286
    %2517 = vmatpush2.bf16.msra.mxu0 %v2285
    %2518 = vmatprep.mubr.bf16.mxu0 %v440
    %2519 = vmatmul.mubr.bf16.gmra.mxu0 %v439
    %v2520 = vpop.f32.mrf.mxu0
    %v2521 = vadd.f32 %v2480, %v2520
    %v2522 = vpop.f32.mrf.mxu0
    %v2523 = vadd.f32 %v2482, %v2522
    %v2524 = vpop.f32.mrf.mxu0
    %v2525 = vpop.f32.mrf.mxu0
    %2526 = vdwg.mxu0
    %2527 = vmatprep.subr.bf16.mxu0 %v2220
    %2528 = vmatpush1.bf16.msra.mxu0 %v2219
    %2529 = vmatprep.subr.bf16.mxu0 %v2216
    %2530 = vmatpush1.bf16.msra.mxu0 %v2215
    %2531 = vmatprep.subr.bf16.mxu0 %v2212
    %2532 = vmatpush1.bf16.msra.mxu0 %v2211
    %2533 = vmatprep.subr.bf16.mxu0 %v2208
    %2534 = vmatpush1.bf16.msra.mxu0 %v2207
    %2535 = vmatprep.subr.bf16.mxu0 %v2204
    %2536 = vmatpush1.bf16.msra.mxu0 %v2203
    %2537 = vmatprep.subr.bf16.mxu0 %v2200
    %2538 = vmatpush1.bf16.msra.mxu0 %v2199
    %2539 = vmatprep.subr.bf16.mxu0 %v2196
    %2540 = vmatpush1.bf16.msra.mxu0 %v2195
    %2541 = vmatprep.subr.bf16.mxu0 %v2192
    %2542 = vmatpush1.bf16.msra.mxu0 %v2191
    %2543 = vmatprep.subr.bf16.mxu0 %v2252
    %2544 = vmatpush2.bf16.msra.mxu0 %v2251
    %2545 = vmatprep.subr.bf16.mxu0 %v2248
    %2546 = vmatpush2.bf16.msra.mxu0 %v2247
    %2547 = vmatprep.subr.bf16.mxu0 %v2244
    %2548 = vmatpush2.bf16.msra.mxu0 %v2243
    %2549 = vmatprep.subr.bf16.mxu0 %v2240
    %2550 = vmatpush2.bf16.msra.mxu0 %v2239
    %2551 = vmatprep.subr.bf16.mxu0 %v2236
    %2552 = vmatpush2.bf16.msra.mxu0 %v2235
    %2553 = vmatprep.subr.bf16.mxu0 %v2232
    %2554 = vmatpush2.bf16.msra.mxu0 %v2231
    %2555 = vmatprep.subr.bf16.mxu0 %v2228
    %2556 = vmatpush2.bf16.msra.mxu0 %v2227
    %2557 = vmatprep.subr.bf16.mxu0 %v2224
    %2558 = vmatpush2.bf16.msra.mxu0 %v2223
    %2559 = vmatprep.mubr.bf16.mxu0 %v438
    %2560 = vmatmul.mubr.bf16.gmra.mxu0 %v437
    %v2561 = vpop.f32.mrf.mxu0
    %v2562 = vadd.f32 %v1799, %v2561
    %v2563 = vpop.f32.mrf.mxu0
    %v2564 = vadd.f32 %v1801, %v2563
    %v2565 = vpop.f32.mrf.mxu0
    %v2566 = vpop.f32.mrf.mxu0
    %2567 = vdwg.mxu0
    %2568 = vmatprep.subr.bf16.mxu0 %v2284
    %2569 = vmatpush1.bf16.msra.mxu0 %v2283
    %2570 = vmatprep.subr.bf16.mxu0 %v2280
    %2571 = vmatpush1.bf16.msra.mxu0 %v2279
    %2572 = vmatprep.subr.bf16.mxu0 %v2276
    %2573 = vmatpush1.bf16.msra.mxu0 %v2275
    %2574 = vmatprep.subr.bf16.mxu0 %v2272
    %2575 = vmatpush1.bf16.msra.mxu0 %v2271
    %2576 = vmatprep.subr.bf16.mxu0 %v2268
    %2577 = vmatpush1.bf16.msra.mxu0 %v2267
    %2578 = vmatprep.subr.bf16.mxu0 %v2264
    %2579 = vmatpush1.bf16.msra.mxu0 %v2263
    %2580 = vmatprep.subr.bf16.mxu0 %v2260
    %2581 = vmatpush1.bf16.msra.mxu0 %v2259
    %2582 = vmatprep.subr.bf16.mxu0 %v2256
    %2583 = vmatpush1.bf16.msra.mxu0 %v2255
    %2584 = vmatprep.subr.bf16.mxu0 %v2316
    %2585 = vmatpush2.bf16.msra.mxu0 %v2315
    %2586 = vmatprep.subr.bf16.mxu0 %v2312
    %2587 = vmatpush2.bf16.msra.mxu0 %v2311
    %2588 = vmatprep.subr.bf16.mxu0 %v2308
    %2589 = vmatpush2.bf16.msra.mxu0 %v2307
    %2590 = vmatprep.subr.bf16.mxu0 %v2304
    %2591 = vmatpush2.bf16.msra.mxu0 %v2303
    %2592 = vmatprep.subr.bf16.mxu0 %v2300
    %2593 = vmatpush2.bf16.msra.mxu0 %v2299
    %2594 = vmatprep.subr.bf16.mxu0 %v2296
    %2595 = vmatpush2.bf16.msra.mxu0 %v2295
    %2596 = vmatprep.subr.bf16.mxu0 %v2292
    %2597 = vmatpush2.bf16.msra.mxu0 %v2291
    %2598 = vmatprep.subr.bf16.mxu0 %v2288
    %2599 = vmatpush2.bf16.msra.mxu0 %v2287
    %2600 = vmatprep.mubr.bf16.mxu0 %v440
    %2601 = vmatmul.mubr.bf16.gmra.mxu0 %v439
    %v2602 = vpop.f32.mrf.mxu0
    %v2603 = vadd.f32 %v2562, %v2602
    %v2604 = vpop.f32.mrf.mxu0
    %v2605 = vadd.f32 %v2564, %v2604
    %v2606 = vpop.f32.mrf.mxu0
    %v2607 = vpop.f32.mrf.mxu0
    %2608 = vdwg.mxu0
    %v2609 = vld [vmem:[#allocation2 + $0x20] sm:$0xff]
    %v2610 = vld [vmem:[#allocation2 + $0x28] sm:$0xff]
    %v2611 = vld [vmem:[#allocation2 + $0x60] sm:$0xff]
    %v2612 = vld [vmem:[#allocation2 + $0x68] sm:$0xff]
    %v2613 = vld [vmem:[#allocation2 + $0xa0] sm:$0xff]
    %v2614 = vld [vmem:[#allocation2 + $0xa8] sm:$0xff]
    %v2615 = vld [vmem:[#allocation2 + $0xe0] sm:$0xff]
    %v2616 = vld [vmem:[#allocation2 + $0xe8] sm:$0xff]
    %v2617 = vld [vmem:[#allocation2 + $0x120] sm:$0xff]
    %v2618 = vld [vmem:[#allocation2 + $0x128] sm:$0xff]
    %v2619 = vld [vmem:[#allocation2 + $0x160] sm:$0xff]
    %v2620 = vld [vmem:[#allocation2 + $0x168] sm:$0xff]
    %v2621 = vld [vmem:[#allocation2 + $0x1a0] sm:$0xff]
    %v2622 = vld [vmem:[#allocation2 + $0x1a8] sm:$0xff]
    %v2623 = vld [vmem:[#allocation2 + $0x1e0] sm:$0xff]
    %v2624 = vld [vmem:[#allocation2 + $0x1e8] sm:$0xff]
    %v2625 = vld [vmem:[#allocation2 + $0x220] sm:$0xff]
    %v2626 = vld [vmem:[#allocation2 + $0x228] sm:$0xff]
    %v2627 = vld [vmem:[#allocation2 + $0x260] sm:$0xff]
    %v2628 = vld [vmem:[#allocation2 + $0x268] sm:$0xff]
    %v2629 = vld [vmem:[#allocation2 + $0x2a0] sm:$0xff]
    %v2630 = vld [vmem:[#allocation2 + $0x2a8] sm:$0xff]
    %v2631 = vld [vmem:[#allocation2 + $0x2e0] sm:$0xff]
    %v2632 = vld [vmem:[#allocation2 + $0x2e8] sm:$0xff]
    %v2633 = vld [vmem:[#allocation2 + $0x320] sm:$0xff]
    %v2634 = vld [vmem:[#allocation2 + $0x328] sm:$0xff]
    %v2635 = vld [vmem:[#allocation2 + $0x360] sm:$0xff]
    %v2636 = vld [vmem:[#allocation2 + $0x368] sm:$0xff]
    %v2637 = vld [vmem:[#allocation2 + $0x3a0] sm:$0xff]
    %v2638 = vld [vmem:[#allocation2 + $0x3a8] sm:$0xff]
    %v2639 = vld [vmem:[#allocation2 + $0x3e0] sm:$0xff]
    %v2640 = vld [vmem:[#allocation2 + $0x3e8] sm:$0xff]
    %v2641 = vld [vmem:[#allocation5 + $0x8] sm:$0xf]
    %v2643 = vlaneseq
    %v2644 = vshrl.u32 %v2643, 7
    %v2645 = vsub.s32 0, %v2644
    %v2646 = vrot.slane %v2641, %v2645
    %v2647 = vlaneseq
    %v2648 = vshrl.u32 %v2647, 7
    %v2649 = vsub.s32 1, %v2648
    %v2650 = vrot.slane %v2641, %v2649
    %v2651 = vlaneseq
    %v2652 = vshrl.u32 %v2651, 7
    %v2653 = vsub.s32 2, %v2652
    %v2654 = vrot.slane %v2641, %v2653
    %v2655 = vlaneseq
    %v2656 = vshrl.u32 %v2655, 7
    %v2657 = vsub.s32 3, %v2656
    %v2658 = vrot.slane %v2641, %v2657
    %v2695 = vunpack.c.l.b16 %v2609
    %v2696 = vunpack.c.h.b16 %v2609
    %v2697 = vunpack.c.l.b16 %v2610
    %v2698 = vunpack.c.h.b16 %v2610
    %v2699 = vunpack.c.l.b16 %v2611
    %v2700 = vunpack.c.h.b16 %v2611
    %v2701 = vunpack.c.l.b16 %v2612
    %v2702 = vunpack.c.h.b16 %v2612
    %v2703 = vunpack.c.l.b16 %v2613
    %v2704 = vunpack.c.h.b16 %v2613
    %v2705 = vunpack.c.l.b16 %v2614
    %v2706 = vunpack.c.h.b16 %v2614
    %v2707 = vunpack.c.l.b16 %v2615
    %v2708 = vunpack.c.h.b16 %v2615
    %v2709 = vunpack.c.l.b16 %v2616
    %v2710 = vunpack.c.h.b16 %v2616
    %v2711 = vunpack.c.l.b16 %v2617
    %v2712 = vunpack.c.h.b16 %v2617
    %v2713 = vunpack.c.l.b16 %v2618
    %v2714 = vunpack.c.h.b16 %v2618
    %v2715 = vunpack.c.l.b16 %v2619
    %v2716 = vunpack.c.h.b16 %v2619
    %v2717 = vunpack.c.l.b16 %v2620
    %v2718 = vunpack.c.h.b16 %v2620
    %v2719 = vunpack.c.l.b16 %v2621
    %v2720 = vunpack.c.h.b16 %v2621
    %v2721 = vunpack.c.l.b16 %v2622
    %v2722 = vunpack.c.h.b16 %v2622
    %v2723 = vunpack.c.l.b16 %v2623
    %v2724 = vunpack.c.h.b16 %v2623
    %v2725 = vunpack.c.l.b16 %v2624
    %v2726 = vunpack.c.h.b16 %v2624
    %v2727 = vunpack.c.l.b16 %v2625
    %v2728 = vunpack.c.h.b16 %v2625
    %v2729 = vunpack.c.l.b16 %v2626
    %v2730 = vunpack.c.h.b16 %v2626
    %v2731 = vunpack.c.l.b16 %v2627
    %v2732 = vunpack.c.h.b16 %v2627
    %v2733 = vunpack.c.l.b16 %v2628
    %v2734 = vunpack.c.h.b16 %v2628
    %v2735 = vunpack.c.l.b16 %v2629
    %v2736 = vunpack.c.h.b16 %v2629
    %v2737 = vunpack.c.l.b16 %v2630
    %v2738 = vunpack.c.h.b16 %v2630
    %v2739 = vunpack.c.l.b16 %v2631
    %v2740 = vunpack.c.h.b16 %v2631
    %v2741 = vunpack.c.l.b16 %v2632
    %v2742 = vunpack.c.h.b16 %v2632
    %v2743 = vunpack.c.l.b16 %v2633
    %v2744 = vunpack.c.h.b16 %v2633
    %v2745 = vunpack.c.l.b16 %v2634
    %v2746 = vunpack.c.h.b16 %v2634
    %v2747 = vunpack.c.l.b16 %v2635
    %v2748 = vunpack.c.h.b16 %v2635
    %v2749 = vunpack.c.l.b16 %v2636
    %v2750 = vunpack.c.h.b16 %v2636
    %v2751 = vunpack.c.l.b16 %v2637
    %v2752 = vunpack.c.h.b16 %v2637
    %v2753 = vunpack.c.l.b16 %v2638
    %v2754 = vunpack.c.h.b16 %v2638
    %v2755 = vunpack.c.l.b16 %v2639
    %v2756 = vunpack.c.h.b16 %v2639
    %v2757 = vunpack.c.l.b16 %v2640
    %v2758 = vunpack.c.h.b16 %v2640
    %v2759 = vpack.c.b16 %v2699, %v2695
    %v2760 = vpack.c.b16 %v2700, %v2696
    %v2761 = vpack.c.b16 %v2701, %v2697
    %v2762 = vpack.c.b16 %v2702, %v2698
    %v2763 = vpack.c.b16 %v2707, %v2703
    %v2764 = vpack.c.b16 %v2708, %v2704
    %v2765 = vpack.c.b16 %v2709, %v2705
    %v2766 = vpack.c.b16 %v2710, %v2706
    %v2767 = vpack.c.b16 %v2715, %v2711
    %v2768 = vpack.c.b16 %v2716, %v2712
    %v2769 = vpack.c.b16 %v2717, %v2713
    %v2770 = vpack.c.b16 %v2718, %v2714
    %v2771 = vpack.c.b16 %v2723, %v2719
    %v2772 = vpack.c.b16 %v2724, %v2720
    %v2773 = vpack.c.b16 %v2725, %v2721
    %v2774 = vpack.c.b16 %v2726, %v2722
    %v2775 = vpack.c.b16 %v2731, %v2727
    %v2776 = vpack.c.b16 %v2732, %v2728
    %v2777 = vpack.c.b16 %v2733, %v2729
    %v2778 = vpack.c.b16 %v2734, %v2730
    %v2779 = vpack.c.b16 %v2739, %v2735
    %v2780 = vpack.c.b16 %v2740, %v2736
    %v2781 = vpack.c.b16 %v2741, %v2737
    %v2782 = vpack.c.b16 %v2742, %v2738
    %v2783 = vpack.c.b16 %v2747, %v2743
    %v2784 = vpack.c.b16 %v2748, %v2744
    %v2785 = vpack.c.b16 %v2749, %v2745
    %v2786 = vpack.c.b16 %v2750, %v2746
    %v2787 = vpack.c.b16 %v2755, %v2751
    %v2788 = vpack.c.b16 %v2756, %v2752
    %v2789 = vpack.c.b16 %v2757, %v2753
    %v2790 = vpack.c.b16 %v2758, %v2754
    %2823 = vmatprep.subr.bf16.mxu0 %v2788
    %2824 = vmatpush1.bf16.msra.mxu0 %v2787
    %2825 = vmatprep.subr.bf16.mxu0 %v2784
    %2826 = vmatpush1.bf16.msra.mxu0 %v2783
    %2827 = vmatprep.subr.bf16.mxu0 %v2780
    %2828 = vmatpush1.bf16.msra.mxu0 %v2779
    %2829 = vmatprep.subr.bf16.mxu0 %v2776
    %2830 = vmatpush1.bf16.msra.mxu0 %v2775
    %2831 = vmatprep.subr.bf16.mxu0 %v2772
    %2832 = vmatpush1.bf16.msra.mxu0 %v2771
    %2833 = vmatprep.subr.bf16.mxu0 %v2768
    %2834 = vmatpush1.bf16.msra.mxu0 %v2767
    %2835 = vmatprep.subr.bf16.mxu0 %v2764
    %2836 = vmatpush1.bf16.msra.mxu0 %v2763
    %2837 = vmatprep.subr.bf16.mxu0 %v2760
    %2838 = vmatpush1.bf16.msra.mxu0 %v2759
    %2839 = vmatprep.subr.bf16.mxu0 0
    %2840 = vmatpush2.bf16.msra.mxu0 0
    %2841 = vmatprep.subr.bf16.mxu0 0
    %2842 = vmatpush2.bf16.msra.mxu0 0
    %2843 = vmatprep.subr.bf16.mxu0 0
    %2844 = vmatpush2.bf16.msra.mxu0 0
    %2845 = vmatprep.subr.bf16.mxu0 0
    %2846 = vmatpush2.bf16.msra.mxu0 0
    %2847 = vmatprep.subr.bf16.mxu0 0
    %2848 = vmatpush2.bf16.msra.mxu0 0
    %2849 = vmatprep.subr.bf16.mxu0 0
    %2850 = vmatpush2.bf16.msra.mxu0 0
    %2851 = vmatprep.subr.bf16.mxu0 0
    %2852 = vmatpush2.bf16.msra.mxu0 0
    %2853 = vmatprep.subr.bf16.mxu0 0
    %2854 = vmatpush2.bf16.msra.mxu0 0
    %2855 = vmatprep.mubr.bf16.mxu0 0
    %2856 = vmatmul.mubr.bf16.gmra.mxu0 %v136
    %v2857 = vpop.f32.mrf.mxu0
    %v2858 = vadd.f32 %v2646, %v2857
    %v2859 = vpop.f32.mrf.mxu0
    %v2860 = vadd.f32 %v2650, %v2859
    %v2861 = vpop.f32.mrf.mxu0
    %v2862 = vpop.f32.mrf.mxu0
    %2863 = vdwg.mxu0
    %2864 = vmatprep.subr.bf16.mxu0 %v2790
    %2865 = vmatpush1.bf16.msra.mxu0 %v2789
    %2866 = vmatprep.subr.bf16.mxu0 %v2786
    %2867 = vmatpush1.bf16.msra.mxu0 %v2785
    %2868 = vmatprep.subr.bf16.mxu0 %v2782
    %2869 = vmatpush1.bf16.msra.mxu0 %v2781
    %2870 = vmatprep.subr.bf16.mxu0 %v2778
    %2871 = vmatpush1.bf16.msra.mxu0 %v2777
    %2872 = vmatprep.subr.bf16.mxu0 %v2774
    %2873 = vmatpush1.bf16.msra.mxu0 %v2773
    %2874 = vmatprep.subr.bf16.mxu0 %v2770
    %2875 = vmatpush1.bf16.msra.mxu0 %v2769
    %2876 = vmatprep.subr.bf16.mxu0 %v2766
    %2877 = vmatpush1.bf16.msra.mxu0 %v2765
    %2878 = vmatprep.subr.bf16.mxu0 %v2762
    %2879 = vmatpush1.bf16.msra.mxu0 %v2761
    %2880 = vmatprep.subr.bf16.mxu0 0
    %2881 = vmatpush2.bf16.msra.mxu0 0
    %2882 = vmatprep.subr.bf16.mxu0 0
    %2883 = vmatpush2.bf16.msra.mxu0 0
    %2884 = vmatprep.subr.bf16.mxu0 0
    %2885 = vmatpush2.bf16.msra.mxu0 0
    %2886 = vmatprep.subr.bf16.mxu0 0
    %2887 = vmatpush2.bf16.msra.mxu0 0
    %2888 = vmatprep.subr.bf16.mxu0 0
    %2889 = vmatpush2.bf16.msra.mxu0 0
    %2890 = vmatprep.subr.bf16.mxu0 0
    %2891 = vmatpush2.bf16.msra.mxu0 0
    %2892 = vmatprep.subr.bf16.mxu0 0
    %2893 = vmatpush2.bf16.msra.mxu0 0
    %2894 = vmatprep.subr.bf16.mxu0 0
    %2895 = vmatpush2.bf16.msra.mxu0 0
    %2896 = vmatprep.mubr.bf16.mxu0 0
    %2897 = vmatmul.mubr.bf16.gmra.mxu0 %v136
    %v2898 = vpop.f32.mrf.mxu0
    %v2899 = vadd.f32 %v2654, %v2898
    %v2900 = vpop.f32.mrf.mxu0
    %v2901 = vadd.f32 %v2658, %v2900
    %v2902 = vpop.f32.mrf.mxu0
    %v2903 = vpop.f32.mrf.mxu0
    %2904 = vdwg.mxu0
    %v2905 = vmax.f32 %v2858, 0.0
    %v2906 = vmax.f32 %v2860, 0.0
    %v2907 = vmax.f32 %v2899, 0.0
    %v2908 = vmax.f32 %v2901, 0.0
    %v2909 = vpack.c.bf16 %v2905, %v2905
    %v2910 = vpack.c.bf16 %v2906, %v2906
    %v2911 = vpack.c.bf16 %v2907, %v2907
    %v2912 = vpack.c.bf16 %v2908, %v2908
    %v2913 = vld [vmem:[#allocation7 + $0x800] sm:$0xff]
    %v2914 = vld [vmem:[#allocation7 + $0x808] sm:$0xff]
    %v2915 = vld [vmem:[#allocation7 + $0x810] sm:$0xff]
    %v2916 = vld [vmem:[#allocation7 + $0x818] sm:$0xff]
    %v2917 = vld [vmem:[#allocation7 + $0x820] sm:$0xff]
    %v2918 = vld [vmem:[#allocation7 + $0x828] sm:$0xff]
    %v2919 = vld [vmem:[#allocation7 + $0x830] sm:$0xff]
    %v2920 = vld [vmem:[#allocation7 + $0x838] sm:$0xff]
    %v2921 = vld [vmem:[#allocation7 + $0x840] sm:$0xff]
    %v2922 = vld [vmem:[#allocation7 + $0x848] sm:$0xff]
    %v2923 = vld [vmem:[#allocation7 + $0x850] sm:$0xff]
    %v2924 = vld [vmem:[#allocation7 + $0x858] sm:$0xff]
    %v2925 = vld [vmem:[#allocation7 + $0x860] sm:$0xff]
    %v2926 = vld [vmem:[#allocation7 + $0x868] sm:$0xff]
    %v2927 = vld [vmem:[#allocation7 + $0x870] sm:$0xff]
    %v2928 = vld [vmem:[#allocation7 + $0x878] sm:$0xff]
    %v2929 = vld [vmem:[#allocation7 + $0x880] sm:$0xff]
    %v2930 = vld [vmem:[#allocation7 + $0x888] sm:$0xff]
    %v2931 = vld [vmem:[#allocation7 + $0x890] sm:$0xff]
    %v2932 = vld [vmem:[#allocation7 + $0x898] sm:$0xff]
    %v2933 = vld [vmem:[#allocation7 + $0x8a0] sm:$0xff]
    %v2934 = vld [vmem:[#allocation7 + $0x8a8] sm:$0xff]
    %v2935 = vld [vmem:[#allocation7 + $0x8b0] sm:$0xff]
    %v2936 = vld [vmem:[#allocation7 + $0x8b8] sm:$0xff]
    %v2937 = vld [vmem:[#allocation7 + $0x8c0] sm:$0xff]
    %v2938 = vld [vmem:[#allocation7 + $0x8c8] sm:$0xff]
    %v2939 = vld [vmem:[#allocation7 + $0x8d0] sm:$0xff]
    %v2940 = vld [vmem:[#allocation7 + $0x8d8] sm:$0xff]
    %v2941 = vld [vmem:[#allocation7 + $0x8e0] sm:$0xff]
    %v2942 = vld [vmem:[#allocation7 + $0x8e8] sm:$0xff]
    %v2943 = vld [vmem:[#allocation7 + $0x8f0] sm:$0xff]
    %v2944 = vld [vmem:[#allocation7 + $0x8f8] sm:$0xff]
    %v2945 = vld [vmem:[#allocation7 + $0x900] sm:$0xff]
    %v2946 = vld [vmem:[#allocation7 + $0x908] sm:$0xff]
    %v2947 = vld [vmem:[#allocation7 + $0x910] sm:$0xff]
    %v2948 = vld [vmem:[#allocation7 + $0x918] sm:$0xff]
    %v2949 = vld [vmem:[#allocation7 + $0x920] sm:$0xff]
    %v2950 = vld [vmem:[#allocation7 + $0x928] sm:$0xff]
    %v2951 = vld [vmem:[#allocation7 + $0x930] sm:$0xff]
    %v2952 = vld [vmem:[#allocation7 + $0x938] sm:$0xff]
    %v2953 = vld [vmem:[#allocation7 + $0x940] sm:$0xff]
    %v2954 = vld [vmem:[#allocation7 + $0x948] sm:$0xff]
    %v2955 = vld [vmem:[#allocation7 + $0x950] sm:$0xff]
    %v2956 = vld [vmem:[#allocation7 + $0x958] sm:$0xff]
    %v2957 = vld [vmem:[#allocation7 + $0x960] sm:$0xff]
    %v2958 = vld [vmem:[#allocation7 + $0x968] sm:$0xff]
    %v2959 = vld [vmem:[#allocation7 + $0x970] sm:$0xff]
    %v2960 = vld [vmem:[#allocation7 + $0x978] sm:$0xff]
    %v2961 = vld [vmem:[#allocation7 + $0x980] sm:$0xff]
    %v2962 = vld [vmem:[#allocation7 + $0x988] sm:$0xff]
    %v2963 = vld [vmem:[#allocation7 + $0x990] sm:$0xff]
    %v2964 = vld [vmem:[#allocation7 + $0x998] sm:$0xff]
    %v2965 = vld [vmem:[#allocation7 + $0x9a0] sm:$0xff]
    %v2966 = vld [vmem:[#allocation7 + $0x9a8] sm:$0xff]
    %v2967 = vld [vmem:[#allocation7 + $0x9b0] sm:$0xff]
    %v2968 = vld [vmem:[#allocation7 + $0x9b8] sm:$0xff]
    %v2969 = vld [vmem:[#allocation7 + $0x9c0] sm:$0xff]
    %v2970 = vld [vmem:[#allocation7 + $0x9c8] sm:$0xff]
    %v2971 = vld [vmem:[#allocation7 + $0x9d0] sm:$0xff]
    %v2972 = vld [vmem:[#allocation7 + $0x9d8] sm:$0xff]
    %v2973 = vld [vmem:[#allocation7 + $0x9e0] sm:$0xff]
    %v2974 = vld [vmem:[#allocation7 + $0x9e8] sm:$0xff]
    %v2975 = vld [vmem:[#allocation7 + $0x9f0] sm:$0xff]
    %v2976 = vld [vmem:[#allocation7 + $0x9f8] sm:$0xff]
    %v2977 = vld [vmem:[#allocation7 + $0xa00] sm:$0xff]
    %v2978 = vld [vmem:[#allocation7 + $0xa08] sm:$0xff]
    %v2979 = vld [vmem:[#allocation7 + $0xa10] sm:$0xff]
    %v2980 = vld [vmem:[#allocation7 + $0xa18] sm:$0xff]
    %v2981 = vld [vmem:[#allocation7 + $0xa20] sm:$0xff]
    %v2982 = vld [vmem:[#allocation7 + $0xa28] sm:$0xff]
    %v2983 = vld [vmem:[#allocation7 + $0xa30] sm:$0xff]
    %v2984 = vld [vmem:[#allocation7 + $0xa38] sm:$0xff]
    %v2985 = vld [vmem:[#allocation7 + $0xa40] sm:$0xff]
    %v2986 = vld [vmem:[#allocation7 + $0xa48] sm:$0xff]
    %v2987 = vld [vmem:[#allocation7 + $0xa50] sm:$0xff]
    %v2988 = vld [vmem:[#allocation7 + $0xa58] sm:$0xff]
    %v2989 = vld [vmem:[#allocation7 + $0xa60] sm:$0xff]
    %v2990 = vld [vmem:[#allocation7 + $0xa68] sm:$0xff]
    %v2991 = vld [vmem:[#allocation7 + $0xa70] sm:$0xff]
    %v2992 = vld [vmem:[#allocation7 + $0xa78] sm:$0xff]
    %v2993 = vld [vmem:[#allocation7 + $0xa80] sm:$0xff]
    %v2994 = vld [vmem:[#allocation7 + $0xa88] sm:$0xff]
    %v2995 = vld [vmem:[#allocation7 + $0xa90] sm:$0xff]
    %v2996 = vld [vmem:[#allocation7 + $0xa98] sm:$0xff]
    %v2997 = vld [vmem:[#allocation7 + $0xaa0] sm:$0xff]
    %v2998 = vld [vmem:[#allocation7 + $0xaa8] sm:$0xff]
    %v2999 = vld [vmem:[#allocation7 + $0xab0] sm:$0xff]
    %v3000 = vld [vmem:[#allocation7 + $0xab8] sm:$0xff]
    %v3001 = vld [vmem:[#allocation7 + $0xac0] sm:$0xff]
    %v3002 = vld [vmem:[#allocation7 + $0xac8] sm:$0xff]
    %v3003 = vld [vmem:[#allocation7 + $0xad0] sm:$0xff]
    %v3004 = vld [vmem:[#allocation7 + $0xad8] sm:$0xff]
    %v3005 = vld [vmem:[#allocation7 + $0xae0] sm:$0xff]
    %v3006 = vld [vmem:[#allocation7 + $0xae8] sm:$0xff]
    %v3007 = vld [vmem:[#allocation7 + $0xaf0] sm:$0xff]
    %v3008 = vld [vmem:[#allocation7 + $0xaf8] sm:$0xff]
    %v3009 = vld [vmem:[#allocation7 + $0xb00] sm:$0xff]
    %v3010 = vld [vmem:[#allocation7 + $0xb08] sm:$0xff]
    %v3011 = vld [vmem:[#allocation7 + $0xb10] sm:$0xff]
    %v3012 = vld [vmem:[#allocation7 + $0xb18] sm:$0xff]
    %v3013 = vld [vmem:[#allocation7 + $0xb20] sm:$0xff]
    %v3014 = vld [vmem:[#allocation7 + $0xb28] sm:$0xff]
    %v3015 = vld [vmem:[#allocation7 + $0xb30] sm:$0xff]
    %v3016 = vld [vmem:[#allocation7 + $0xb38] sm:$0xff]
    %v3017 = vld [vmem:[#allocation7 + $0xb40] sm:$0xff]
    %v3018 = vld [vmem:[#allocation7 + $0xb48] sm:$0xff]
    %v3019 = vld [vmem:[#allocation7 + $0xb50] sm:$0xff]
    %v3020 = vld [vmem:[#allocation7 + $0xb58] sm:$0xff]
    %v3021 = vld [vmem:[#allocation7 + $0xb60] sm:$0xff]
    %v3022 = vld [vmem:[#allocation7 + $0xb68] sm:$0xff]
    %v3023 = vld [vmem:[#allocation7 + $0xb70] sm:$0xff]
    %v3024 = vld [vmem:[#allocation7 + $0xb78] sm:$0xff]
    %v3025 = vld [vmem:[#allocation7 + $0xb80] sm:$0xff]
    %v3026 = vld [vmem:[#allocation7 + $0xb88] sm:$0xff]
    %v3027 = vld [vmem:[#allocation7 + $0xb90] sm:$0xff]
    %v3028 = vld [vmem:[#allocation7 + $0xb98] sm:$0xff]
    %v3029 = vld [vmem:[#allocation7 + $0xba0] sm:$0xff]
    %v3030 = vld [vmem:[#allocation7 + $0xba8] sm:$0xff]
    %v3031 = vld [vmem:[#allocation7 + $0xbb0] sm:$0xff]
    %v3032 = vld [vmem:[#allocation7 + $0xbb8] sm:$0xff]
    %v3033 = vld [vmem:[#allocation7 + $0xbc0] sm:$0xff]
    %v3034 = vld [vmem:[#allocation7 + $0xbc8] sm:$0xff]
    %v3035 = vld [vmem:[#allocation7 + $0xbd0] sm:$0xff]
    %v3036 = vld [vmem:[#allocation7 + $0xbd8] sm:$0xff]
    %v3037 = vld [vmem:[#allocation7 + $0xbe0] sm:$0xff]
    %v3038 = vld [vmem:[#allocation7 + $0xbe8] sm:$0xff]
    %v3039 = vld [vmem:[#allocation7 + $0xbf0] sm:$0xff]
    %v3040 = vld [vmem:[#allocation7 + $0xbf8] sm:$0xff]
    %v3169 = vunpack.c.l.b16 %v2913
    %v3170 = vunpack.c.h.b16 %v2913
    %v3171 = vunpack.c.l.b16 %v2914
    %v3172 = vunpack.c.h.b16 %v2914
    %v3173 = vunpack.c.l.b16 %v2915
    %v3174 = vunpack.c.h.b16 %v2915
    %v3175 = vunpack.c.l.b16 %v2916
    %v3176 = vunpack.c.h.b16 %v2916
    %v3177 = vunpack.c.l.b16 %v2917
    %v3178 = vunpack.c.h.b16 %v2917
    %v3179 = vunpack.c.l.b16 %v2918
    %v3180 = vunpack.c.h.b16 %v2918
    %v3181 = vunpack.c.l.b16 %v2919
    %v3182 = vunpack.c.h.b16 %v2919
    %v3183 = vunpack.c.l.b16 %v2920
    %v3184 = vunpack.c.h.b16 %v2920
    %v3185 = vunpack.c.l.b16 %v2921
    %v3186 = vunpack.c.h.b16 %v2921
    %v3187 = vunpack.c.l.b16 %v2922
    %v3188 = vunpack.c.h.b16 %v2922
    %v3189 = vunpack.c.l.b16 %v2923
    %v3190 = vunpack.c.h.b16 %v2923
    %v3191 = vunpack.c.l.b16 %v2924
    %v3192 = vunpack.c.h.b16 %v2924
    %v3193 = vunpack.c.l.b16 %v2925
    %v3194 = vunpack.c.h.b16 %v2925
    %v3195 = vunpack.c.l.b16 %v2926
    %v3196 = vunpack.c.h.b16 %v2926
    %v3197 = vunpack.c.l.b16 %v2927
    %v3198 = vunpack.c.h.b16 %v2927
    %v3199 = vunpack.c.l.b16 %v2928
    %v3200 = vunpack.c.h.b16 %v2928
    %v3201 = vunpack.c.l.b16 %v2929
    %v3202 = vunpack.c.h.b16 %v2929
    %v3203 = vunpack.c.l.b16 %v2930
    %v3204 = vunpack.c.h.b16 %v2930
    %v3205 = vunpack.c.l.b16 %v2931
    %v3206 = vunpack.c.h.b16 %v2931
    %v3207 = vunpack.c.l.b16 %v2932
    %v3208 = vunpack.c.h.b16 %v2932
    %v3209 = vunpack.c.l.b16 %v2933
    %v3210 = vunpack.c.h.b16 %v2933
    %v3211 = vunpack.c.l.b16 %v2934
    %v3212 = vunpack.c.h.b16 %v2934
    %v3213 = vunpack.c.l.b16 %v2935
    %v3214 = vunpack.c.h.b16 %v2935
    %v3215 = vunpack.c.l.b16 %v2936
    %v3216 = vunpack.c.h.b16 %v2936
    %v3217 = vunpack.c.l.b16 %v2937
    %v3218 = vunpack.c.h.b16 %v2937
    %v3219 = vunpack.c.l.b16 %v2938
    %v3220 = vunpack.c.h.b16 %v2938
    %v3221 = vunpack.c.l.b16 %v2939
    %v3222 = vunpack.c.h.b16 %v2939
    %v3223 = vunpack.c.l.b16 %v2940
    %v3224 = vunpack.c.h.b16 %v2940
    %v3225 = vunpack.c.l.b16 %v2941
    %v3226 = vunpack.c.h.b16 %v2941
    %v3227 = vunpack.c.l.b16 %v2942
    %v3228 = vunpack.c.h.b16 %v2942
    %v3229 = vunpack.c.l.b16 %v2943
    %v3230 = vunpack.c.h.b16 %v2943
    %v3231 = vunpack.c.l.b16 %v2944
    %v3232 = vunpack.c.h.b16 %v2944
    %v3233 = vunpack.c.l.b16 %v2945
    %v3234 = vunpack.c.h.b16 %v2945
    %v3235 = vunpack.c.l.b16 %v2946
    %v3236 = vunpack.c.h.b16 %v2946
    %v3237 = vunpack.c.l.b16 %v2947
    %v3238 = vunpack.c.h.b16 %v2947
    %v3239 = vunpack.c.l.b16 %v2948
    %v3240 = vunpack.c.h.b16 %v2948
    %v3241 = vunpack.c.l.b16 %v2949
    %v3242 = vunpack.c.h.b16 %v2949
    %v3243 = vunpack.c.l.b16 %v2950
    %v3244 = vunpack.c.h.b16 %v2950
    %v3245 = vunpack.c.l.b16 %v2951
    %v3246 = vunpack.c.h.b16 %v2951
    %v3247 = vunpack.c.l.b16 %v2952
    %v3248 = vunpack.c.h.b16 %v2952
    %v3249 = vunpack.c.l.b16 %v2953
    %v3250 = vunpack.c.h.b16 %v2953
    %v3251 = vunpack.c.l.b16 %v2954
    %v3252 = vunpack.c.h.b16 %v2954
    %v3253 = vunpack.c.l.b16 %v2955
    %v3254 = vunpack.c.h.b16 %v2955
    %v3255 = vunpack.c.l.b16 %v2956
    %v3256 = vunpack.c.h.b16 %v2956
    %v3257 = vunpack.c.l.b16 %v2957
    %v3258 = vunpack.c.h.b16 %v2957
    %v3259 = vunpack.c.l.b16 %v2958
    %v3260 = vunpack.c.h.b16 %v2958
    %v3261 = vunpack.c.l.b16 %v2959
    %v3262 = vunpack.c.h.b16 %v2959
    %v3263 = vunpack.c.l.b16 %v2960
    %v3264 = vunpack.c.h.b16 %v2960
    %v3265 = vunpack.c.l.b16 %v2961
    %v3266 = vunpack.c.h.b16 %v2961
    %v3267 = vunpack.c.l.b16 %v2962
    %v3268 = vunpack.c.h.b16 %v2962
    %v3269 = vunpack.c.l.b16 %v2963
    %v3270 = vunpack.c.h.b16 %v2963
    %v3271 = vunpack.c.l.b16 %v2964
    %v3272 = vunpack.c.h.b16 %v2964
    %v3273 = vunpack.c.l.b16 %v2965
    %v3274 = vunpack.c.h.b16 %v2965
    %v3275 = vunpack.c.l.b16 %v2966
    %v3276 = vunpack.c.h.b16 %v2966
    %v3277 = vunpack.c.l.b16 %v2967
    %v3278 = vunpack.c.h.b16 %v2967
    %v3279 = vunpack.c.l.b16 %v2968
    %v3280 = vunpack.c.h.b16 %v2968
    %v3281 = vunpack.c.l.b16 %v2969
    %v3282 = vunpack.c.h.b16 %v2969
    %v3283 = vunpack.c.l.b16 %v2970
    %v3284 = vunpack.c.h.b16 %v2970
    %v3285 = vunpack.c.l.b16 %v2971
    %v3286 = vunpack.c.h.b16 %v2971
    %v3287 = vunpack.c.l.b16 %v2972
    %v3288 = vunpack.c.h.b16 %v2972
    %v3289 = vunpack.c.l.b16 %v2973
    %v3290 = vunpack.c.h.b16 %v2973
    %v3291 = vunpack.c.l.b16 %v2974
    %v3292 = vunpack.c.h.b16 %v2974
    %v3293 = vunpack.c.l.b16 %v2975
    %v3294 = vunpack.c.h.b16 %v2975
    %v3295 = vunpack.c.l.b16 %v2976
    %v3296 = vunpack.c.h.b16 %v2976
    %v3297 = vunpack.c.l.b16 %v2977
    %v3298 = vunpack.c.h.b16 %v2977
    %v3299 = vunpack.c.l.b16 %v2978
    %v3300 = vunpack.c.h.b16 %v2978
    %v3301 = vunpack.c.l.b16 %v2979
    %v3302 = vunpack.c.h.b16 %v2979
    %v3303 = vunpack.c.l.b16 %v2980
    %v3304 = vunpack.c.h.b16 %v2980
    %v3305 = vunpack.c.l.b16 %v2981
    %v3306 = vunpack.c.h.b16 %v2981
    %v3307 = vunpack.c.l.b16 %v2982
    %v3308 = vunpack.c.h.b16 %v2982
    %v3309 = vunpack.c.l.b16 %v2983
    %v3310 = vunpack.c.h.b16 %v2983
    %v3311 = vunpack.c.l.b16 %v2984
    %v3312 = vunpack.c.h.b16 %v2984
    %v3313 = vunpack.c.l.b16 %v2985
    %v3314 = vunpack.c.h.b16 %v2985
    %v3315 = vunpack.c.l.b16 %v2986
    %v3316 = vunpack.c.h.b16 %v2986
    %v3317 = vunpack.c.l.b16 %v2987
    %v3318 = vunpack.c.h.b16 %v2987
    %v3319 = vunpack.c.l.b16 %v2988
    %v3320 = vunpack.c.h.b16 %v2988
    %v3321 = vunpack.c.l.b16 %v2989
    %v3322 = vunpack.c.h.b16 %v2989
    %v3323 = vunpack.c.l.b16 %v2990
    %v3324 = vunpack.c.h.b16 %v2990
    %v3325 = vunpack.c.l.b16 %v2991
    %v3326 = vunpack.c.h.b16 %v2991
    %v3327 = vunpack.c.l.b16 %v2992
    %v3328 = vunpack.c.h.b16 %v2992
    %v3329 = vunpack.c.l.b16 %v2993
    %v3330 = vunpack.c.h.b16 %v2993
    %v3331 = vunpack.c.l.b16 %v2994
    %v3332 = vunpack.c.h.b16 %v2994
    %v3333 = vunpack.c.l.b16 %v2995
    %v3334 = vunpack.c.h.b16 %v2995
    %v3335 = vunpack.c.l.b16 %v2996
    %v3336 = vunpack.c.h.b16 %v2996
    %v3337 = vunpack.c.l.b16 %v2997
    %v3338 = vunpack.c.h.b16 %v2997
    %v3339 = vunpack.c.l.b16 %v2998
    %v3340 = vunpack.c.h.b16 %v2998
    %v3341 = vunpack.c.l.b16 %v2999
    %v3342 = vunpack.c.h.b16 %v2999
    %v3343 = vunpack.c.l.b16 %v3000
    %v3344 = vunpack.c.h.b16 %v3000
    %v3345 = vunpack.c.l.b16 %v3001
    %v3346 = vunpack.c.h.b16 %v3001
    %v3347 = vunpack.c.l.b16 %v3002
    %v3348 = vunpack.c.h.b16 %v3002
    %v3349 = vunpack.c.l.b16 %v3003
    %v3350 = vunpack.c.h.b16 %v3003
    %v3351 = vunpack.c.l.b16 %v3004
    %v3352 = vunpack.c.h.b16 %v3004
    %v3353 = vunpack.c.l.b16 %v3005
    %v3354 = vunpack.c.h.b16 %v3005
    %v3355 = vunpack.c.l.b16 %v3006
    %v3356 = vunpack.c.h.b16 %v3006
    %v3357 = vunpack.c.l.b16 %v3007
    %v3358 = vunpack.c.h.b16 %v3007
    %v3359 = vunpack.c.l.b16 %v3008
    %v3360 = vunpack.c.h.b16 %v3008
    %v3361 = vunpack.c.l.b16 %v3009
    %v3362 = vunpack.c.h.b16 %v3009
    %v3363 = vunpack.c.l.b16 %v3010
    %v3364 = vunpack.c.h.b16 %v3010
    %v3365 = vunpack.c.l.b16 %v3011
    %v3366 = vunpack.c.h.b16 %v3011
    %v3367 = vunpack.c.l.b16 %v3012
    %v3368 = vunpack.c.h.b16 %v3012
    %v3369 = vunpack.c.l.b16 %v3013
    %v3370 = vunpack.c.h.b16 %v3013
    %v3371 = vunpack.c.l.b16 %v3014
    %v3372 = vunpack.c.h.b16 %v3014
    %v3373 = vunpack.c.l.b16 %v3015
    %v3374 = vunpack.c.h.b16 %v3015
    %v3375 = vunpack.c.l.b16 %v3016
    %v3376 = vunpack.c.h.b16 %v3016
    %v3377 = vunpack.c.l.b16 %v3017
    %v3378 = vunpack.c.h.b16 %v3017
    %v3379 = vunpack.c.l.b16 %v3018
    %v3380 = vunpack.c.h.b16 %v3018
    %v3381 = vunpack.c.l.b16 %v3019
    %v3382 = vunpack.c.h.b16 %v3019
    %v3383 = vunpack.c.l.b16 %v3020
    %v3384 = vunpack.c.h.b16 %v3020
    %v3385 = vunpack.c.l.b16 %v3021
    %v3386 = vunpack.c.h.b16 %v3021
    %v3387 = vunpack.c.l.b16 %v3022
    %v3388 = vunpack.c.h.b16 %v3022
    %v3389 = vunpack.c.l.b16 %v3023
    %v3390 = vunpack.c.h.b16 %v3023
    %v3391 = vunpack.c.l.b16 %v3024
    %v3392 = vunpack.c.h.b16 %v3024
    %v3393 = vunpack.c.l.b16 %v3025
    %v3394 = vunpack.c.h.b16 %v3025
    %v3395 = vunpack.c.l.b16 %v3026
    %v3396 = vunpack.c.h.b16 %v3026
    %v3397 = vunpack.c.l.b16 %v3027
    %v3398 = vunpack.c.h.b16 %v3027
    %v3399 = vunpack.c.l.b16 %v3028
    %v3400 = vunpack.c.h.b16 %v3028
    %v3401 = vunpack.c.l.b16 %v3029
    %v3402 = vunpack.c.h.b16 %v3029
    %v3403 = vunpack.c.l.b16 %v3030
    %v3404 = vunpack.c.h.b16 %v3030
    %v3405 = vunpack.c.l.b16 %v3031
    %v3406 = vunpack.c.h.b16 %v3031
    %v3407 = vunpack.c.l.b16 %v3032
    %v3408 = vunpack.c.h.b16 %v3032
    %v3409 = vunpack.c.l.b16 %v3033
    %v3410 = vunpack.c.h.b16 %v3033
    %v3411 = vunpack.c.l.b16 %v3034
    %v3412 = vunpack.c.h.b16 %v3034
    %v3413 = vunpack.c.l.b16 %v3035
    %v3414 = vunpack.c.h.b16 %v3035
    %v3415 = vunpack.c.l.b16 %v3036
    %v3416 = vunpack.c.h.b16 %v3036
    %v3417 = vunpack.c.l.b16 %v3037
    %v3418 = vunpack.c.h.b16 %v3037
    %v3419 = vunpack.c.l.b16 %v3038
    %v3420 = vunpack.c.h.b16 %v3038
    %v3421 = vunpack.c.l.b16 %v3039
    %v3422 = vunpack.c.h.b16 %v3039
    %v3423 = vunpack.c.l.b16 %v3040
    %v3424 = vunpack.c.h.b16 %v3040
    %v3425 = vpack.c.b16 %v3173, %v3169
    %v3426 = vpack.c.b16 %v3174, %v3170
    %v3427 = vpack.c.b16 %v3175, %v3171
    %v3428 = vpack.c.b16 %v3176, %v3172
    %v3429 = vpack.c.b16 %v3181, %v3177
    %v3430 = vpack.c.b16 %v3182, %v3178
    %v3431 = vpack.c.b16 %v3183, %v3179
    %v3432 = vpack.c.b16 %v3184, %v3180
    %v3433 = vpack.c.b16 %v3189, %v3185
    %v3434 = vpack.c.b16 %v3190, %v3186
    %v3435 = vpack.c.b16 %v3191, %v3187
    %v3436 = vpack.c.b16 %v3192, %v3188
    %v3437 = vpack.c.b16 %v3197, %v3193
    %v3438 = vpack.c.b16 %v3198, %v3194
    %v3439 = vpack.c.b16 %v3199, %v3195
    %v3440 = vpack.c.b16 %v3200, %v3196
    %v3441 = vpack.c.b16 %v3205, %v3201
    %v3442 = vpack.c.b16 %v3206, %v3202
    %v3443 = vpack.c.b16 %v3207, %v3203
    %v3444 = vpack.c.b16 %v3208, %v3204
    %v3445 = vpack.c.b16 %v3213, %v3209
    %v3446 = vpack.c.b16 %v3214, %v3210
    %v3447 = vpack.c.b16 %v3215, %v3211
    %v3448 = vpack.c.b16 %v3216, %v3212
    %v3449 = vpack.c.b16 %v3221, %v3217
    %v3450 = vpack.c.b16 %v3222, %v3218
    %v3451 = vpack.c.b16 %v3223, %v3219
    %v3452 = vpack.c.b16 %v3224, %v3220
    %v3453 = vpack.c.b16 %v3229, %v3225
    %v3454 = vpack.c.b16 %v3230, %v3226
    %v3455 = vpack.c.b16 %v3231, %v3227
    %v3456 = vpack.c.b16 %v3232, %v3228
    %v3457 = vpack.c.b16 %v3237, %v3233
    %v3458 = vpack.c.b16 %v3238, %v3234
    %v3459 = vpack.c.b16 %v3239, %v3235
    %v3460 = vpack.c.b16 %v3240, %v3236
    %v3461 = vpack.c.b16 %v3245, %v3241
    %v3462 = vpack.c.b16 %v3246, %v3242
    %v3463 = vpack.c.b16 %v3247, %v3243
    %v3464 = vpack.c.b16 %v3248, %v3244
    %v3465 = vpack.c.b16 %v3253, %v3249
    %v3466 = vpack.c.b16 %v3254, %v3250
    %v3467 = vpack.c.b16 %v3255, %v3251
    %v3468 = vpack.c.b16 %v3256, %v3252
    %v3469 = vpack.c.b16 %v3261, %v3257
    %v3470 = vpack.c.b16 %v3262, %v3258
    %v3471 = vpack.c.b16 %v3263, %v3259
    %v3472 = vpack.c.b16 %v3264, %v3260
    %v3473 = vpack.c.b16 %v3269, %v3265
    %v3474 = vpack.c.b16 %v3270, %v3266
    %v3475 = vpack.c.b16 %v3271, %v3267
    %v3476 = vpack.c.b16 %v3272, %v3268
    %v3477 = vpack.c.b16 %v3277, %v3273
    %v3478 = vpack.c.b16 %v3278, %v3274
    %v3479 = vpack.c.b16 %v3279, %v3275
    %v3480 = vpack.c.b16 %v3280, %v3276
    %v3481 = vpack.c.b16 %v3285, %v3281
    %v3482 = vpack.c.b16 %v3286, %v3282
    %v3483 = vpack.c.b16 %v3287, %v3283
    %v3484 = vpack.c.b16 %v3288, %v3284
    %v3485 = vpack.c.b16 %v3293, %v3289
    %v3486 = vpack.c.b16 %v3294, %v3290
    %v3487 = vpack.c.b16 %v3295, %v3291
    %v3488 = vpack.c.b16 %v3296, %v3292
    %v3489 = vpack.c.b16 %v3301, %v3297
    %v3490 = vpack.c.b16 %v3302, %v3298
    %v3491 = vpack.c.b16 %v3303, %v3299
    %v3492 = vpack.c.b16 %v3304, %v3300
    %v3493 = vpack.c.b16 %v3309, %v3305
    %v3494 = vpack.c.b16 %v3310, %v3306
    %v3495 = vpack.c.b16 %v3311, %v3307
    %v3496 = vpack.c.b16 %v3312, %v3308
    %v3497 = vpack.c.b16 %v3317, %v3313
    %v3498 = vpack.c.b16 %v3318, %v3314
    %v3499 = vpack.c.b16 %v3319, %v3315
    %v3500 = vpack.c.b16 %v3320, %v3316
    %v3501 = vpack.c.b16 %v3325, %v3321
    %v3502 = vpack.c.b16 %v3326, %v3322
    %v3503 = vpack.c.b16 %v3327, %v3323
    %v3504 = vpack.c.b16 %v3328, %v3324
    %v3505 = vpack.c.b16 %v3333, %v3329
    %v3506 = vpack.c.b16 %v3334, %v3330
    %v3507 = vpack.c.b16 %v3335, %v3331
    %v3508 = vpack.c.b16 %v3336, %v3332
    %v3509 = vpack.c.b16 %v3341, %v3337
    %v3510 = vpack.c.b16 %v3342, %v3338
    %v3511 = vpack.c.b16 %v3343, %v3339
    %v3512 = vpack.c.b16 %v3344, %v3340
    %v3513 = vpack.c.b16 %v3349, %v3345
    %v3514 = vpack.c.b16 %v3350, %v3346
    %v3515 = vpack.c.b16 %v3351, %v3347
    %v3516 = vpack.c.b16 %v3352, %v3348
    %v3517 = vpack.c.b16 %v3357, %v3353
    %v3518 = vpack.c.b16 %v3358, %v3354
    %v3519 = vpack.c.b16 %v3359, %v3355
    %v3520 = vpack.c.b16 %v3360, %v3356
    %v3521 = vpack.c.b16 %v3365, %v3361
    %v3522 = vpack.c.b16 %v3366, %v3362
    %v3523 = vpack.c.b16 %v3367, %v3363
    %v3524 = vpack.c.b16 %v3368, %v3364
    %v3525 = vpack.c.b16 %v3373, %v3369
    %v3526 = vpack.c.b16 %v3374, %v3370
    %v3527 = vpack.c.b16 %v3375, %v3371
    %v3528 = vpack.c.b16 %v3376, %v3372
    %v3529 = vpack.c.b16 %v3381, %v3377
    %v3530 = vpack.c.b16 %v3382, %v3378
    %v3531 = vpack.c.b16 %v3383, %v3379
    %v3532 = vpack.c.b16 %v3384, %v3380
    %v3533 = vpack.c.b16 %v3389, %v3385
    %v3534 = vpack.c.b16 %v3390, %v3386
    %v3535 = vpack.c.b16 %v3391, %v3387
    %v3536 = vpack.c.b16 %v3392, %v3388
    %v3537 = vpack.c.b16 %v3397, %v3393
    %v3538 = vpack.c.b16 %v3398, %v3394
    %v3539 = vpack.c.b16 %v3399, %v3395
    %v3540 = vpack.c.b16 %v3400, %v3396
    %v3541 = vpack.c.b16 %v3405, %v3401
    %v3542 = vpack.c.b16 %v3406, %v3402
    %v3543 = vpack.c.b16 %v3407, %v3403
    %v3544 = vpack.c.b16 %v3408, %v3404
    %v3545 = vpack.c.b16 %v3413, %v3409
    %v3546 = vpack.c.b16 %v3414, %v3410
    %v3547 = vpack.c.b16 %v3415, %v3411
    %v3548 = vpack.c.b16 %v3416, %v3412
    %v3549 = vpack.c.b16 %v3421, %v3417
    %v3550 = vpack.c.b16 %v3422, %v3418
    %v3551 = vpack.c.b16 %v3423, %v3419
    %v3552 = vpack.c.b16 %v3424, %v3420
    %3681 = vmatprep.subr.bf16.mxu0 %v3454
    %3682 = vmatpush1.bf16.msra.mxu0 %v3453
    %3683 = vmatprep.subr.bf16.mxu0 %v3450
    %3684 = vmatpush1.bf16.msra.mxu0 %v3449
    %3685 = vmatprep.subr.bf16.mxu0 %v3446
    %3686 = vmatpush1.bf16.msra.mxu0 %v3445
    %3687 = vmatprep.subr.bf16.mxu0 %v3442
    %3688 = vmatpush1.bf16.msra.mxu0 %v3441
    %3689 = vmatprep.subr.bf16.mxu0 %v3438
    %3690 = vmatpush1.bf16.msra.mxu0 %v3437
    %3691 = vmatprep.subr.bf16.mxu0 %v3434
    %3692 = vmatpush1.bf16.msra.mxu0 %v3433
    %3693 = vmatprep.subr.bf16.mxu0 %v3430
    %3694 = vmatpush1.bf16.msra.mxu0 %v3429
    %3695 = vmatprep.subr.bf16.mxu0 %v3426
    %3696 = vmatpush1.bf16.msra.mxu0 %v3425
    %3697 = vmatprep.subr.bf16.mxu0 %v3486
    %3698 = vmatpush2.bf16.msra.mxu0 %v3485
    %3699 = vmatprep.subr.bf16.mxu0 %v3482
    %3700 = vmatpush2.bf16.msra.mxu0 %v3481
    %3701 = vmatprep.subr.bf16.mxu0 %v3478
    %3702 = vmatpush2.bf16.msra.mxu0 %v3477
    %3703 = vmatprep.subr.bf16.mxu0 %v3474
    %3704 = vmatpush2.bf16.msra.mxu0 %v3473
    %3705 = vmatprep.subr.bf16.mxu0 %v3470
    %3706 = vmatpush2.bf16.msra.mxu0 %v3469
    %3707 = vmatprep.subr.bf16.mxu0 %v3466
    %3708 = vmatpush2.bf16.msra.mxu0 %v3465
    %3709 = vmatprep.subr.bf16.mxu0 %v3462
    %3710 = vmatpush2.bf16.msra.mxu0 %v3461
    %3711 = vmatprep.subr.bf16.mxu0 %v3458
    %3712 = vmatpush2.bf16.msra.mxu0 %v3457
    %3713 = vmatprep.mubr.bf16.mxu0 %v2910
    %3714 = vmatmul.mubr.bf16.gmra.mxu0 %v2909
    %v3715 = vpop.f32.mrf.mxu0
    %v3716 = vadd.f32 0.0, %v3715
    %v3717 = vpop.f32.mrf.mxu0
    %v3718 = vadd.f32 0.0, %v3717
    %v3719 = vpop.f32.mrf.mxu0
    %v3720 = vpop.f32.mrf.mxu0
    %3721 = vdwg.mxu0
    %3722 = vmatprep.subr.bf16.mxu0 %v3518
    %3723 = vmatpush1.bf16.msra.mxu0 %v3517
    %3724 = vmatprep.subr.bf16.mxu0 %v3514
    %3725 = vmatpush1.bf16.msra.mxu0 %v3513
    %3726 = vmatprep.subr.bf16.mxu0 %v3510
    %3727 = vmatpush1.bf16.msra.mxu0 %v3509
    %3728 = vmatprep.subr.bf16.mxu0 %v3506
    %3729 = vmatpush1.bf16.msra.mxu0 %v3505
    %3730 = vmatprep.subr.bf16.mxu0 %v3502
    %3731 = vmatpush1.bf16.msra.mxu0 %v3501
    %3732 = vmatprep.subr.bf16.mxu0 %v3498
    %3733 = vmatpush1.bf16.msra.mxu0 %v3497
    %3734 = vmatprep.subr.bf16.mxu0 %v3494
    %3735 = vmatpush1.bf16.msra.mxu0 %v3493
    %3736 = vmatprep.subr.bf16.mxu0 %v3490
    %3737 = vmatpush1.bf16.msra.mxu0 %v3489
    %3738 = vmatprep.subr.bf16.mxu0 %v3550
    %3739 = vmatpush2.bf16.msra.mxu0 %v3549
    %3740 = vmatprep.subr.bf16.mxu0 %v3546
    %3741 = vmatpush2.bf16.msra.mxu0 %v3545
    %3742 = vmatprep.subr.bf16.mxu0 %v3542
    %3743 = vmatpush2.bf16.msra.mxu0 %v3541
    %3744 = vmatprep.subr.bf16.mxu0 %v3538
    %3745 = vmatpush2.bf16.msra.mxu0 %v3537
    %3746 = vmatprep.subr.bf16.mxu0 %v3534
    %3747 = vmatpush2.bf16.msra.mxu0 %v3533
    %3748 = vmatprep.subr.bf16.mxu0 %v3530
    %3749 = vmatpush2.bf16.msra.mxu0 %v3529
    %3750 = vmatprep.subr.bf16.mxu0 %v3526
    %3751 = vmatpush2.bf16.msra.mxu0 %v3525
    %3752 = vmatprep.subr.bf16.mxu0 %v3522
    %3753 = vmatpush2.bf16.msra.mxu0 %v3521
    %3754 = vmatprep.mubr.bf16.mxu0 %v2912
    %3755 = vmatmul.mubr.bf16.gmra.mxu0 %v2911
    %v3756 = vpop.f32.mrf.mxu0
    %v3757 = vadd.f32 %v3716, %v3756
    %v3758 = vpop.f32.mrf.mxu0
    %v3759 = vadd.f32 %v3718, %v3758
    %v3760 = vpop.f32.mrf.mxu0
    %v3761 = vpop.f32.mrf.mxu0
    %3762 = vdwg.mxu0
    %3763 = vmatprep.subr.bf16.mxu0 %v3456
    %3764 = vmatpush1.bf16.msra.mxu0 %v3455
    %3765 = vmatprep.subr.bf16.mxu0 %v3452
    %3766 = vmatpush1.bf16.msra.mxu0 %v3451
    %3767 = vmatprep.subr.bf16.mxu0 %v3448
    %3768 = vmatpush1.bf16.msra.mxu0 %v3447
    %3769 = vmatprep.subr.bf16.mxu0 %v3444
    %3770 = vmatpush1.bf16.msra.mxu0 %v3443
    %3771 = vmatprep.subr.bf16.mxu0 %v3440
    %3772 = vmatpush1.bf16.msra.mxu0 %v3439
    %3773 = vmatprep.subr.bf16.mxu0 %v3436
    %3774 = vmatpush1.bf16.msra.mxu0 %v3435
    %3775 = vmatprep.subr.bf16.mxu0 %v3432
    %3776 = vmatpush1.bf16.msra.mxu0 %v3431
    %3777 = vmatprep.subr.bf16.mxu0 %v3428
    %3778 = vmatpush1.bf16.msra.mxu0 %v3427
    %3779 = vmatprep.subr.bf16.mxu0 %v3488
    %3780 = vmatpush2.bf16.msra.mxu0 %v3487
    %3781 = vmatprep.subr.bf16.mxu0 %v3484
    %3782 = vmatpush2.bf16.msra.mxu0 %v3483
    %3783 = vmatprep.subr.bf16.mxu0 %v3480
    %3784 = vmatpush2.bf16.msra.mxu0 %v3479
    %3785 = vmatprep.subr.bf16.mxu0 %v3476
    %3786 = vmatpush2.bf16.msra.mxu0 %v3475
    %3787 = vmatprep.subr.bf16.mxu0 %v3472
    %3788 = vmatpush2.bf16.msra.mxu0 %v3471
    %3789 = vmatprep.subr.bf16.mxu0 %v3468
    %3790 = vmatpush2.bf16.msra.mxu0 %v3467
    %3791 = vmatprep.subr.bf16.mxu0 %v3464
    %3792 = vmatpush2.bf16.msra.mxu0 %v3463
    %3793 = vmatprep.subr.bf16.mxu0 %v3460
    %3794 = vmatpush2.bf16.msra.mxu0 %v3459
    %3795 = vmatprep.mubr.bf16.mxu0 %v2910
    %3796 = vmatmul.mubr.bf16.gmra.mxu0 %v2909
    %v3797 = vpop.f32.mrf.mxu0
    %v3798 = vadd.f32 0.0, %v3797
    %v3799 = vpop.f32.mrf.mxu0
    %v3800 = vadd.f32 0.0, %v3799
    %v3801 = vpop.f32.mrf.mxu0
    %v3802 = vpop.f32.mrf.mxu0
    %3803 = vdwg.mxu0
    %3804 = vmatprep.subr.bf16.mxu0 %v3520
    %3805 = vmatpush1.bf16.msra.mxu0 %v3519
    %3806 = vmatprep.subr.bf16.mxu0 %v3516
    %3807 = vmatpush1.bf16.msra.mxu0 %v3515
    %3808 = vmatprep.subr.bf16.mxu0 %v3512
    %3809 = vmatpush1.bf16.msra.mxu0 %v3511
    %3810 = vmatprep.subr.bf16.mxu0 %v3508
    %3811 = vmatpush1.bf16.msra.mxu0 %v3507
    %3812 = vmatprep.subr.bf16.mxu0 %v3504
    %3813 = vmatpush1.bf16.msra.mxu0 %v3503
    %3814 = vmatprep.subr.bf16.mxu0 %v3500
    %3815 = vmatpush1.bf16.msra.mxu0 %v3499
    %3816 = vmatprep.subr.bf16.mxu0 %v3496
    %3817 = vmatpush1.bf16.msra.mxu0 %v3495
    %3818 = vmatprep.subr.bf16.mxu0 %v3492
    %3819 = vmatpush1.bf16.msra.mxu0 %v3491
    %3820 = vmatprep.subr.bf16.mxu0 %v3552
    %3821 = vmatpush2.bf16.msra.mxu0 %v3551
    %3822 = vmatprep.subr.bf16.mxu0 %v3548
    %3823 = vmatpush2.bf16.msra.mxu0 %v3547
    %3824 = vmatprep.subr.bf16.mxu0 %v3544
    %3825 = vmatpush2.bf16.msra.mxu0 %v3543
    %3826 = vmatprep.subr.bf16.mxu0 %v3540
    %3827 = vmatpush2.bf16.msra.mxu0 %v3539
    %3828 = vmatprep.subr.bf16.mxu0 %v3536
    %3829 = vmatpush2.bf16.msra.mxu0 %v3535
    %3830 = vmatprep.subr.bf16.mxu0 %v3532
    %3831 = vmatpush2.bf16.msra.mxu0 %v3531
    %3832 = vmatprep.subr.bf16.mxu0 %v3528
    %3833 = vmatpush2.bf16.msra.mxu0 %v3527
    %3834 = vmatprep.subr.bf16.mxu0 %v3524
    %3835 = vmatpush2.bf16.msra.mxu0 %v3523
    %3836 = vmatprep.mubr.bf16.mxu0 %v2912
    %3837 = vmatmul.mubr.bf16.gmra.mxu0 %v2911
    %v3838 = vpop.f32.mrf.mxu0
    %v3839 = vadd.f32 %v3798, %v3838
    %v3840 = vpop.f32.mrf.mxu0
    %v3841 = vadd.f32 %v3800, %v3840
    %v3842 = vpop.f32.mrf.mxu0
    %v3843 = vpop.f32.mrf.mxu0
    %3844 = vdwg.mxu0
    %v3845 = vadd.f32 %v2521, %v3757
    %v3846 = vadd.f32 %v2523, %v3759
    %v3847 = vadd.f32 %v2603, %v3839
    %v3848 = vadd.f32 %v2605, %v3841
    %v3849 = vld [vmem:[#allocation2 + $0x30] sm:$0xff]
    %v3850 = vld [vmem:[#allocation2 + $0x38] sm:$0xff]
    %v3851 = vld [vmem:[#allocation2 + $0x70] sm:$0xff]
    %v3852 = vld [vmem:[#allocation2 + $0x78] sm:$0xff]
    %v3853 = vld [vmem:[#allocation2 + $0xb0] sm:$0xff]
    %v3854 = vld [vmem:[#allocation2 + $0xb8] sm:$0xff]
    %v3855 = vld [vmem:[#allocation2 + $0xf0] sm:$0xff]
    %v3856 = vld [vmem:[#allocation2 + $0xf8] sm:$0xff]
    %v3857 = vld [vmem:[#allocation2 + $0x130] sm:$0xff]
    %v3858 = vld [vmem:[#allocation2 + $0x138] sm:$0xff]
    %v3859 = vld [vmem:[#allocation2 + $0x170] sm:$0xff]
    %v3860 = vld [vmem:[#allocation2 + $0x178] sm:$0xff]
    %v3861 = vld [vmem:[#allocation2 + $0x1b0] sm:$0xff]
    %v3862 = vld [vmem:[#allocation2 + $0x1b8] sm:$0xff]
    %v3863 = vld [vmem:[#allocation2 + $0x1f0] sm:$0xff]
    %v3864 = vld [vmem:[#allocation2 + $0x1f8] sm:$0xff]
    %v3865 = vld [vmem:[#allocation2 + $0x230] sm:$0xff]
    %v3866 = vld [vmem:[#allocation2 + $0x238] sm:$0xff]
    %v3867 = vld [vmem:[#allocation2 + $0x270] sm:$0xff]
    %v3868 = vld [vmem:[#allocation2 + $0x278] sm:$0xff]
    %v3869 = vld [vmem:[#allocation2 + $0x2b0] sm:$0xff]
    %v3870 = vld [vmem:[#allocation2 + $0x2b8] sm:$0xff]
    %v3871 = vld [vmem:[#allocation2 + $0x2f0] sm:$0xff]
    %v3872 = vld [vmem:[#allocation2 + $0x2f8] sm:$0xff]
    %v3873 = vld [vmem:[#allocation2 + $0x330] sm:$0xff]
    %v3874 = vld [vmem:[#allocation2 + $0x338] sm:$0xff]
    %v3875 = vld [vmem:[#allocation2 + $0x370] sm:$0xff]
    %v3876 = vld [vmem:[#allocation2 + $0x378] sm:$0xff]
    %v3877 = vld [vmem:[#allocation2 + $0x3b0] sm:$0xff]
    %v3878 = vld [vmem:[#allocation2 + $0x3b8] sm:$0xff]
    %v3879 = vld [vmem:[#allocation2 + $0x3f0] sm:$0xff]
    %v3880 = vld [vmem:[#allocation2 + $0x3f8] sm:$0xff]
    %v3881 = vld [vmem:[#allocation5 + $0xc] sm:$0xf]
    %v3883 = vlaneseq
    %v3884 = vshrl.u32 %v3883, 7
    %v3885 = vsub.s32 0, %v3884
    %v3886 = vrot.slane %v3881, %v3885
    %v3887 = vlaneseq
    %v3888 = vshrl.u32 %v3887, 7
    %v3889 = vsub.s32 1, %v3888
    %v3890 = vrot.slane %v3881, %v3889
    %v3891 = vlaneseq
    %v3892 = vshrl.u32 %v3891, 7
    %v3893 = vsub.s32 2, %v3892
    %v3894 = vrot.slane %v3881, %v3893
    %v3895 = vlaneseq
    %v3896 = vshrl.u32 %v3895, 7
    %v3897 = vsub.s32 3, %v3896
    %v3898 = vrot.slane %v3881, %v3897
    %v3935 = vunpack.c.l.b16 %v3849
    %v3936 = vunpack.c.h.b16 %v3849
    %v3937 = vunpack.c.l.b16 %v3850
    %v3938 = vunpack.c.h.b16 %v3850
    %v3939 = vunpack.c.l.b16 %v3851
    %v3940 = vunpack.c.h.b16 %v3851
    %v3941 = vunpack.c.l.b16 %v3852
    %v3942 = vunpack.c.h.b16 %v3852
    %v3943 = vunpack.c.l.b16 %v3853
    %v3944 = vunpack.c.h.b16 %v3853
    %v3945 = vunpack.c.l.b16 %v3854
    %v3946 = vunpack.c.h.b16 %v3854
    %v3947 = vunpack.c.l.b16 %v3855
    %v3948 = vunpack.c.h.b16 %v3855
    %v3949 = vunpack.c.l.b16 %v3856
    %v3950 = vunpack.c.h.b16 %v3856
    %v3951 = vunpack.c.l.b16 %v3857
    %v3952 = vunpack.c.h.b16 %v3857
    %v3953 = vunpack.c.l.b16 %v3858
    %v3954 = vunpack.c.h.b16 %v3858
    %v3955 = vunpack.c.l.b16 %v3859
    %v3956 = vunpack.c.h.b16 %v3859
    %v3957 = vunpack.c.l.b16 %v3860
    %v3958 = vunpack.c.h.b16 %v3860
    %v3959 = vunpack.c.l.b16 %v3861
    %v3960 = vunpack.c.h.b16 %v3861
    %v3961 = vunpack.c.l.b16 %v3862
    %v3962 = vunpack.c.h.b16 %v3862
    %v3963 = vunpack.c.l.b16 %v3863
    %v3964 = vunpack.c.h.b16 %v3863
    %v3965 = vunpack.c.l.b16 %v3864
    %v3966 = vunpack.c.h.b16 %v3864
    %v3967 = vunpack.c.l.b16 %v3865
    %v3968 = vunpack.c.h.b16 %v3865
    %v3969 = vunpack.c.l.b16 %v3866
    %v3970 = vunpack.c.h.b16 %v3866
    %v3971 = vunpack.c.l.b16 %v3867
    %v3972 = vunpack.c.h.b16 %v3867
    %v3973 = vunpack.c.l.b16 %v3868
    %v3974 = vunpack.c.h.b16 %v3868
    %v3975 = vunpack.c.l.b16 %v3869
    %v3976 = vunpack.c.h.b16 %v3869
    %v3977 = vunpack.c.l.b16 %v3870
    %v3978 = vunpack.c.h.b16 %v3870
    %v3979 = vunpack.c.l.b16 %v3871
    %v3980 = vunpack.c.h.b16 %v3871
    %v3981 = vunpack.c.l.b16 %v3872
    %v3982 = vunpack.c.h.b16 %v3872
    %v3983 = vunpack.c.l.b16 %v3873
    %v3984 = vunpack.c.h.b16 %v3873
    %v3985 = vunpack.c.l.b16 %v3874
    %v3986 = vunpack.c.h.b16 %v3874
    %v3987 = vunpack.c.l.b16 %v3875
    %v3988 = vunpack.c.h.b16 %v3875
    %v3989 = vunpack.c.l.b16 %v3876
    %v3990 = vunpack.c.h.b16 %v3876
    %v3991 = vunpack.c.l.b16 %v3877
    %v3992 = vunpack.c.h.b16 %v3877
    %v3993 = vunpack.c.l.b16 %v3878
    %v3994 = vunpack.c.h.b16 %v3878
    %v3995 = vunpack.c.l.b16 %v3879
    %v3996 = vunpack.c.h.b16 %v3879
    %v3997 = vunpack.c.l.b16 %v3880
    %v3998 = vunpack.c.h.b16 %v3880
    %v3999 = vpack.c.b16 %v3939, %v3935
    %v4000 = vpack.c.b16 %v3940, %v3936
    %v4001 = vpack.c.b16 %v3941, %v3937
    %v4002 = vpack.c.b16 %v3942, %v3938
    %v4003 = vpack.c.b16 %v3947, %v3943
    %v4004 = vpack.c.b16 %v3948, %v3944
    %v4005 = vpack.c.b16 %v3949, %v3945
    %v4006 = vpack.c.b16 %v3950, %v3946
    %v4007 = vpack.c.b16 %v3955, %v3951
    %v4008 = vpack.c.b16 %v3956, %v3952
    %v4009 = vpack.c.b16 %v3957, %v3953
    %v4010 = vpack.c.b16 %v3958, %v3954
    %v4011 = vpack.c.b16 %v3963, %v3959
    %v4012 = vpack.c.b16 %v3964, %v3960
    %v4013 = vpack.c.b16 %v3965, %v3961
    %v4014 = vpack.c.b16 %v3966, %v3962
    %v4015 = vpack.c.b16 %v3971, %v3967
    %v4016 = vpack.c.b16 %v3972, %v3968
    %v4017 = vpack.c.b16 %v3973, %v3969
    %v4018 = vpack.c.b16 %v3974, %v3970
    %v4019 = vpack.c.b16 %v3979, %v3975
    %v4020 = vpack.c.b16 %v3980, %v3976
    %v4021 = vpack.c.b16 %v3981, %v3977
    %v4022 = vpack.c.b16 %v3982, %v3978
    %v4023 = vpack.c.b16 %v3987, %v3983
    %v4024 = vpack.c.b16 %v3988, %v3984
    %v4025 = vpack.c.b16 %v3989, %v3985
    %v4026 = vpack.c.b16 %v3990, %v3986
    %v4027 = vpack.c.b16 %v3995, %v3991
    %v4028 = vpack.c.b16 %v3996, %v3992
    %v4029 = vpack.c.b16 %v3997, %v3993
    %v4030 = vpack.c.b16 %v3998, %v3994
    %4063 = vmatprep.subr.bf16.mxu0 %v4028
    %4064 = vmatpush1.bf16.msra.mxu0 %v4027
    %4065 = vmatprep.subr.bf16.mxu0 %v4024
    %4066 = vmatpush1.bf16.msra.mxu0 %v4023
    %4067 = vmatprep.subr.bf16.mxu0 %v4020
    %4068 = vmatpush1.bf16.msra.mxu0 %v4019
    %4069 = vmatprep.subr.bf16.mxu0 %v4016
    %4070 = vmatpush1.bf16.msra.mxu0 %v4015
    %4071 = vmatprep.subr.bf16.mxu0 %v4012
    %4072 = vmatpush1.bf16.msra.mxu0 %v4011
    %4073 = vmatprep.subr.bf16.mxu0 %v4008
    %4074 = vmatpush1.bf16.msra.mxu0 %v4007
    %4075 = vmatprep.subr.bf16.mxu0 %v4004
    %4076 = vmatpush1.bf16.msra.mxu0 %v4003
    %4077 = vmatprep.subr.bf16.mxu0 %v4000
    %4078 = vmatpush1.bf16.msra.mxu0 %v3999
    %4079 = vmatprep.subr.bf16.mxu0 0
    %4080 = vmatpush2.bf16.msra.mxu0 0
    %4081 = vmatprep.subr.bf16.mxu0 0
    %4082 = vmatpush2.bf16.msra.mxu0 0
    %4083 = vmatprep.subr.bf16.mxu0 0
    %4084 = vmatpush2.bf16.msra.mxu0 0
    %4085 = vmatprep.subr.bf16.mxu0 0
    %4086 = vmatpush2.bf16.msra.mxu0 0
    %4087 = vmatprep.subr.bf16.mxu0 0
    %4088 = vmatpush2.bf16.msra.mxu0 0
    %4089 = vmatprep.subr.bf16.mxu0 0
    %4090 = vmatpush2.bf16.msra.mxu0 0
    %4091 = vmatprep.subr.bf16.mxu0 0
    %4092 = vmatpush2.bf16.msra.mxu0 0
    %4093 = vmatprep.subr.bf16.mxu0 0
    %4094 = vmatpush2.bf16.msra.mxu0 0
    %4095 = vmatprep.mubr.bf16.mxu0 0
    %4096 = vmatmul.mubr.bf16.gmra.mxu0 %v136
    %v4097 = vpop.f32.mrf.mxu0
    %v4098 = vadd.f32 %v3886, %v4097
    %v4099 = vpop.f32.mrf.mxu0
    %v4100 = vadd.f32 %v3890, %v4099
    %v4101 = vpop.f32.mrf.mxu0
    %v4102 = vpop.f32.mrf.mxu0
    %4103 = vdwg.mxu0
    %4104 = vmatprep.subr.bf16.mxu0 %v4030
    %4105 = vmatpush1.bf16.msra.mxu0 %v4029
    %4106 = vmatprep.subr.bf16.mxu0 %v4026
    %4107 = vmatpush1.bf16.msra.mxu0 %v4025
    %4108 = vmatprep.subr.bf16.mxu0 %v4022
    %4109 = vmatpush1.bf16.msra.mxu0 %v4021
    %4110 = vmatprep.subr.bf16.mxu0 %v4018
    %4111 = vmatpush1.bf16.msra.mxu0 %v4017
    %4112 = vmatprep.subr.bf16.mxu0 %v4014
    %4113 = vmatpush1.bf16.msra.mxu0 %v4013
    %4114 = vmatprep.subr.bf16.mxu0 %v4010
    %4115 = vmatpush1.bf16.msra.mxu0 %v4009
    %4116 = vmatprep.subr.bf16.mxu0 %v4006
    %4117 = vmatpush1.bf16.msra.mxu0 %v4005
    %4118 = vmatprep.subr.bf16.mxu0 %v4002
    %4119 = vmatpush1.bf16.msra.mxu0 %v4001
    %4120 = vmatprep.subr.bf16.mxu0 0
    %4121 = vmatpush2.bf16.msra.mxu0 0
    %4122 = vmatprep.subr.bf16.mxu0 0
    %4123 = vmatpush2.bf16.msra.mxu0 0
    %4124 = vmatprep.subr.bf16.mxu0 0
    %4125 = vmatpush2.bf16.msra.mxu0 0
    %4126 = vmatprep.subr.bf16.mxu0 0
    %4127 = vmatpush2.bf16.msra.mxu0 0
    %4128 = vmatprep.subr.bf16.mxu0 0
    %4129 = vmatpush2.bf16.msra.mxu0 0
    %4130 = vmatprep.subr.bf16.mxu0 0
    %4131 = vmatpush2.bf16.msra.mxu0 0
    %4132 = vmatprep.subr.bf16.mxu0 0
    %4133 = vmatpush2.bf16.msra.mxu0 0
    %4134 = vmatprep.subr.bf16.mxu0 0
    %4135 = vmatpush2.bf16.msra.mxu0 0
    %4136 = vmatprep.mubr.bf16.mxu0 0
    %4137 = vmatmul.mubr.bf16.gmra.mxu0 %v136
    %v4138 = vpop.f32.mrf.mxu0
    %v4139 = vadd.f32 %v3894, %v4138
    %v4140 = vpop.f32.mrf.mxu0
    %v4141 = vadd.f32 %v3898, %v4140
    %v4142 = vpop.f32.mrf.mxu0
    %v4143 = vpop.f32.mrf.mxu0
    %4144 = vdwg.mxu0
    %v4145 = vmax.f32 %v4098, 0.0
    %v4146 = vmax.f32 %v4100, 0.0
    %v4147 = vmax.f32 %v4139, 0.0
    %v4148 = vmax.f32 %v4141, 0.0
    %v4149 = vpack.c.bf16 %v4145, %v4145
    %v4150 = vpack.c.bf16 %v4146, %v4146
    %v4151 = vpack.c.bf16 %v4147, %v4147
    %v4152 = vpack.c.bf16 %v4148, %v4148
    %v4153 = vld [vmem:[#allocation7 + $0xc00] sm:$0xff]
    %v4154 = vld [vmem:[#allocation7 + $0xc08] sm:$0xff]
    %v4155 = vld [vmem:[#allocation7 + $0xc10] sm:$0xff]
    %v4156 = vld [vmem:[#allocation7 + $0xc18] sm:$0xff]
    %v4157 = vld [vmem:[#allocation7 + $0xc20] sm:$0xff]
    %v4158 = vld [vmem:[#allocation7 + $0xc28] sm:$0xff]
    %v4159 = vld [vmem:[#allocation7 + $0xc30] sm:$0xff]
    %v4160 = vld [vmem:[#allocation7 + $0xc38] sm:$0xff]
    %v4161 = vld [vmem:[#allocation7 + $0xc40] sm:$0xff]
    %v4162 = vld [vmem:[#allocation7 + $0xc48] sm:$0xff]
    %v4163 = vld [vmem:[#allocation7 + $0xc50] sm:$0xff]
    %v4164 = vld [vmem:[#allocation7 + $0xc58] sm:$0xff]
    %v4165 = vld [vmem:[#allocation7 + $0xc60] sm:$0xff]
    %v4166 = vld [vmem:[#allocation7 + $0xc68] sm:$0xff]
    %v4167 = vld [vmem:[#allocation7 + $0xc70] sm:$0xff]
    %v4168 = vld [vmem:[#allocation7 + $0xc78] sm:$0xff]
    %v4169 = vld [vmem:[#allocation7 + $0xc80] sm:$0xff]
    %v4170 = vld [vmem:[#allocation7 + $0xc88] sm:$0xff]
    %v4171 = vld [vmem:[#allocation7 + $0xc90] sm:$0xff]
    %v4172 = vld [vmem:[#allocation7 + $0xc98] sm:$0xff]
    %v4173 = vld [vmem:[#allocation7 + $0xca0] sm:$0xff]
    %v4174 = vld [vmem:[#allocation7 + $0xca8] sm:$0xff]
    %v4175 = vld [vmem:[#allocation7 + $0xcb0] sm:$0xff]
    %v4176 = vld [vmem:[#allocation7 + $0xcb8] sm:$0xff]
    %v4177 = vld [vmem:[#allocation7 + $0xcc0] sm:$0xff]
    %v4178 = vld [vmem:[#allocation7 + $0xcc8] sm:$0xff]
    %v4179 = vld [vmem:[#allocation7 + $0xcd0] sm:$0xff]
    %v4180 = vld [vmem:[#allocation7 + $0xcd8] sm:$0xff]
    %v4181 = vld [vmem:[#allocation7 + $0xce0] sm:$0xff]
    %v4182 = vld [vmem:[#allocation7 + $0xce8] sm:$0xff]
    %v4183 = vld [vmem:[#allocation7 + $0xcf0] sm:$0xff]
    %v4184 = vld [vmem:[#allocation7 + $0xcf8] sm:$0xff]
    %v4185 = vld [vmem:[#allocation7 + $0xd00] sm:$0xff]
    %v4186 = vld [vmem:[#allocation7 + $0xd08] sm:$0xff]
    %v4187 = vld [vmem:[#allocation7 + $0xd10] sm:$0xff]
    %v4188 = vld [vmem:[#allocation7 + $0xd18] sm:$0xff]
    %v4189 = vld [vmem:[#allocation7 + $0xd20] sm:$0xff]
    %v4190 = vld [vmem:[#allocation7 + $0xd28] sm:$0xff]
    %v4191 = vld [vmem:[#allocation7 + $0xd30] sm:$0xff]
    %v4192 = vld [vmem:[#allocation7 + $0xd38] sm:$0xff]
    %v4193 = vld [vmem:[#allocation7 + $0xd40] sm:$0xff]
    %v4194 = vld [vmem:[#allocation7 + $0xd48] sm:$0xff]
    %v4195 = vld [vmem:[#allocation7 + $0xd50] sm:$0xff]
    %v4196 = vld [vmem:[#allocation7 + $0xd58] sm:$0xff]
    %v4197 = vld [vmem:[#allocation7 + $0xd60] sm:$0xff]
    %v4198 = vld [vmem:[#allocation7 + $0xd68] sm:$0xff]
    %v4199 = vld [vmem:[#allocation7 + $0xd70] sm:$0xff]
    %v4200 = vld [vmem:[#allocation7 + $0xd78] sm:$0xff]
    %v4201 = vld [vmem:[#allocation7 + $0xd80] sm:$0xff]
    %v4202 = vld [vmem:[#allocation7 + $0xd88] sm:$0xff]
    %v4203 = vld [vmem:[#allocation7 + $0xd90] sm:$0xff]
    %v4204 = vld [vmem:[#allocation7 + $0xd98] sm:$0xff]
    %v4205 = vld [vmem:[#allocation7 + $0xda0] sm:$0xff]
    %v4206 = vld [vmem:[#allocation7 + $0xda8] sm:$0xff]
    %v4207 = vld [vmem:[#allocation7 + $0xdb0] sm:$0xff]
    %v4208 = vld [vmem:[#allocation7 + $0xdb8] sm:$0xff]
    %v4209 = vld [vmem:[#allocation7 + $0xdc0] sm:$0xff]
    %v4210 = vld [vmem:[#allocation7 + $0xdc8] sm:$0xff]
    %v4211 = vld [vmem:[#allocation7 + $0xdd0] sm:$0xff]
    %v4212 = vld [vmem:[#allocation7 + $0xdd8] sm:$0xff]
    %v4213 = vld [vmem:[#allocation7 + $0xde0] sm:$0xff]
    %v4214 = vld [vmem:[#allocation7 + $0xde8] sm:$0xff]
    %v4215 = vld [vmem:[#allocation7 + $0xdf0] sm:$0xff]
    %v4216 = vld [vmem:[#allocation7 + $0xdf8] sm:$0xff]
    %v4217 = vld [vmem:[#allocation7 + $0xe00] sm:$0xff]
    %v4218 = vld [vmem:[#allocation7 + $0xe08] sm:$0xff]
    %v4219 = vld [vmem:[#allocation7 + $0xe10] sm:$0xff]
    %v4220 = vld [vmem:[#allocation7 + $0xe18] sm:$0xff]
    %v4221 = vld [vmem:[#allocation7 + $0xe20] sm:$0xff]
    %v4222 = vld [vmem:[#allocation7 + $0xe28] sm:$0xff]
    %v4223 = vld [vmem:[#allocation7 + $0xe30] sm:$0xff]
    %v4224 = vld [vmem:[#allocation7 + $0xe38] sm:$0xff]
    %v4225 = vld [vmem:[#allocation7 + $0xe40] sm:$0xff]
    %v4226 = vld [vmem:[#allocation7 + $0xe48] sm:$0xff]
    %v4227 = vld [vmem:[#allocation7 + $0xe50] sm:$0xff]
    %v4228 = vld [vmem:[#allocation7 + $0xe58] sm:$0xff]
    %v4229 = vld [vmem:[#allocation7 + $0xe60] sm:$0xff]
    %v4230 = vld [vmem:[#allocation7 + $0xe68] sm:$0xff]
    %v4231 = vld [vmem:[#allocation7 + $0xe70] sm:$0xff]
    %v4232 = vld [vmem:[#allocation7 + $0xe78] sm:$0xff]
    %v4233 = vld [vmem:[#allocation7 + $0xe80] sm:$0xff]
    %v4234 = vld [vmem:[#allocation7 + $0xe88] sm:$0xff]
    %v4235 = vld [vmem:[#allocation7 + $0xe90] sm:$0xff]
    %v4236 = vld [vmem:[#allocation7 + $0xe98] sm:$0xff]
    %v4237 = vld [vmem:[#allocation7 + $0xea0] sm:$0xff]
    %v4238 = vld [vmem:[#allocation7 + $0xea8] sm:$0xff]
    %v4239 = vld [vmem:[#allocation7 + $0xeb0] sm:$0xff]
    %v4240 = vld [vmem:[#allocation7 + $0xeb8] sm:$0xff]
    %v4241 = vld [vmem:[#allocation7 + $0xec0] sm:$0xff]
    %v4242 = vld [vmem:[#allocation7 + $0xec8] sm:$0xff]
    %v4243 = vld [vmem:[#allocation7 + $0xed0] sm:$0xff]
    %v4244 = vld [vmem:[#allocation7 + $0xed8] sm:$0xff]
    %v4245 = vld [vmem:[#allocation7 + $0xee0] sm:$0xff]
    %v4246 = vld [vmem:[#allocation7 + $0xee8] sm:$0xff]
    %v4247 = vld [vmem:[#allocation7 + $0xef0] sm:$0xff]
    %v4248 = vld [vmem:[#allocation7 + $0xef8] sm:$0xff]
    %v4249 = vld [vmem:[#allocation7 + $0xf00] sm:$0xff]
    %v4250 = vld [vmem:[#allocation7 + $0xf08] sm:$0xff]
    %v4251 = vld [vmem:[#allocation7 + $0xf10] sm:$0xff]
    %v4252 = vld [vmem:[#allocation7 + $0xf18] sm:$0xff]
    %v4253 = vld [vmem:[#allocation7 + $0xf20] sm:$0xff]
    %v4254 = vld [vmem:[#allocation7 + $0xf28] sm:$0xff]
    %v4255 = vld [vmem:[#allocation7 + $0xf30] sm:$0xff]
    %v4256 = vld [vmem:[#allocation7 + $0xf38] sm:$0xff]
    %v4257 = vld [vmem:[#allocation7 + $0xf40] sm:$0xff]
    %v4258 = vld [vmem:[#allocation7 + $0xf48] sm:$0xff]
    %v4259 = vld [vmem:[#allocation7 + $0xf50] sm:$0xff]
    %v4260 = vld [vmem:[#allocation7 + $0xf58] sm:$0xff]
    %v4261 = vld [vmem:[#allocation7 + $0xf60] sm:$0xff]
    %v4262 = vld [vmem:[#allocation7 + $0xf68] sm:$0xff]
    %v4263 = vld [vmem:[#allocation7 + $0xf70] sm:$0xff]
    %v4264 = vld [vmem:[#allocation7 + $0xf78] sm:$0xff]
    %v4265 = vld [vmem:[#allocation7 + $0xf80] sm:$0xff]
    %v4266 = vld [vmem:[#allocation7 + $0xf88] sm:$0xff]
    %v4267 = vld [vmem:[#allocation7 + $0xf90] sm:$0xff]
    %v4268 = vld [vmem:[#allocation7 + $0xf98] sm:$0xff]
    %v4269 = vld [vmem:[#allocation7 + $0xfa0] sm:$0xff]
    %v4270 = vld [vmem:[#allocation7 + $0xfa8] sm:$0xff]
    %v4271 = vld [vmem:[#allocation7 + $0xfb0] sm:$0xff]
    %v4272 = vld [vmem:[#allocation7 + $0xfb8] sm:$0xff]
    %v4273 = vld [vmem:[#allocation7 + $0xfc0] sm:$0xff]
    %v4274 = vld [vmem:[#allocation7 + $0xfc8] sm:$0xff]
    %v4275 = vld [vmem:[#allocation7 + $0xfd0] sm:$0xff]
    %v4276 = vld [vmem:[#allocation7 + $0xfd8] sm:$0xff]
    %v4277 = vld [vmem:[#allocation7 + $0xfe0] sm:$0xff]
    %v4278 = vld [vmem:[#allocation7 + $0xfe8] sm:$0xff]
    %v4279 = vld [vmem:[#allocation7 + $0xff0] sm:$0xff]
    %v4280 = vld [vmem:[#allocation7 + $0xff8] sm:$0xff]
    %v4409 = vunpack.c.l.b16 %v4153
    %v4410 = vunpack.c.h.b16 %v4153
    %v4411 = vunpack.c.l.b16 %v4154
    %v4412 = vunpack.c.h.b16 %v4154
    %v4413 = vunpack.c.l.b16 %v4155
    %v4414 = vunpack.c.h.b16 %v4155
    %v4415 = vunpack.c.l.b16 %v4156
    %v4416 = vunpack.c.h.b16 %v4156
    %v4417 = vunpack.c.l.b16 %v4157
    %v4418 = vunpack.c.h.b16 %v4157
    %v4419 = vunpack.c.l.b16 %v4158
    %v4420 = vunpack.c.h.b16 %v4158
    %v4421 = vunpack.c.l.b16 %v4159
    %v4422 = vunpack.c.h.b16 %v4159
    %v4423 = vunpack.c.l.b16 %v4160
    %v4424 = vunpack.c.h.b16 %v4160
    %v4425 = vunpack.c.l.b16 %v4161
    %v4426 = vunpack.c.h.b16 %v4161
    %v4427 = vunpack.c.l.b16 %v4162
    %v4428 = vunpack.c.h.b16 %v4162
    %v4429 = vunpack.c.l.b16 %v4163
    %v4430 = vunpack.c.h.b16 %v4163
    %v4431 = vunpack.c.l.b16 %v4164
    %v4432 = vunpack.c.h.b16 %v4164
    %v4433 = vunpack.c.l.b16 %v4165
    %v4434 = vunpack.c.h.b16 %v4165
    %v4435 = vunpack.c.l.b16 %v4166
    %v4436 = vunpack.c.h.b16 %v4166
    %v4437 = vunpack.c.l.b16 %v4167
    %v4438 = vunpack.c.h.b16 %v4167
    %v4439 = vunpack.c.l.b16 %v4168
    %v4440 = vunpack.c.h.b16 %v4168
    %v4441 = vunpack.c.l.b16 %v4169
    %v4442 = vunpack.c.h.b16 %v4169
    %v4443 = vunpack.c.l.b16 %v4170
    %v4444 = vunpack.c.h.b16 %v4170
    %v4445 = vunpack.c.l.b16 %v4171
    %v4446 = vunpack.c.h.b16 %v4171
    %v4447 = vunpack.c.l.b16 %v4172
    %v4448 = vunpack.c.h.b16 %v4172
    %v4449 = vunpack.c.l.b16 %v4173
    %v4450 = vunpack.c.h.b16 %v4173
    %v4451 = vunpack.c.l.b16 %v4174
    %v4452 = vunpack.c.h.b16 %v4174
    %v4453 = vunpack.c.l.b16 %v4175
    %v4454 = vunpack.c.h.b16 %v4175
    %v4455 = vunpack.c.l.b16 %v4176
    %v4456 = vunpack.c.h.b16 %v4176
    %v4457 = vunpack.c.l.b16 %v4177
    %v4458 = vunpack.c.h.b16 %v4177
    %v4459 = vunpack.c.l.b16 %v4178
    %v4460 = vunpack.c.h.b16 %v4178
    %v4461 = vunpack.c.l.b16 %v4179
    %v4462 = vunpack.c.h.b16 %v4179
    %v4463 = vunpack.c.l.b16 %v4180
    %v4464 = vunpack.c.h.b16 %v4180
    %v4465 = vunpack.c.l.b16 %v4181
    %v4466 = vunpack.c.h.b16 %v4181
    %v4467 = vunpack.c.l.b16 %v4182
    %v4468 = vunpack.c.h.b16 %v4182
    %v4469 = vunpack.c.l.b16 %v4183
    %v4470 = vunpack.c.h.b16 %v4183
    %v4471 = vunpack.c.l.b16 %v4184
    %v4472 = vunpack.c.h.b16 %v4184
    %v4473 = vunpack.c.l.b16 %v4185
    %v4474 = vunpack.c.h.b16 %v4185
    %v4475 = vunpack.c.l.b16 %v4186
    %v4476 = vunpack.c.h.b16 %v4186
    %v4477 = vunpack.c.l.b16 %v4187
    %v4478 = vunpack.c.h.b16 %v4187
    %v4479 = vunpack.c.l.b16 %v4188
    %v4480 = vunpack.c.h.b16 %v4188
    %v4481 = vunpack.c.l.b16 %v4189
    %v4482 = vunpack.c.h.b16 %v4189
    %v4483 = vunpack.c.l.b16 %v4190
    %v4484 = vunpack.c.h.b16 %v4190
    %v4485 = vunpack.c.l.b16 %v4191
    %v4486 = vunpack.c.h.b16 %v4191
    %v4487 = vunpack.c.l.b16 %v4192
    %v4488 = vunpack.c.h.b16 %v4192
    %v4489 = vunpack.c.l.b16 %v4193
    %v4490 = vunpack.c.h.b16 %v4193
    %v4491 = vunpack.c.l.b16 %v4194
    %v4492 = vunpack.c.h.b16 %v4194
    %v4493 = vunpack.c.l.b16 %v4195
    %v4494 = vunpack.c.h.b16 %v4195
    %v4495 = vunpack.c.l.b16 %v4196
    %v4496 = vunpack.c.h.b16 %v4196
    %v4497 = vunpack.c.l.b16 %v4197
    %v4498 = vunpack.c.h.b16 %v4197
    %v4499 = vunpack.c.l.b16 %v4198
    %v4500 = vunpack.c.h.b16 %v4198
    %v4501 = vunpack.c.l.b16 %v4199
    %v4502 = vunpack.c.h.b16 %v4199
    %v4503 = vunpack.c.l.b16 %v4200
    %v4504 = vunpack.c.h.b16 %v4200
    %v4505 = vunpack.c.l.b16 %v4201
    %v4506 = vunpack.c.h.b16 %v4201
    %v4507 = vunpack.c.l.b16 %v4202
    %v4508 = vunpack.c.h.b16 %v4202
    %v4509 = vunpack.c.l.b16 %v4203
    %v4510 = vunpack.c.h.b16 %v4203
    %v4511 = vunpack.c.l.b16 %v4204
    %v4512 = vunpack.c.h.b16 %v4204
    %v4513 = vunpack.c.l.b16 %v4205
    %v4514 = vunpack.c.h.b16 %v4205
    %v4515 = vunpack.c.l.b16 %v4206
    %v4516 = vunpack.c.h.b16 %v4206
    %v4517 = vunpack.c.l.b16 %v4207
    %v4518 = vunpack.c.h.b16 %v4207
    %v4519 = vunpack.c.l.b16 %v4208
    %v4520 = vunpack.c.h.b16 %v4208
    %v4521 = vunpack.c.l.b16 %v4209
    %v4522 = vunpack.c.h.b16 %v4209
    %v4523 = vunpack.c.l.b16 %v4210
    %v4524 = vunpack.c.h.b16 %v4210
    %v4525 = vunpack.c.l.b16 %v4211
    %v4526 = vunpack.c.h.b16 %v4211
    %v4527 = vunpack.c.l.b16 %v4212
    %v4528 = vunpack.c.h.b16 %v4212
    %v4529 = vunpack.c.l.b16 %v4213
    %v4530 = vunpack.c.h.b16 %v4213
    %v4531 = vunpack.c.l.b16 %v4214
    %v4532 = vunpack.c.h.b16 %v4214
    %v4533 = vunpack.c.l.b16 %v4215
    %v4534 = vunpack.c.h.b16 %v4215
    %v4535 = vunpack.c.l.b16 %v4216
    %v4536 = vunpack.c.h.b16 %v4216
    %v4537 = vunpack.c.l.b16 %v4217
    %v4538 = vunpack.c.h.b16 %v4217
    %v4539 = vunpack.c.l.b16 %v4218
    %v4540 = vunpack.c.h.b16 %v4218
    %v4541 = vunpack.c.l.b16 %v4219
    %v4542 = vunpack.c.h.b16 %v4219
    %v4543 = vunpack.c.l.b16 %v4220
    %v4544 = vunpack.c.h.b16 %v4220
    %v4545 = vunpack.c.l.b16 %v4221
    %v4546 = vunpack.c.h.b16 %v4221
    %v4547 = vunpack.c.l.b16 %v4222
    %v4548 = vunpack.c.h.b16 %v4222
    %v4549 = vunpack.c.l.b16 %v4223
    %v4550 = vunpack.c.h.b16 %v4223
    %v4551 = vunpack.c.l.b16 %v4224
    %v4552 = vunpack.c.h.b16 %v4224
    %v4553 = vunpack.c.l.b16 %v4225
    %v4554 = vunpack.c.h.b16 %v4225
    %v4555 = vunpack.c.l.b16 %v4226
    %v4556 = vunpack.c.h.b16 %v4226
    %v4557 = vunpack.c.l.b16 %v4227
    %v4558 = vunpack.c.h.b16 %v4227
    %v4559 = vunpack.c.l.b16 %v4228
    %v4560 = vunpack.c.h.b16 %v4228
    %v4561 = vunpack.c.l.b16 %v4229
    %v4562 = vunpack.c.h.b16 %v4229
    %v4563 = vunpack.c.l.b16 %v4230
    %v4564 = vunpack.c.h.b16 %v4230
    %v4565 = vunpack.c.l.b16 %v4231
    %v4566 = vunpack.c.h.b16 %v4231
    %v4567 = vunpack.c.l.b16 %v4232
    %v4568 = vunpack.c.h.b16 %v4232
    %v4569 = vunpack.c.l.b16 %v4233
    %v4570 = vunpack.c.h.b16 %v4233
    %v4571 = vunpack.c.l.b16 %v4234
    %v4572 = vunpack.c.h.b16 %v4234
    %v4573 = vunpack.c.l.b16 %v4235
    %v4574 = vunpack.c.h.b16 %v4235
    %v4575 = vunpack.c.l.b16 %v4236
    %v4576 = vunpack.c.h.b16 %v4236
    %v4577 = vunpack.c.l.b16 %v4237
    %v4578 = vunpack.c.h.b16 %v4237
    %v4579 = vunpack.c.l.b16 %v4238
    %v4580 = vunpack.c.h.b16 %v4238
    %v4581 = vunpack.c.l.b16 %v4239
    %v4582 = vunpack.c.h.b16 %v4239
    %v4583 = vunpack.c.l.b16 %v4240
    %v4584 = vunpack.c.h.b16 %v4240
    %v4585 = vunpack.c.l.b16 %v4241
    %v4586 = vunpack.c.h.b16 %v4241
    %v4587 = vunpack.c.l.b16 %v4242
    %v4588 = vunpack.c.h.b16 %v4242
    %v4589 = vunpack.c.l.b16 %v4243
    %v4590 = vunpack.c.h.b16 %v4243
    %v4591 = vunpack.c.l.b16 %v4244
    %v4592 = vunpack.c.h.b16 %v4244
    %v4593 = vunpack.c.l.b16 %v4245
    %v4594 = vunpack.c.h.b16 %v4245
    %v4595 = vunpack.c.l.b16 %v4246
    %v4596 = vunpack.c.h.b16 %v4246
    %v4597 = vunpack.c.l.b16 %v4247
    %v4598 = vunpack.c.h.b16 %v4247
    %v4599 = vunpack.c.l.b16 %v4248
    %v4600 = vunpack.c.h.b16 %v4248
    %v4601 = vunpack.c.l.b16 %v4249
    %v4602 = vunpack.c.h.b16 %v4249
    %v4603 = vunpack.c.l.b16 %v4250
    %v4604 = vunpack.c.h.b16 %v4250
    %v4605 = vunpack.c.l.b16 %v4251
    %v4606 = vunpack.c.h.b16 %v4251
    %v4607 = vunpack.c.l.b16 %v4252
    %v4608 = vunpack.c.h.b16 %v4252
    %v4609 = vunpack.c.l.b16 %v4253
    %v4610 = vunpack.c.h.b16 %v4253
    %v4611 = vunpack.c.l.b16 %v4254
    %v4612 = vunpack.c.h.b16 %v4254
    %v4613 = vunpack.c.l.b16 %v4255
    %v4614 = vunpack.c.h.b16 %v4255
    %v4615 = vunpack.c.l.b16 %v4256
    %v4616 = vunpack.c.h.b16 %v4256
    %v4617 = vunpack.c.l.b16 %v4257
    %v4618 = vunpack.c.h.b16 %v4257
    %v4619 = vunpack.c.l.b16 %v4258
    %v4620 = vunpack.c.h.b16 %v4258
    %v4621 = vunpack.c.l.b16 %v4259
    %v4622 = vunpack.c.h.b16 %v4259
    %v4623 = vunpack.c.l.b16 %v4260
    %v4624 = vunpack.c.h.b16 %v4260
    %v4625 = vunpack.c.l.b16 %v4261
    %v4626 = vunpack.c.h.b16 %v4261
    %v4627 = vunpack.c.l.b16 %v4262
    %v4628 = vunpack.c.h.b16 %v4262
    %v4629 = vunpack.c.l.b16 %v4263
    %v4630 = vunpack.c.h.b16 %v4263
    %v4631 = vunpack.c.l.b16 %v4264
    %v4632 = vunpack.c.h.b16 %v4264
    %v4633 = vunpack.c.l.b16 %v4265
    %v4634 = vunpack.c.h.b16 %v4265
    %v4635 = vunpack.c.l.b16 %v4266
    %v4636 = vunpack.c.h.b16 %v4266
    %v4637 = vunpack.c.l.b16 %v4267
    %v4638 = vunpack.c.h.b16 %v4267
    %v4639 = vunpack.c.l.b16 %v4268
    %v4640 = vunpack.c.h.b16 %v4268
    %v4641 = vunpack.c.l.b16 %v4269
    %v4642 = vunpack.c.h.b16 %v4269
    %v4643 = vunpack.c.l.b16 %v4270
    %v4644 = vunpack.c.h.b16 %v4270
    %v4645 = vunpack.c.l.b16 %v4271
    %v4646 = vunpack.c.h.b16 %v4271
    %v4647 = vunpack.c.l.b16 %v4272
    %v4648 = vunpack.c.h.b16 %v4272
    %v4649 = vunpack.c.l.b16 %v4273
    %v4650 = vunpack.c.h.b16 %v4273
    %v4651 = vunpack.c.l.b16 %v4274
    %v4652 = vunpack.c.h.b16 %v4274
    %v4653 = vunpack.c.l.b16 %v4275
    %v4654 = vunpack.c.h.b16 %v4275
    %v4655 = vunpack.c.l.b16 %v4276
    %v4656 = vunpack.c.h.b16 %v4276
    %v4657 = vunpack.c.l.b16 %v4277
    %v4658 = vunpack.c.h.b16 %v4277
    %v4659 = vunpack.c.l.b16 %v4278
    %v4660 = vunpack.c.h.b16 %v4278
    %v4661 = vunpack.c.l.b16 %v4279
    %v4662 = vunpack.c.h.b16 %v4279
    %v4663 = vunpack.c.l.b16 %v4280
    %v4664 = vunpack.c.h.b16 %v4280
    %v4665 = vpack.c.b16 %v4413, %v4409
    %v4666 = vpack.c.b16 %v4414, %v4410
    %v4667 = vpack.c.b16 %v4415, %v4411
    %v4668 = vpack.c.b16 %v4416, %v4412
    %v4669 = vpack.c.b16 %v4421, %v4417
    %v4670 = vpack.c.b16 %v4422, %v4418
    %v4671 = vpack.c.b16 %v4423, %v4419
    %v4672 = vpack.c.b16 %v4424, %v4420
    %v4673 = vpack.c.b16 %v4429, %v4425
    %v4674 = vpack.c.b16 %v4430, %v4426
    %v4675 = vpack.c.b16 %v4431, %v4427
    %v4676 = vpack.c.b16 %v4432, %v4428
    %v4677 = vpack.c.b16 %v4437, %v4433
    %v4678 = vpack.c.b16 %v4438, %v4434
    %v4679 = vpack.c.b16 %v4439, %v4435
    %v4680 = vpack.c.b16 %v4440, %v4436
    %v4681 = vpack.c.b16 %v4445, %v4441
    %v4682 = vpack.c.b16 %v4446, %v4442
    %v4683 = vpack.c.b16 %v4447, %v4443
    %v4684 = vpack.c.b16 %v4448, %v4444
    %v4685 = vpack.c.b16 %v4453, %v4449
    %v4686 = vpack.c.b16 %v4454, %v4450
    %v4687 = vpack.c.b16 %v4455, %v4451
    %v4688 = vpack.c.b16 %v4456, %v4452
    %v4689 = vpack.c.b16 %v4461, %v4457
    %v4690 = vpack.c.b16 %v4462, %v4458
    %v4691 = vpack.c.b16 %v4463, %v4459
    %v4692 = vpack.c.b16 %v4464, %v4460
    %v4693 = vpack.c.b16 %v4469, %v4465
    %v4694 = vpack.c.b16 %v4470, %v4466
    %v4695 = vpack.c.b16 %v4471, %v4467
    %v4696 = vpack.c.b16 %v4472, %v4468
    %v4697 = vpack.c.b16 %v4477, %v4473
    %v4698 = vpack.c.b16 %v4478, %v4474
    %v4699 = vpack.c.b16 %v4479, %v4475
    %v4700 = vpack.c.b16 %v4480, %v4476
    %v4701 = vpack.c.b16 %v4485, %v4481
    %v4702 = vpack.c.b16 %v4486, %v4482
    %v4703 = vpack.c.b16 %v4487, %v4483
    %v4704 = vpack.c.b16 %v4488, %v4484
    %v4705 = vpack.c.b16 %v4493, %v4489
    %v4706 = vpack.c.b16 %v4494, %v4490
    %v4707 = vpack.c.b16 %v4495, %v4491
    %v4708 = vpack.c.b16 %v4496, %v4492
    %v4709 = vpack.c.b16 %v4501, %v4497
    %v4710 = vpack.c.b16 %v4502, %v4498
    %v4711 = vpack.c.b16 %v4503, %v4499
    %v4712 = vpack.c.b16 %v4504, %v4500
    %v4713 = vpack.c.b16 %v4509, %v4505
    %v4714 = vpack.c.b16 %v4510, %v4506
    %v4715 = vpack.c.b16 %v4511, %v4507
    %v4716 = vpack.c.b16 %v4512, %v4508
    %v4717 = vpack.c.b16 %v4517, %v4513
    %v4718 = vpack.c.b16 %v4518, %v4514
    %v4719 = vpack.c.b16 %v4519, %v4515
    %v4720 = vpack.c.b16 %v4520, %v4516
    %v4721 = vpack.c.b16 %v4525, %v4521
    %v4722 = vpack.c.b16 %v4526, %v4522
    %v4723 = vpack.c.b16 %v4527, %v4523
    %v4724 = vpack.c.b16 %v4528, %v4524
    %v4725 = vpack.c.b16 %v4533, %v4529
    %v4726 = vpack.c.b16 %v4534, %v4530
    %v4727 = vpack.c.b16 %v4535, %v4531
    %v4728 = vpack.c.b16 %v4536, %v4532
    %v4729 = vpack.c.b16 %v4541, %v4537
    %v4730 = vpack.c.b16 %v4542, %v4538
    %v4731 = vpack.c.b16 %v4543, %v4539
    %v4732 = vpack.c.b16 %v4544, %v4540
    %v4733 = vpack.c.b16 %v4549, %v4545
    %v4734 = vpack.c.b16 %v4550, %v4546
    %v4735 = vpack.c.b16 %v4551, %v4547
    %v4736 = vpack.c.b16 %v4552, %v4548
    %v4737 = vpack.c.b16 %v4557, %v4553
    %v4738 = vpack.c.b16 %v4558, %v4554
    %v4739 = vpack.c.b16 %v4559, %v4555
    %v4740 = vpack.c.b16 %v4560, %v4556
    %v4741 = vpack.c.b16 %v4565, %v4561
    %v4742 = vpack.c.b16 %v4566, %v4562
    %v4743 = vpack.c.b16 %v4567, %v4563
    %v4744 = vpack.c.b16 %v4568, %v4564
    %v4745 = vpack.c.b16 %v4573, %v4569
    %v4746 = vpack.c.b16 %v4574, %v4570
    %v4747 = vpack.c.b16 %v4575, %v4571
    %v4748 = vpack.c.b16 %v4576, %v4572
    %v4749 = vpack.c.b16 %v4581, %v4577
    %v4750 = vpack.c.b16 %v4582, %v4578
    %v4751 = vpack.c.b16 %v4583, %v4579
    %v4752 = vpack.c.b16 %v4584, %v4580
    %v4753 = vpack.c.b16 %v4589, %v4585
    %v4754 = vpack.c.b16 %v4590, %v4586
    %v4755 = vpack.c.b16 %v4591, %v4587
    %v4756 = vpack.c.b16 %v4592, %v4588
    %v4757 = vpack.c.b16 %v4597, %v4593
    %v4758 = vpack.c.b16 %v4598, %v4594
    %v4759 = vpack.c.b16 %v4599, %v4595
    %v4760 = vpack.c.b16 %v4600, %v4596
    %v4761 = vpack.c.b16 %v4605, %v4601
    %v4762 = vpack.c.b16 %v4606, %v4602
    %v4763 = vpack.c.b16 %v4607, %v4603
    %v4764 = vpack.c.b16 %v4608, %v4604
    %v4765 = vpack.c.b16 %v4613, %v4609
    %v4766 = vpack.c.b16 %v4614, %v4610
    %v4767 = vpack.c.b16 %v4615, %v4611
    %v4768 = vpack.c.b16 %v4616, %v4612
    %v4769 = vpack.c.b16 %v4621, %v4617
    %v4770 = vpack.c.b16 %v4622, %v4618
    %v4771 = vpack.c.b16 %v4623, %v4619
    %v4772 = vpack.c.b16 %v4624, %v4620
    %v4773 = vpack.c.b16 %v4629, %v4625
    %v4774 = vpack.c.b16 %v4630, %v4626
    %v4775 = vpack.c.b16 %v4631, %v4627
    %v4776 = vpack.c.b16 %v4632, %v4628
    %v4777 = vpack.c.b16 %v4637, %v4633
    %v4778 = vpack.c.b16 %v4638, %v4634
    %v4779 = vpack.c.b16 %v4639, %v4635
    %v4780 = vpack.c.b16 %v4640, %v4636
    %v4781 = vpack.c.b16 %v4645, %v4641
    %v4782 = vpack.c.b16 %v4646, %v4642
    %v4783 = vpack.c.b16 %v4647, %v4643
    %v4784 = vpack.c.b16 %v4648, %v4644
    %v4785 = vpack.c.b16 %v4653, %v4649
    %v4786 = vpack.c.b16 %v4654, %v4650
    %v4787 = vpack.c.b16 %v4655, %v4651
    %v4788 = vpack.c.b16 %v4656, %v4652
    %v4789 = vpack.c.b16 %v4661, %v4657
    %v4790 = vpack.c.b16 %v4662, %v4658
    %v4791 = vpack.c.b16 %v4663, %v4659
    %v4792 = vpack.c.b16 %v4664, %v4660
    %4921 = vmatprep.subr.bf16.mxu0 %v4694
    %4922 = vmatpush1.bf16.msra.mxu0 %v4693
    %4923 = vmatprep.subr.bf16.mxu0 %v4690
    %4924 = vmatpush1.bf16.msra.mxu0 %v4689
    %4925 = vmatprep.subr.bf16.mxu0 %v4686
    %4926 = vmatpush1.bf16.msra.mxu0 %v4685
    %4927 = vmatprep.subr.bf16.mxu0 %v4682
    %4928 = vmatpush1.bf16.msra.mxu0 %v4681
    %4929 = vmatprep.subr.bf16.mxu0 %v4678
    %4930 = vmatpush1.bf16.msra.mxu0 %v4677
    %4931 = vmatprep.subr.bf16.mxu0 %v4674
    %4932 = vmatpush1.bf16.msra.mxu0 %v4673
    %4933 = vmatprep.subr.bf16.mxu0 %v4670
    %4934 = vmatpush1.bf16.msra.mxu0 %v4669
    %4935 = vmatprep.subr.bf16.mxu0 %v4666
    %4936 = vmatpush1.bf16.msra.mxu0 %v4665
    %4937 = vmatprep.subr.bf16.mxu0 %v4726
    %4938 = vmatpush2.bf16.msra.mxu0 %v4725
    %4939 = vmatprep.subr.bf16.mxu0 %v4722
    %4940 = vmatpush2.bf16.msra.mxu0 %v4721
    %4941 = vmatprep.subr.bf16.mxu0 %v4718
    %4942 = vmatpush2.bf16.msra.mxu0 %v4717
    %4943 = vmatprep.subr.bf16.mxu0 %v4714
    %4944 = vmatpush2.bf16.msra.mxu0 %v4713
    %4945 = vmatprep.subr.bf16.mxu0 %v4710
    %4946 = vmatpush2.bf16.msra.mxu0 %v4709
    %4947 = vmatprep.subr.bf16.mxu0 %v4706
    %4948 = vmatpush2.bf16.msra.mxu0 %v4705
    %4949 = vmatprep.subr.bf16.mxu0 %v4702
    %4950 = vmatpush2.bf16.msra.mxu0 %v4701
    %4951 = vmatprep.subr.bf16.mxu0 %v4698
    %4952 = vmatpush2.bf16.msra.mxu0 %v4697
    %4953 = vmatprep.mubr.bf16.mxu0 %v4150
    %4954 = vmatmul.mubr.bf16.gmra.mxu0 %v4149
    %v4955 = vpop.f32.mrf.mxu0
    %v4956 = vadd.f32 0.0, %v4955
    %v4957 = vpop.f32.mrf.mxu0
    %v4958 = vadd.f32 0.0, %v4957
    %v4959 = vpop.f32.mrf.mxu0
    %v4960 = vpop.f32.mrf.mxu0
    %4961 = vdwg.mxu0
    %4962 = vmatprep.subr.bf16.mxu0 %v4758
    %4963 = vmatpush1.bf16.msra.mxu0 %v4757
    %4964 = vmatprep.subr.bf16.mxu0 %v4754
    %4965 = vmatpush1.bf16.msra.mxu0 %v4753
    %4966 = vmatprep.subr.bf16.mxu0 %v4750
    %4967 = vmatpush1.bf16.msra.mxu0 %v4749
    %4968 = vmatprep.subr.bf16.mxu0 %v4746
    %4969 = vmatpush1.bf16.msra.mxu0 %v4745
    %4970 = vmatprep.subr.bf16.mxu0 %v4742
    %4971 = vmatpush1.bf16.msra.mxu0 %v4741
    %4972 = vmatprep.subr.bf16.mxu0 %v4738
    %4973 = vmatpush1.bf16.msra.mxu0 %v4737
    %4974 = vmatprep.subr.bf16.mxu0 %v4734
    %4975 = vmatpush1.bf16.msra.mxu0 %v4733
    %4976 = vmatprep.subr.bf16.mxu0 %v4730
    %4977 = vmatpush1.bf16.msra.mxu0 %v4729
    %4978 = vmatprep.subr.bf16.mxu0 %v4790
    %4979 = vmatpush2.bf16.msra.mxu0 %v4789
    %4980 = vmatprep.subr.bf16.mxu0 %v4786
    %4981 = vmatpush2.bf16.msra.mxu0 %v4785
    %4982 = vmatprep.subr.bf16.mxu0 %v4782
    %4983 = vmatpush2.bf16.msra.mxu0 %v4781
    %4984 = vmatprep.subr.bf16.mxu0 %v4778
    %4985 = vmatpush2.bf16.msra.mxu0 %v4777
    %4986 = vmatprep.subr.bf16.mxu0 %v4774
    %4987 = vmatpush2.bf16.msra.mxu0 %v4773
    %4988 = vmatprep.subr.bf16.mxu0 %v4770
    %4989 = vmatpush2.bf16.msra.mxu0 %v4769
    %4990 = vmatprep.subr.bf16.mxu0 %v4766
    %4991 = vmatpush2.bf16.msra.mxu0 %v4765
    %4992 = vmatprep.subr.bf16.mxu0 %v4762
    %4993 = vmatpush2.bf16.msra.mxu0 %v4761
    %4994 = vmatprep.mubr.bf16.mxu0 %v4152
    %4995 = vmatmul.mubr.bf16.gmra.mxu0 %v4151
    %v4996 = vpop.f32.mrf.mxu0
    %v4997 = vadd.f32 %v4956, %v4996
    %v4998 = vpop.f32.mrf.mxu0
    %v4999 = vadd.f32 %v4958, %v4998
    %v5000 = vpop.f32.mrf.mxu0
    %v5001 = vpop.f32.mrf.mxu0
    %5002 = vdwg.mxu0
    %5003 = vmatprep.subr.bf16.mxu0 %v4696
    %5004 = vmatpush1.bf16.msra.mxu0 %v4695
    %5005 = vmatprep.subr.bf16.mxu0 %v4692
    %5006 = vmatpush1.bf16.msra.mxu0 %v4691
    %5007 = vmatprep.subr.bf16.mxu0 %v4688
    %5008 = vmatpush1.bf16.msra.mxu0 %v4687
    %5009 = vmatprep.subr.bf16.mxu0 %v4684
    %5010 = vmatpush1.bf16.msra.mxu0 %v4683
    %5011 = vmatprep.subr.bf16.mxu0 %v4680
    %5012 = vmatpush1.bf16.msra.mxu0 %v4679
    %5013 = vmatprep.subr.bf16.mxu0 %v4676
    %5014 = vmatpush1.bf16.msra.mxu0 %v4675
    %5015 = vmatprep.subr.bf16.mxu0 %v4672
    %5016 = vmatpush1.bf16.msra.mxu0 %v4671
    %5017 = vmatprep.subr.bf16.mxu0 %v4668
    %5018 = vmatpush1.bf16.msra.mxu0 %v4667
    %5019 = vmatprep.subr.bf16.mxu0 %v4728
    %5020 = vmatpush2.bf16.msra.mxu0 %v4727
    %5021 = vmatprep.subr.bf16.mxu0 %v4724
    %5022 = vmatpush2.bf16.msra.mxu0 %v4723
    %5023 = vmatprep.subr.bf16.mxu0 %v4720
    %5024 = vmatpush2.bf16.msra.mxu0 %v4719
    %5025 = vmatprep.subr.bf16.mxu0 %v4716
    %5026 = vmatpush2.bf16.msra.mxu0 %v4715
    %5027 = vmatprep.subr.bf16.mxu0 %v4712
    %5028 = vmatpush2.bf16.msra.mxu0 %v4711
    %5029 = vmatprep.subr.bf16.mxu0 %v4708
    %5030 = vmatpush2.bf16.msra.mxu0 %v4707
    %5031 = vmatprep.subr.bf16.mxu0 %v4704
    %5032 = vmatpush2.bf16.msra.mxu0 %v4703
    %5033 = vmatprep.subr.bf16.mxu0 %v4700
    %5034 = vmatpush2.bf16.msra.mxu0 %v4699
    %5035 = vmatprep.mubr.bf16.mxu0 %v4150
    %5036 = vmatmul.mubr.bf16.gmra.mxu0 %v4149
    %v5037 = vpop.f32.mrf.mxu0
    %v5038 = vadd.f32 0.0, %v5037
    %v5039 = vpop.f32.mrf.mxu0
    %v5040 = vadd.f32 0.0, %v5039
    %v5041 = vpop.f32.mrf.mxu0
    %v5042 = vpop.f32.mrf.mxu0
    %5043 = vdwg.mxu0
    %5044 = vmatprep.subr.bf16.mxu0 %v4760
    %5045 = vmatpush1.bf16.msra.mxu0 %v4759
    %5046 = vmatprep.subr.bf16.mxu0 %v4756
    %5047 = vmatpush1.bf16.msra.mxu0 %v4755
    %5048 = vmatprep.subr.bf16.mxu0 %v4752
    %5049 = vmatpush1.bf16.msra.mxu0 %v4751
    %5050 = vmatprep.subr.bf16.mxu0 %v4748
    %5051 = vmatpush1.bf16.msra.mxu0 %v4747
    %5052 = vmatprep.subr.bf16.mxu0 %v4744
    %5053 = vmatpush1.bf16.msra.mxu0 %v4743
    %5054 = vmatprep.subr.bf16.mxu0 %v4740
    %5055 = vmatpush1.bf16.msra.mxu0 %v4739
    %5056 = vmatprep.subr.bf16.mxu0 %v4736
    %5057 = vmatpush1.bf16.msra.mxu0 %v4735
    %5058 = vmatprep.subr.bf16.mxu0 %v4732
    %5059 = vmatpush1.bf16.msra.mxu0 %v4731
    %5060 = vmatprep.subr.bf16.mxu0 %v4792
    %5061 = vmatpush2.bf16.msra.mxu0 %v4791
    %5062 = vmatprep.subr.bf16.mxu0 %v4788
    %5063 = vmatpush2.bf16.msra.mxu0 %v4787
    %5064 = vmatprep.subr.bf16.mxu0 %v4784
    %5065 = vmatpush2.bf16.msra.mxu0 %v4783
    %5066 = vmatprep.subr.bf16.mxu0 %v4780
    %5067 = vmatpush2.bf16.msra.mxu0 %v4779
    %5068 = vmatprep.subr.bf16.mxu0 %v4776
    %5069 = vmatpush2.bf16.msra.mxu0 %v4775
    %5070 = vmatprep.subr.bf16.mxu0 %v4772
    %5071 = vmatpush2.bf16.msra.mxu0 %v4771
    %5072 = vmatprep.subr.bf16.mxu0 %v4768
    %5073 = vmatpush2.bf16.msra.mxu0 %v4767
    %5074 = vmatprep.subr.bf16.mxu0 %v4764
    %5075 = vmatpush2.bf16.msra.mxu0 %v4763
    %5076 = vmatprep.mubr.bf16.mxu0 %v4152
    %5077 = vmatmul.mubr.bf16.gmra.mxu0 %v4151
    %v5078 = vpop.f32.mrf.mxu0
    %v5079 = vadd.f32 %v5038, %v5078
    %v5080 = vpop.f32.mrf.mxu0
    %v5081 = vadd.f32 %v5040, %v5080
    %v5082 = vpop.f32.mrf.mxu0
    %v5083 = vpop.f32.mrf.mxu0
    %5084 = vdwg.mxu0
    %v5085 = vadd.f32 %v3845, %v4997
    %v5086 = vadd.f32 %v3846, %v4999
    %v5087 = vadd.f32 %v3847, %v5079
    %v5088 = vadd.f32 %v3848, %v5081
    %v5089 = vld [vmem:[#allocation8] sm:$0xf]
    %v5091 = vlaneseq
    %v5092 = vshrl.u32 %v5091, 7
    %v5093 = vsub.s32 0, %v5092
    %v5094 = vrot.slane %v5089, %v5093
    %v5095 = vlaneseq
    %v5096 = vshrl.u32 %v5095, 7
    %v5097 = vsub.s32 1, %v5096
    %v5098 = vrot.slane %v5089, %v5097
    %v5099 = vlaneseq
    %v5100 = vshrl.u32 %v5099, 7
    %v5101 = vsub.s32 2, %v5100
    %v5102 = vrot.slane %v5089, %v5101
    %v5103 = vlaneseq
    %v5104 = vshrl.u32 %v5103, 7
    %v5105 = vsub.s32 3, %v5104
    %v5106 = vrot.slane %v5089, %v5105
    %v5111 = vadd.f32 %v5085, %v5094
    %v5112 = vadd.f32 %v5086, %v5098
    %v5113 = vadd.f32 %v5087, %v5102
    %v5114 = vadd.f32 %v5088, %v5106
    %v5115 = vmax.f32 %v5111, 0.0
    %v5116 = vmax.f32 %v5112, 0.0
    %v5117 = vmax.f32 %v5113, 0.0
    %v5118 = vmax.f32 %v5114, 0.0
    %v5119 = vpack.c.bf16 %v5115, %v5115
    %v5120 = vpack.c.bf16 %v5116, %v5116
    %v5121 = vpack.c.bf16 %v5117, %v5117
    %v5122 = vpack.c.bf16 %v5118, %v5118
    %v5123 = vld [vmem:[#allocation10] sm:$0xff]
    %v5124 = vld [vmem:[#allocation10 + $0x8] sm:$0xff]
    %v5125 = vld [vmem:[#allocation10 + $0x10] sm:$0xff]
    %v5126 = vld [vmem:[#allocation10 + $0x18] sm:$0xff]
    %v5127 = vld [vmem:[#allocation10 + $0x20] sm:$0xff]
    %v5128 = vld [vmem:[#allocation10 + $0x28] sm:$0xff]
    %v5129 = vld [vmem:[#allocation10 + $0x30] sm:$0xff]
    %v5130 = vld [vmem:[#allocation10 + $0x38] sm:$0xff]
    %v5131 = vld [vmem:[#allocation10 + $0x40] sm:$0xff]
    %v5132 = vld [vmem:[#allocation10 + $0x48] sm:$0xff]
    %v5133 = vld [vmem:[#allocation10 + $0x50] sm:$0xff]
    %v5134 = vld [vmem:[#allocation10 + $0x58] sm:$0xff]
    %v5135 = vld [vmem:[#allocation10 + $0x60] sm:$0xff]
    %v5136 = vld [vmem:[#allocation10 + $0x68] sm:$0xff]
    %v5137 = vld [vmem:[#allocation10 + $0x70] sm:$0xff]
    %v5138 = vld [vmem:[#allocation10 + $0x78] sm:$0xff]
    %v5139 = vld [vmem:[#allocation10 + $0x80] sm:$0xff]
    %v5140 = vld [vmem:[#allocation10 + $0x88] sm:$0xff]
    %v5141 = vld [vmem:[#allocation10 + $0x90] sm:$0xff]
    %v5142 = vld [vmem:[#allocation10 + $0x98] sm:$0xff]
    %v5143 = vld [vmem:[#allocation10 + $0xa0] sm:$0xff]
    %v5144 = vld [vmem:[#allocation10 + $0xa8] sm:$0xff]
    %v5145 = vld [vmem:[#allocation10 + $0xb0] sm:$0xff]
    %v5146 = vld [vmem:[#allocation10 + $0xb8] sm:$0xff]
    %v5147 = vld [vmem:[#allocation10 + $0xc0] sm:$0xff]
    %v5148 = vld [vmem:[#allocation10 + $0xc8] sm:$0xff]
    %v5149 = vld [vmem:[#allocation10 + $0xd0] sm:$0xff]
    %v5150 = vld [vmem:[#allocation10 + $0xd8] sm:$0xff]
    %v5151 = vld [vmem:[#allocation10 + $0xe0] sm:$0xff]
    %v5152 = vld [vmem:[#allocation10 + $0xe8] sm:$0xff]
    %v5153 = vld [vmem:[#allocation10 + $0xf0] sm:$0xff]
    %v5154 = vld [vmem:[#allocation10 + $0xf8] sm:$0xff]
    %v5155 = vld [vmem:[#allocation10 + $0x100] sm:$0xff]
    %v5156 = vld [vmem:[#allocation10 + $0x108] sm:$0xff]
    %v5157 = vld [vmem:[#allocation10 + $0x110] sm:$0xff]
    %v5158 = vld [vmem:[#allocation10 + $0x118] sm:$0xff]
    %v5159 = vld [vmem:[#allocation10 + $0x120] sm:$0xff]
    %v5160 = vld [vmem:[#allocation10 + $0x128] sm:$0xff]
    %v5161 = vld [vmem:[#allocation10 + $0x130] sm:$0xff]
    %v5162 = vld [vmem:[#allocation10 + $0x138] sm:$0xff]
    %v5163 = vld [vmem:[#allocation10 + $0x140] sm:$0xff]
    %v5164 = vld [vmem:[#allocation10 + $0x148] sm:$0xff]
    %v5165 = vld [vmem:[#allocation10 + $0x150] sm:$0xff]
    %v5166 = vld [vmem:[#allocation10 + $0x158] sm:$0xff]
    %v5167 = vld [vmem:[#allocation10 + $0x160] sm:$0xff]
    %v5168 = vld [vmem:[#allocation10 + $0x168] sm:$0xff]
    %v5169 = vld [vmem:[#allocation10 + $0x170] sm:$0xff]
    %v5170 = vld [vmem:[#allocation10 + $0x178] sm:$0xff]
    %v5171 = vld [vmem:[#allocation10 + $0x180] sm:$0xff]
    %v5172 = vld [vmem:[#allocation10 + $0x188] sm:$0xff]
    %v5173 = vld [vmem:[#allocation10 + $0x190] sm:$0xff]
    %v5174 = vld [vmem:[#allocation10 + $0x198] sm:$0xff]
    %v5175 = vld [vmem:[#allocation10 + $0x1a0] sm:$0xff]
    %v5176 = vld [vmem:[#allocation10 + $0x1a8] sm:$0xff]
    %v5177 = vld [vmem:[#allocation10 + $0x1b0] sm:$0xff]
    %v5178 = vld [vmem:[#allocation10 + $0x1b8] sm:$0xff]
    %v5179 = vld [vmem:[#allocation10 + $0x1c0] sm:$0xff]
    %v5180 = vld [vmem:[#allocation10 + $0x1c8] sm:$0xff]
    %v5181 = vld [vmem:[#allocation10 + $0x1d0] sm:$0xff]
    %v5182 = vld [vmem:[#allocation10 + $0x1d8] sm:$0xff]
    %v5183 = vld [vmem:[#allocation10 + $0x1e0] sm:$0xff]
    %v5184 = vld [vmem:[#allocation10 + $0x1e8] sm:$0xff]
    %v5185 = vld [vmem:[#allocation10 + $0x1f0] sm:$0xff]
    %v5186 = vld [vmem:[#allocation10 + $0x1f8] sm:$0xff]
    %v5187 = vld [vmem:[#allocation10 + $0x200] sm:$0xff]
    %v5188 = vld [vmem:[#allocation10 + $0x208] sm:$0xff]
    %v5189 = vld [vmem:[#allocation10 + $0x210] sm:$0xff]
    %v5190 = vld [vmem:[#allocation10 + $0x218] sm:$0xff]
    %v5191 = vld [vmem:[#allocation10 + $0x220] sm:$0xff]
    %v5192 = vld [vmem:[#allocation10 + $0x228] sm:$0xff]
    %v5193 = vld [vmem:[#allocation10 + $0x230] sm:$0xff]
    %v5194 = vld [vmem:[#allocation10 + $0x238] sm:$0xff]
    %v5195 = vld [vmem:[#allocation10 + $0x240] sm:$0xff]
    %v5196 = vld [vmem:[#allocation10 + $0x248] sm:$0xff]
    %v5197 = vld [vmem:[#allocation10 + $0x250] sm:$0xff]
    %v5198 = vld [vmem:[#allocation10 + $0x258] sm:$0xff]
    %v5199 = vld [vmem:[#allocation10 + $0x260] sm:$0xff]
    %v5200 = vld [vmem:[#allocation10 + $0x268] sm:$0xff]
    %v5201 = vld [vmem:[#allocation10 + $0x270] sm:$0xff]
    %v5202 = vld [vmem:[#allocation10 + $0x278] sm:$0xff]
    %v5203 = vld [vmem:[#allocation10 + $0x280] sm:$0xff]
    %v5204 = vld [vmem:[#allocation10 + $0x288] sm:$0xff]
    %v5205 = vld [vmem:[#allocation10 + $0x290] sm:$0xff]
    %v5206 = vld [vmem:[#allocation10 + $0x298] sm:$0xff]
    %v5207 = vld [vmem:[#allocation10 + $0x2a0] sm:$0xff]
    %v5208 = vld [vmem:[#allocation10 + $0x2a8] sm:$0xff]
    %v5209 = vld [vmem:[#allocation10 + $0x2b0] sm:$0xff]
    %v5210 = vld [vmem:[#allocation10 + $0x2b8] sm:$0xff]
    %v5211 = vld [vmem:[#allocation10 + $0x2c0] sm:$0xff]
    %v5212 = vld [vmem:[#allocation10 + $0x2c8] sm:$0xff]
    %v5213 = vld [vmem:[#allocation10 + $0x2d0] sm:$0xff]
    %v5214 = vld [vmem:[#allocation10 + $0x2d8] sm:$0xff]
    %v5215 = vld [vmem:[#allocation10 + $0x2e0] sm:$0xff]
    %v5216 = vld [vmem:[#allocation10 + $0x2e8] sm:$0xff]
    %v5217 = vld [vmem:[#allocation10 + $0x2f0] sm:$0xff]
    %v5218 = vld [vmem:[#allocation10 + $0x2f8] sm:$0xff]
    %v5219 = vld [vmem:[#allocation10 + $0x300] sm:$0xff]
    %v5220 = vld [vmem:[#allocation10 + $0x308] sm:$0xff]
    %v5221 = vld [vmem:[#allocation10 + $0x310] sm:$0xff]
    %v5222 = vld [vmem:[#allocation10 + $0x318] sm:$0xff]
    %v5223 = vld [vmem:[#allocation10 + $0x320] sm:$0xff]
    %v5224 = vld [vmem:[#allocation10 + $0x328] sm:$0xff]
    %v5225 = vld [vmem:[#allocation10 + $0x330] sm:$0xff]
    %v5226 = vld [vmem:[#allocation10 + $0x338] sm:$0xff]
    %v5227 = vld [vmem:[#allocation10 + $0x340] sm:$0xff]
    %v5228 = vld [vmem:[#allocation10 + $0x348] sm:$0xff]
    %v5229 = vld [vmem:[#allocation10 + $0x350] sm:$0xff]
    %v5230 = vld [vmem:[#allocation10 + $0x358] sm:$0xff]
    %v5231 = vld [vmem:[#allocation10 + $0x360] sm:$0xff]
    %v5232 = vld [vmem:[#allocation10 + $0x368] sm:$0xff]
    %v5233 = vld [vmem:[#allocation10 + $0x370] sm:$0xff]
    %v5234 = vld [vmem:[#allocation10 + $0x378] sm:$0xff]
    %v5235 = vld [vmem:[#allocation10 + $0x380] sm:$0xff]
    %v5236 = vld [vmem:[#allocation10 + $0x388] sm:$0xff]
    %v5237 = vld [vmem:[#allocation10 + $0x390] sm:$0xff]
    %v5238 = vld [vmem:[#allocation10 + $0x398] sm:$0xff]
    %v5239 = vld [vmem:[#allocation10 + $0x3a0] sm:$0xff]
    %v5240 = vld [vmem:[#allocation10 + $0x3a8] sm:$0xff]
    %v5241 = vld [vmem:[#allocation10 + $0x3b0] sm:$0xff]
    %v5242 = vld [vmem:[#allocation10 + $0x3b8] sm:$0xff]
    %v5243 = vld [vmem:[#allocation10 + $0x3c0] sm:$0xff]
    %v5244 = vld [vmem:[#allocation10 + $0x3c8] sm:$0xff]
    %v5245 = vld [vmem:[#allocation10 + $0x3d0] sm:$0xff]
    %v5246 = vld [vmem:[#allocation10 + $0x3d8] sm:$0xff]
    %v5247 = vld [vmem:[#allocation10 + $0x3e0] sm:$0xff]
    %v5248 = vld [vmem:[#allocation10 + $0x3e8] sm:$0xff]
    %v5249 = vld [vmem:[#allocation10 + $0x3f0] sm:$0xff]
    %v5250 = vld [vmem:[#allocation10 + $0x3f8] sm:$0xff]
    %v5251 = vld [vmem:[#allocation11] sm:$0xf]
    %v5253 = vlaneseq
    %v5254 = vshrl.u32 %v5253, 7
    %v5255 = vsub.s32 0, %v5254
    %v5256 = vrot.slane %v5251, %v5255
    %v5257 = vlaneseq
    %v5258 = vshrl.u32 %v5257, 7
    %v5259 = vsub.s32 1, %v5258
    %v5260 = vrot.slane %v5251, %v5259
    %v5261 = vlaneseq
    %v5262 = vshrl.u32 %v5261, 7
    %v5263 = vsub.s32 2, %v5262
    %v5264 = vrot.slane %v5251, %v5263
    %v5265 = vlaneseq
    %v5266 = vshrl.u32 %v5265, 7
    %v5267 = vsub.s32 3, %v5266
    %v5268 = vrot.slane %v5251, %v5267
    %v5401 = vunpack.c.l.b16 %v5123
    %v5402 = vunpack.c.h.b16 %v5123
    %v5403 = vunpack.c.l.b16 %v5124
    %v5404 = vunpack.c.h.b16 %v5124
    %v5405 = vunpack.c.l.b16 %v5125
    %v5406 = vunpack.c.h.b16 %v5125
    %v5407 = vunpack.c.l.b16 %v5126
    %v5408 = vunpack.c.h.b16 %v5126
    %v5409 = vunpack.c.l.b16 %v5127
    %v5410 = vunpack.c.h.b16 %v5127
    %v5411 = vunpack.c.l.b16 %v5128
    %v5412 = vunpack.c.h.b16 %v5128
    %v5413 = vunpack.c.l.b16 %v5129
    %v5414 = vunpack.c.h.b16 %v5129
    %v5415 = vunpack.c.l.b16 %v5130
    %v5416 = vunpack.c.h.b16 %v5130
    %v5417 = vunpack.c.l.b16 %v5131
    %v5418 = vunpack.c.h.b16 %v5131
    %v5419 = vunpack.c.l.b16 %v5132
    %v5420 = vunpack.c.h.b16 %v5132
    %v5421 = vunpack.c.l.b16 %v5133
    %v5422 = vunpack.c.h.b16 %v5133
    %v5423 = vunpack.c.l.b16 %v5134
    %v5424 = vunpack.c.h.b16 %v5134
    %v5425 = vunpack.c.l.b16 %v5135
    %v5426 = vunpack.c.h.b16 %v5135
    %v5427 = vunpack.c.l.b16 %v5136
    %v5428 = vunpack.c.h.b16 %v5136
    %v5429 = vunpack.c.l.b16 %v5137
    %v5430 = vunpack.c.h.b16 %v5137
    %v5431 = vunpack.c.l.b16 %v5138
    %v5432 = vunpack.c.h.b16 %v5138
    %v5433 = vunpack.c.l.b16 %v5139
    %v5434 = vunpack.c.h.b16 %v5139
    %v5435 = vunpack.c.l.b16 %v5140
    %v5436 = vunpack.c.h.b16 %v5140
    %v5437 = vunpack.c.l.b16 %v5141
    %v5438 = vunpack.c.h.b16 %v5141
    %v5439 = vunpack.c.l.b16 %v5142
    %v5440 = vunpack.c.h.b16 %v5142
    %v5441 = vunpack.c.l.b16 %v5143
    %v5442 = vunpack.c.h.b16 %v5143
    %v5443 = vunpack.c.l.b16 %v5144
    %v5444 = vunpack.c.h.b16 %v5144
    %v5445 = vunpack.c.l.b16 %v5145
    %v5446 = vunpack.c.h.b16 %v5145
    %v5447 = vunpack.c.l.b16 %v5146
    %v5448 = vunpack.c.h.b16 %v5146
    %v5449 = vunpack.c.l.b16 %v5147
    %v5450 = vunpack.c.h.b16 %v5147
    %v5451 = vunpack.c.l.b16 %v5148
    %v5452 = vunpack.c.h.b16 %v5148
    %v5453 = vunpack.c.l.b16 %v5149
    %v5454 = vunpack.c.h.b16 %v5149
    %v5455 = vunpack.c.l.b16 %v5150
    %v5456 = vunpack.c.h.b16 %v5150
    %v5457 = vunpack.c.l.b16 %v5151
    %v5458 = vunpack.c.h.b16 %v5151
    %v5459 = vunpack.c.l.b16 %v5152
    %v5460 = vunpack.c.h.b16 %v5152
    %v5461 = vunpack.c.l.b16 %v5153
    %v5462 = vunpack.c.h.b16 %v5153
    %v5463 = vunpack.c.l.b16 %v5154
    %v5464 = vunpack.c.h.b16 %v5154
    %v5465 = vunpack.c.l.b16 %v5155
    %v5466 = vunpack.c.h.b16 %v5155
    %v5467 = vunpack.c.l.b16 %v5156
    %v5468 = vunpack.c.h.b16 %v5156
    %v5469 = vunpack.c.l.b16 %v5157
    %v5470 = vunpack.c.h.b16 %v5157
    %v5471 = vunpack.c.l.b16 %v5158
    %v5472 = vunpack.c.h.b16 %v5158
    %v5473 = vunpack.c.l.b16 %v5159
    %v5474 = vunpack.c.h.b16 %v5159
    %v5475 = vunpack.c.l.b16 %v5160
    %v5476 = vunpack.c.h.b16 %v5160
    %v5477 = vunpack.c.l.b16 %v5161
    %v5478 = vunpack.c.h.b16 %v5161
    %v5479 = vunpack.c.l.b16 %v5162
    %v5480 = vunpack.c.h.b16 %v5162
    %v5481 = vunpack.c.l.b16 %v5163
    %v5482 = vunpack.c.h.b16 %v5163
    %v5483 = vunpack.c.l.b16 %v5164
    %v5484 = vunpack.c.h.b16 %v5164
    %v5485 = vunpack.c.l.b16 %v5165
    %v5486 = vunpack.c.h.b16 %v5165
    %v5487 = vunpack.c.l.b16 %v5166
    %v5488 = vunpack.c.h.b16 %v5166
    %v5489 = vunpack.c.l.b16 %v5167
    %v5490 = vunpack.c.h.b16 %v5167
    %v5491 = vunpack.c.l.b16 %v5168
    %v5492 = vunpack.c.h.b16 %v5168
    %v5493 = vunpack.c.l.b16 %v5169
    %v5494 = vunpack.c.h.b16 %v5169
    %v5495 = vunpack.c.l.b16 %v5170
    %v5496 = vunpack.c.h.b16 %v5170
    %v5497 = vunpack.c.l.b16 %v5171
    %v5498 = vunpack.c.h.b16 %v5171
    %v5499 = vunpack.c.l.b16 %v5172
    %v5500 = vunpack.c.h.b16 %v5172
    %v5501 = vunpack.c.l.b16 %v5173
    %v5502 = vunpack.c.h.b16 %v5173
    %v5503 = vunpack.c.l.b16 %v5174
    %v5504 = vunpack.c.h.b16 %v5174
    %v5505 = vunpack.c.l.b16 %v5175
    %v5506 = vunpack.c.h.b16 %v5175
    %v5507 = vunpack.c.l.b16 %v5176
    %v5508 = vunpack.c.h.b16 %v5176
    %v5509 = vunpack.c.l.b16 %v5177
    %v5510 = vunpack.c.h.b16 %v5177
    %v5511 = vunpack.c.l.b16 %v5178
    %v5512 = vunpack.c.h.b16 %v5178
    %v5513 = vunpack.c.l.b16 %v5179
    %v5514 = vunpack.c.h.b16 %v5179
    %v5515 = vunpack.c.l.b16 %v5180
    %v5516 = vunpack.c.h.b16 %v5180
    %v5517 = vunpack.c.l.b16 %v5181
    %v5518 = vunpack.c.h.b16 %v5181
    %v5519 = vunpack.c.l.b16 %v5182
    %v5520 = vunpack.c.h.b16 %v5182
    %v5521 = vunpack.c.l.b16 %v5183
    %v5522 = vunpack.c.h.b16 %v5183
    %v5523 = vunpack.c.l.b16 %v5184
    %v5524 = vunpack.c.h.b16 %v5184
    %v5525 = vunpack.c.l.b16 %v5185
    %v5526 = vunpack.c.h.b16 %v5185
    %v5527 = vunpack.c.l.b16 %v5186
    %v5528 = vunpack.c.h.b16 %v5186
    %v5529 = vunpack.c.l.b16 %v5187
    %v5530 = vunpack.c.h.b16 %v5187
    %v5531 = vunpack.c.l.b16 %v5188
    %v5532 = vunpack.c.h.b16 %v5188
    %v5533 = vunpack.c.l.b16 %v5189
    %v5534 = vunpack.c.h.b16 %v5189
    %v5535 = vunpack.c.l.b16 %v5190
    %v5536 = vunpack.c.h.b16 %v5190
    %v5537 = vunpack.c.l.b16 %v5191
    %v5538 = vunpack.c.h.b16 %v5191
    %v5539 = vunpack.c.l.b16 %v5192
    %v5540 = vunpack.c.h.b16 %v5192
    %v5541 = vunpack.c.l.b16 %v5193
    %v5542 = vunpack.c.h.b16 %v5193
    %v5543 = vunpack.c.l.b16 %v5194
    %v5544 = vunpack.c.h.b16 %v5194
    %v5545 = vunpack.c.l.b16 %v5195
    %v5546 = vunpack.c.h.b16 %v5195
    %v5547 = vunpack.c.l.b16 %v5196
    %v5548 = vunpack.c.h.b16 %v5196
    %v5549 = vunpack.c.l.b16 %v5197
    %v5550 = vunpack.c.h.b16 %v5197
    %v5551 = vunpack.c.l.b16 %v5198
    %v5552 = vunpack.c.h.b16 %v5198
    %v5553 = vunpack.c.l.b16 %v5199
    %v5554 = vunpack.c.h.b16 %v5199
    %v5555 = vunpack.c.l.b16 %v5200
    %v5556 = vunpack.c.h.b16 %v5200
    %v5557 = vunpack.c.l.b16 %v5201
    %v5558 = vunpack.c.h.b16 %v5201
    %v5559 = vunpack.c.l.b16 %v5202
    %v5560 = vunpack.c.h.b16 %v5202
    %v5561 = vunpack.c.l.b16 %v5203
    %v5562 = vunpack.c.h.b16 %v5203
    %v5563 = vunpack.c.l.b16 %v5204
    %v5564 = vunpack.c.h.b16 %v5204
    %v5565 = vunpack.c.l.b16 %v5205
    %v5566 = vunpack.c.h.b16 %v5205
    %v5567 = vunpack.c.l.b16 %v5206
    %v5568 = vunpack.c.h.b16 %v5206
    %v5569 = vunpack.c.l.b16 %v5207
    %v5570 = vunpack.c.h.b16 %v5207
    %v5571 = vunpack.c.l.b16 %v5208
    %v5572 = vunpack.c.h.b16 %v5208
    %v5573 = vunpack.c.l.b16 %v5209
    %v5574 = vunpack.c.h.b16 %v5209
    %v5575 = vunpack.c.l.b16 %v5210
    %v5576 = vunpack.c.h.b16 %v5210
    %v5577 = vunpack.c.l.b16 %v5211
    %v5578 = vunpack.c.h.b16 %v5211
    %v5579 = vunpack.c.l.b16 %v5212
    %v5580 = vunpack.c.h.b16 %v5212
    %v5581 = vunpack.c.l.b16 %v5213
    %v5582 = vunpack.c.h.b16 %v5213
    %v5583 = vunpack.c.l.b16 %v5214
    %v5584 = vunpack.c.h.b16 %v5214
    %v5585 = vunpack.c.l.b16 %v5215
    %v5586 = vunpack.c.h.b16 %v5215
    %v5587 = vunpack.c.l.b16 %v5216
    %v5588 = vunpack.c.h.b16 %v5216
    %v5589 = vunpack.c.l.b16 %v5217
    %v5590 = vunpack.c.h.b16 %v5217
    %v5591 = vunpack.c.l.b16 %v5218
    %v5592 = vunpack.c.h.b16 %v5218
    %v5593 = vunpack.c.l.b16 %v5219
    %v5594 = vunpack.c.h.b16 %v5219
    %v5595 = vunpack.c.l.b16 %v5220
    %v5596 = vunpack.c.h.b16 %v5220
    %v5597 = vunpack.c.l.b16 %v5221
    %v5598 = vunpack.c.h.b16 %v5221
    %v5599 = vunpack.c.l.b16 %v5222
    %v5600 = vunpack.c.h.b16 %v5222
    %v5601 = vunpack.c.l.b16 %v5223
    %v5602 = vunpack.c.h.b16 %v5223
    %v5603 = vunpack.c.l.b16 %v5224
    %v5604 = vunpack.c.h.b16 %v5224
    %v5605 = vunpack.c.l.b16 %v5225
    %v5606 = vunpack.c.h.b16 %v5225
    %v5607 = vunpack.c.l.b16 %v5226
    %v5608 = vunpack.c.h.b16 %v5226
    %v5609 = vunpack.c.l.b16 %v5227
    %v5610 = vunpack.c.h.b16 %v5227
    %v5611 = vunpack.c.l.b16 %v5228
    %v5612 = vunpack.c.h.b16 %v5228
    %v5613 = vunpack.c.l.b16 %v5229
    %v5614 = vunpack.c.h.b16 %v5229
    %v5615 = vunpack.c.l.b16 %v5230
    %v5616 = vunpack.c.h.b16 %v5230
    %v5617 = vunpack.c.l.b16 %v5231
    %v5618 = vunpack.c.h.b16 %v5231
    %v5619 = vunpack.c.l.b16 %v5232
    %v5620 = vunpack.c.h.b16 %v5232
    %v5621 = vunpack.c.l.b16 %v5233
    %v5622 = vunpack.c.h.b16 %v5233
    %v5623 = vunpack.c.l.b16 %v5234
    %v5624 = vunpack.c.h.b16 %v5234
    %v5625 = vunpack.c.l.b16 %v5235
    %v5626 = vunpack.c.h.b16 %v5235
    %v5627 = vunpack.c.l.b16 %v5236
    %v5628 = vunpack.c.h.b16 %v5236
    %v5629 = vunpack.c.l.b16 %v5237
    %v5630 = vunpack.c.h.b16 %v5237
    %v5631 = vunpack.c.l.b16 %v5238
    %v5632 = vunpack.c.h.b16 %v5238
    %v5633 = vunpack.c.l.b16 %v5239
    %v5634 = vunpack.c.h.b16 %v5239
    %v5635 = vunpack.c.l.b16 %v5240
    %v5636 = vunpack.c.h.b16 %v5240
    %v5637 = vunpack.c.l.b16 %v5241
    %v5638 = vunpack.c.h.b16 %v5241
    %v5639 = vunpack.c.l.b16 %v5242
    %v5640 = vunpack.c.h.b16 %v5242
    %v5641 = vunpack.c.l.b16 %v5243
    %v5642 = vunpack.c.h.b16 %v5243
    %v5643 = vunpack.c.l.b16 %v5244
    %v5644 = vunpack.c.h.b16 %v5244
    %v5645 = vunpack.c.l.b16 %v5245
    %v5646 = vunpack.c.h.b16 %v5245
    %v5647 = vunpack.c.l.b16 %v5246
    %v5648 = vunpack.c.h.b16 %v5246
    %v5649 = vunpack.c.l.b16 %v5247
    %v5650 = vunpack.c.h.b16 %v5247
    %v5651 = vunpack.c.l.b16 %v5248
    %v5652 = vunpack.c.h.b16 %v5248
    %v5653 = vunpack.c.l.b16 %v5249
    %v5654 = vunpack.c.h.b16 %v5249
    %v5655 = vunpack.c.l.b16 %v5250
    %v5656 = vunpack.c.h.b16 %v5250
    %v5657 = vpack.c.b16 %v5405, %v5401
    %v5658 = vpack.c.b16 %v5406, %v5402
    %v5659 = vpack.c.b16 %v5407, %v5403
    %v5660 = vpack.c.b16 %v5408, %v5404
    %v5661 = vpack.c.b16 %v5413, %v5409
    %v5662 = vpack.c.b16 %v5414, %v5410
    %v5663 = vpack.c.b16 %v5415, %v5411
    %v5664 = vpack.c.b16 %v5416, %v5412
    %v5665 = vpack.c.b16 %v5421, %v5417
    %v5666 = vpack.c.b16 %v5422, %v5418
    %v5667 = vpack.c.b16 %v5423, %v5419
    %v5668 = vpack.c.b16 %v5424, %v5420
    %v5669 = vpack.c.b16 %v5429, %v5425
    %v5670 = vpack.c.b16 %v5430, %v5426
    %v5671 = vpack.c.b16 %v5431, %v5427
    %v5672 = vpack.c.b16 %v5432, %v5428
    %v5673 = vpack.c.b16 %v5437, %v5433
    %v5674 = vpack.c.b16 %v5438, %v5434
    %v5675 = vpack.c.b16 %v5439, %v5435
    %v5676 = vpack.c.b16 %v5440, %v5436
    %v5677 = vpack.c.b16 %v5445, %v5441
    %v5678 = vpack.c.b16 %v5446, %v5442
    %v5679 = vpack.c.b16 %v5447, %v5443
    %v5680 = vpack.c.b16 %v5448, %v5444
    %v5681 = vpack.c.b16 %v5453, %v5449
    %v5682 = vpack.c.b16 %v5454, %v5450
    %v5683 = vpack.c.b16 %v5455, %v5451
    %v5684 = vpack.c.b16 %v5456, %v5452
    %v5685 = vpack.c.b16 %v5461, %v5457
    %v5686 = vpack.c.b16 %v5462, %v5458
    %v5687 = vpack.c.b16 %v5463, %v5459
    %v5688 = vpack.c.b16 %v5464, %v5460
    %v5689 = vpack.c.b16 %v5469, %v5465
    %v5690 = vpack.c.b16 %v5470, %v5466
    %v5691 = vpack.c.b16 %v5471, %v5467
    %v5692 = vpack.c.b16 %v5472, %v5468
    %v5693 = vpack.c.b16 %v5477, %v5473
    %v5694 = vpack.c.b16 %v5478, %v5474
    %v5695 = vpack.c.b16 %v5479, %v5475
    %v5696 = vpack.c.b16 %v5480, %v5476
    %v5697 = vpack.c.b16 %v5485, %v5481
    %v5698 = vpack.c.b16 %v5486, %v5482
    %v5699 = vpack.c.b16 %v5487, %v5483
    %v5700 = vpack.c.b16 %v5488, %v5484
    %v5701 = vpack.c.b16 %v5493, %v5489
    %v5702 = vpack.c.b16 %v5494, %v5490
    %v5703 = vpack.c.b16 %v5495, %v5491
    %v5704 = vpack.c.b16 %v5496, %v5492
    %v5705 = vpack.c.b16 %v5501, %v5497
    %v5706 = vpack.c.b16 %v5502, %v5498
    %v5707 = vpack.c.b16 %v5503, %v5499
    %v5708 = vpack.c.b16 %v5504, %v5500
    %v5709 = vpack.c.b16 %v5509, %v5505
    %v5710 = vpack.c.b16 %v5510, %v5506
    %v5711 = vpack.c.b16 %v5511, %v5507
    %v5712 = vpack.c.b16 %v5512, %v5508
    %v5713 = vpack.c.b16 %v5517, %v5513
    %v5714 = vpack.c.b16 %v5518, %v5514
    %v5715 = vpack.c.b16 %v5519, %v5515
    %v5716 = vpack.c.b16 %v5520, %v5516
    %v5717 = vpack.c.b16 %v5525, %v5521
    %v5718 = vpack.c.b16 %v5526, %v5522
    %v5719 = vpack.c.b16 %v5527, %v5523
    %v5720 = vpack.c.b16 %v5528, %v5524
    %v5721 = vpack.c.b16 %v5533, %v5529
    %v5722 = vpack.c.b16 %v5534, %v5530
    %v5723 = vpack.c.b16 %v5535, %v5531
    %v5724 = vpack.c.b16 %v5536, %v5532
    %v5725 = vpack.c.b16 %v5541, %v5537
    %v5726 = vpack.c.b16 %v5542, %v5538
    %v5727 = vpack.c.b16 %v5543, %v5539
    %v5728 = vpack.c.b16 %v5544, %v5540
    %v5729 = vpack.c.b16 %v5549, %v5545
    %v5730 = vpack.c.b16 %v5550, %v5546
    %v5731 = vpack.c.b16 %v5551, %v5547
    %v5732 = vpack.c.b16 %v5552, %v5548
    %v5733 = vpack.c.b16 %v5557, %v5553
    %v5734 = vpack.c.b16 %v5558, %v5554
    %v5735 = vpack.c.b16 %v5559, %v5555
    %v5736 = vpack.c.b16 %v5560, %v5556
    %v5737 = vpack.c.b16 %v5565, %v5561
    %v5738 = vpack.c.b16 %v5566, %v5562
    %v5739 = vpack.c.b16 %v5567, %v5563
    %v5740 = vpack.c.b16 %v5568, %v5564
    %v5741 = vpack.c.b16 %v5573, %v5569
    %v5742 = vpack.c.b16 %v5574, %v5570
    %v5743 = vpack.c.b16 %v5575, %v5571
    %v5744 = vpack.c.b16 %v5576, %v5572
    %v5745 = vpack.c.b16 %v5581, %v5577
    %v5746 = vpack.c.b16 %v5582, %v5578
    %v5747 = vpack.c.b16 %v5583, %v5579
    %v5748 = vpack.c.b16 %v5584, %v5580
    %v5749 = vpack.c.b16 %v5589, %v5585
    %v5750 = vpack.c.b16 %v5590, %v5586
    %v5751 = vpack.c.b16 %v5591, %v5587
    %v5752 = vpack.c.b16 %v5592, %v5588
    %v5753 = vpack.c.b16 %v5597, %v5593
    %v5754 = vpack.c.b16 %v5598, %v5594
    %v5755 = vpack.c.b16 %v5599, %v5595
    %v5756 = vpack.c.b16 %v5600, %v5596
    %v5757 = vpack.c.b16 %v5605, %v5601
    %v5758 = vpack.c.b16 %v5606, %v5602
    %v5759 = vpack.c.b16 %v5607, %v5603
    %v5760 = vpack.c.b16 %v5608, %v5604
    %v5761 = vpack.c.b16 %v5613, %v5609
    %v5762 = vpack.c.b16 %v5614, %v5610
    %v5763 = vpack.c.b16 %v5615, %v5611
    %v5764 = vpack.c.b16 %v5616, %v5612
    %v5765 = vpack.c.b16 %v5621, %v5617
    %v5766 = vpack.c.b16 %v5622, %v5618
    %v5767 = vpack.c.b16 %v5623, %v5619
    %v5768 = vpack.c.b16 %v5624, %v5620
    %v5769 = vpack.c.b16 %v5629, %v5625
    %v5770 = vpack.c.b16 %v5630, %v5626
    %v5771 = vpack.c.b16 %v5631, %v5627
    %v5772 = vpack.c.b16 %v5632, %v5628
    %v5773 = vpack.c.b16 %v5637, %v5633
    %v5774 = vpack.c.b16 %v5638, %v5634
    %v5775 = vpack.c.b16 %v5639, %v5635
    %v5776 = vpack.c.b16 %v5640, %v5636
    %v5777 = vpack.c.b16 %v5645, %v5641
    %v5778 = vpack.c.b16 %v5646, %v5642
    %v5779 = vpack.c.b16 %v5647, %v5643
    %v5780 = vpack.c.b16 %v5648, %v5644
    %v5781 = vpack.c.b16 %v5653, %v5649
    %v5782 = vpack.c.b16 %v5654, %v5650
    %v5783 = vpack.c.b16 %v5655, %v5651
    %v5784 = vpack.c.b16 %v5656, %v5652
    %5913 = vmatprep.subr.bf16.mxu0 %v5686
    %5914 = vmatpush1.bf16.msra.mxu0 %v5685
    %5915 = vmatprep.subr.bf16.mxu0 %v5682
    %5916 = vmatpush1.bf16.msra.mxu0 %v5681
    %5917 = vmatprep.subr.bf16.mxu0 %v5678
    %5918 = vmatpush1.bf16.msra.mxu0 %v5677
    %5919 = vmatprep.subr.bf16.mxu0 %v5674
    %5920 = vmatpush1.bf16.msra.mxu0 %v5673
    %5921 = vmatprep.subr.bf16.mxu0 %v5670
    %5922 = vmatpush1.bf16.msra.mxu0 %v5669
    %5923 = vmatprep.subr.bf16.mxu0 %v5666
    %5924 = vmatpush1.bf16.msra.mxu0 %v5665
    %5925 = vmatprep.subr.bf16.mxu0 %v5662
    %5926 = vmatpush1.bf16.msra.mxu0 %v5661
    %5927 = vmatprep.subr.bf16.mxu0 %v5658
    %5928 = vmatpush1.bf16.msra.mxu0 %v5657
    %5929 = vmatprep.subr.bf16.mxu0 %v5718
    %5930 = vmatpush2.bf16.msra.mxu0 %v5717
    %5931 = vmatprep.subr.bf16.mxu0 %v5714
    %5932 = vmatpush2.bf16.msra.mxu0 %v5713
    %5933 = vmatprep.subr.bf16.mxu0 %v5710
    %5934 = vmatpush2.bf16.msra.mxu0 %v5709
    %5935 = vmatprep.subr.bf16.mxu0 %v5706
    %5936 = vmatpush2.bf16.msra.mxu0 %v5705
    %5937 = vmatprep.subr.bf16.mxu0 %v5702
    %5938 = vmatpush2.bf16.msra.mxu0 %v5701
    %5939 = vmatprep.subr.bf16.mxu0 %v5698
    %5940 = vmatpush2.bf16.msra.mxu0 %v5697
    %5941 = vmatprep.subr.bf16.mxu0 %v5694
    %5942 = vmatpush2.bf16.msra.mxu0 %v5693
    %5943 = vmatprep.subr.bf16.mxu0 %v5690
    %5944 = vmatpush2.bf16.msra.mxu0 %v5689
    %5945 = vmatprep.mubr.bf16.mxu0 %v5120
    %5946 = vmatmul.mubr.bf16.gmra.mxu0 %v5119
    %v5947 = vpop.f32.mrf.mxu0
    %v5948 = vadd.f32 %v5256, %v5947
    %v5949 = vpop.f32.mrf.mxu0
    %v5950 = vadd.f32 %v5260, %v5949
    %v5951 = vpop.f32.mrf.mxu0
    %v5952 = vpop.f32.mrf.mxu0
    %5953 = vdwg.mxu0
    %5954 = vmatprep.subr.bf16.mxu0 %v5750
    %5955 = vmatpush1.bf16.msra.mxu0 %v5749
    %5956 = vmatprep.subr.bf16.mxu0 %v5746
    %5957 = vmatpush1.bf16.msra.mxu0 %v5745
    %5958 = vmatprep.subr.bf16.mxu0 %v5742
    %5959 = vmatpush1.bf16.msra.mxu0 %v5741
    %5960 = vmatprep.subr.bf16.mxu0 %v5738
    %5961 = vmatpush1.bf16.msra.mxu0 %v5737
    %5962 = vmatprep.subr.bf16.mxu0 %v5734
    %5963 = vmatpush1.bf16.msra.mxu0 %v5733
    %5964 = vmatprep.subr.bf16.mxu0 %v5730
    %5965 = vmatpush1.bf16.msra.mxu0 %v5729
    %5966 = vmatprep.subr.bf16.mxu0 %v5726
    %5967 = vmatpush1.bf16.msra.mxu0 %v5725
    %5968 = vmatprep.subr.bf16.mxu0 %v5722
    %5969 = vmatpush1.bf16.msra.mxu0 %v5721
    %5970 = vmatprep.subr.bf16.mxu0 %v5782
    %5971 = vmatpush2.bf16.msra.mxu0 %v5781
    %5972 = vmatprep.subr.bf16.mxu0 %v5778
    %5973 = vmatpush2.bf16.msra.mxu0 %v5777
    %5974 = vmatprep.subr.bf16.mxu0 %v5774
    %5975 = vmatpush2.bf16.msra.mxu0 %v5773
    %5976 = vmatprep.subr.bf16.mxu0 %v5770
    %5977 = vmatpush2.bf16.msra.mxu0 %v5769
    %5978 = vmatprep.subr.bf16.mxu0 %v5766
    %5979 = vmatpush2.bf16.msra.mxu0 %v5765
    %5980 = vmatprep.subr.bf16.mxu0 %v5762
    %5981 = vmatpush2.bf16.msra.mxu0 %v5761
    %5982 = vmatprep.subr.bf16.mxu0 %v5758
    %5983 = vmatpush2.bf16.msra.mxu0 %v5757
    %5984 = vmatprep.subr.bf16.mxu0 %v5754
    %5985 = vmatpush2.bf16.msra.mxu0 %v5753
    %5986 = vmatprep.mubr.bf16.mxu0 %v5122
    %5987 = vmatmul.mubr.bf16.gmra.mxu0 %v5121
    %v5988 = vpop.f32.mrf.mxu0
    %v5989 = vadd.f32 %v5948, %v5988
    %v5990 = vpop.f32.mrf.mxu0
    %v5991 = vadd.f32 %v5950, %v5990
    %v5992 = vpop.f32.mrf.mxu0
    %v5993 = vpop.f32.mrf.mxu0
    %5994 = vdwg.mxu0
    %5995 = vmatprep.subr.bf16.mxu0 %v5688
    %5996 = vmatpush1.bf16.msra.mxu0 %v5687
    %5997 = vmatprep.subr.bf16.mxu0 %v5684
    %5998 = vmatpush1.bf16.msra.mxu0 %v5683
    %5999 = vmatprep.subr.bf16.mxu0 %v5680
    %6000 = vmatpush1.bf16.msra.mxu0 %v5679
    %6001 = vmatprep.subr.bf16.mxu0 %v5676
    %6002 = vmatpush1.bf16.msra.mxu0 %v5675
    %6003 = vmatprep.subr.bf16.mxu0 %v5672
    %6004 = vmatpush1.bf16.msra.mxu0 %v5671
    %6005 = vmatprep.subr.bf16.mxu0 %v5668
    %6006 = vmatpush1.bf16.msra.mxu0 %v5667
    %6007 = vmatprep.subr.bf16.mxu0 %v5664
    %6008 = vmatpush1.bf16.msra.mxu0 %v5663
    %6009 = vmatprep.subr.bf16.mxu0 %v5660
    %6010 = vmatpush1.bf16.msra.mxu0 %v5659
    %6011 = vmatprep.subr.bf16.mxu0 %v5720
    %6012 = vmatpush2.bf16.msra.mxu0 %v5719
    %6013 = vmatprep.subr.bf16.mxu0 %v5716
    %6014 = vmatpush2.bf16.msra.mxu0 %v5715
    %6015 = vmatprep.subr.bf16.mxu0 %v5712
    %6016 = vmatpush2.bf16.msra.mxu0 %v5711
    %6017 = vmatprep.subr.bf16.mxu0 %v5708
    %6018 = vmatpush2.bf16.msra.mxu0 %v5707
    %6019 = vmatprep.subr.bf16.mxu0 %v5704
    %6020 = vmatpush2.bf16.msra.mxu0 %v5703
    %6021 = vmatprep.subr.bf16.mxu0 %v5700
    %6022 = vmatpush2.bf16.msra.mxu0 %v5699
    %6023 = vmatprep.subr.bf16.mxu0 %v5696
    %6024 = vmatpush2.bf16.msra.mxu0 %v5695
    %6025 = vmatprep.subr.bf16.mxu0 %v5692
    %6026 = vmatpush2.bf16.msra.mxu0 %v5691
    %6027 = vmatprep.mubr.bf16.mxu0 %v5120
    %6028 = vmatmul.mubr.bf16.gmra.mxu0 %v5119
    %v6029 = vpop.f32.mrf.mxu0
    %v6030 = vadd.f32 %v5264, %v6029
    %v6031 = vpop.f32.mrf.mxu0
    %v6032 = vadd.f32 %v5268, %v6031
    %v6033 = vpop.f32.mrf.mxu0
    %v6034 = vpop.f32.mrf.mxu0
    %6035 = vdwg.mxu0
    %6036 = vmatprep.subr.bf16.mxu0 %v5752
    %6037 = vmatpush1.bf16.msra.mxu0 %v5751
    %6038 = vmatprep.subr.bf16.mxu0 %v5748
    %6039 = vmatpush1.bf16.msra.mxu0 %v5747
    %6040 = vmatprep.subr.bf16.mxu0 %v5744
    %6041 = vmatpush1.bf16.msra.mxu0 %v5743
    %6042 = vmatprep.subr.bf16.mxu0 %v5740
    %6043 = vmatpush1.bf16.msra.mxu0 %v5739
    %6044 = vmatprep.subr.bf16.mxu0 %v5736
    %6045 = vmatpush1.bf16.msra.mxu0 %v5735
    %6046 = vmatprep.subr.bf16.mxu0 %v5732
    %6047 = vmatpush1.bf16.msra.mxu0 %v5731
    %6048 = vmatprep.subr.bf16.mxu0 %v5728
    %6049 = vmatpush1.bf16.msra.mxu0 %v5727
    %6050 = vmatprep.subr.bf16.mxu0 %v5724
    %6051 = vmatpush1.bf16.msra.mxu0 %v5723
    %6052 = vmatprep.subr.bf16.mxu0 %v5784
    %6053 = vmatpush2.bf16.msra.mxu0 %v5783
    %6054 = vmatprep.subr.bf16.mxu0 %v5780
    %6055 = vmatpush2.bf16.msra.mxu0 %v5779
    %6056 = vmatprep.subr.bf16.mxu0 %v5776
    %6057 = vmatpush2.bf16.msra.mxu0 %v5775
    %6058 = vmatprep.subr.bf16.mxu0 %v5772
    %6059 = vmatpush2.bf16.msra.mxu0 %v5771
    %6060 = vmatprep.subr.bf16.mxu0 %v5768
    %6061 = vmatpush2.bf16.msra.mxu0 %v5767
    %6062 = vmatprep.subr.bf16.mxu0 %v5764
    %6063 = vmatpush2.bf16.msra.mxu0 %v5763
    %6064 = vmatprep.subr.bf16.mxu0 %v5760
    %6065 = vmatpush2.bf16.msra.mxu0 %v5759
    %6066 = vmatprep.subr.bf16.mxu0 %v5756
    %6067 = vmatpush2.bf16.msra.mxu0 %v5755
    %6068 = vmatprep.mubr.bf16.mxu0 %v5122
    %6069 = vmatmul.mubr.bf16.gmra.mxu0 %v5121
    %v6070 = vpop.f32.mrf.mxu0
    %v6071 = vadd.f32 %v6030, %v6070
    %v6072 = vpop.f32.mrf.mxu0
    %v6073 = vadd.f32 %v6032, %v6072
    %v6074 = vpop.f32.mrf.mxu0
    %v6075 = vpop.f32.mrf.mxu0
    %6076 = vdwg.mxu0
    %v6077 = vmax.f32 %v5989, 0.0
    %v6078 = vmax.f32 %v5991, 0.0
    %v6079 = vmax.f32 %v6071, 0.0
    %v6080 = vmax.f32 %v6073, 0.0
    %v6081 = vpack.c.bf16 %v6077, %v6077
    %v6082 = vpack.c.bf16 %v6078, %v6078
    %v6083 = vpack.c.bf16 %v6079, %v6079
    %v6084 = vpack.c.bf16 %v6080, %v6080
    %v6085 = vld [vmem:[#allocation13] sm:$0xf]
    %v6086 = vld [vmem:[#allocation13 + $0x4] sm:$0xf]
    %v6087 = vld [vmem:[#allocation13 + $0x8] sm:$0xf]
    %v6088 = vld [vmem:[#allocation13 + $0xc] sm:$0xf]
    %v6089 = vld [vmem:[#allocation13 + $0x10] sm:$0xf]
    %v6090 = vld [vmem:[#allocation13 + $0x14] sm:$0xf]
    %v6091 = vld [vmem:[#allocation13 + $0x18] sm:$0xf]
    %v6092 = vld [vmem:[#allocation13 + $0x1c] sm:$0xf]
    %v6093 = vld [vmem:[#allocation13 + $0x20] sm:$0xf]
    %v6094 = vld [vmem:[#allocation13 + $0x24] sm:$0xf]
    %v6095 = vld [vmem:[#allocation13 + $0x28] sm:$0xf]
    %v6096 = vld [vmem:[#allocation13 + $0x2c] sm:$0xf]
    %v6097 = vld [vmem:[#allocation13 + $0x30] sm:$0xf]
    %v6098 = vld [vmem:[#allocation13 + $0x34] sm:$0xf]
    %v6099 = vld [vmem:[#allocation13 + $0x38] sm:$0xf]
    %v6100 = vld [vmem:[#allocation13 + $0x3c] sm:$0xf]
    %v6101 = vld [vmem:[#allocation13 + $0x40] sm:$0xf]
    %v6102 = vld [vmem:[#allocation13 + $0x44] sm:$0xf]
    %v6103 = vld [vmem:[#allocation13 + $0x48] sm:$0xf]
    %v6104 = vld [vmem:[#allocation13 + $0x4c] sm:$0xf]
    %v6105 = vld [vmem:[#allocation13 + $0x50] sm:$0xf]
    %v6106 = vld [vmem:[#allocation13 + $0x54] sm:$0xf]
    %v6107 = vld [vmem:[#allocation13 + $0x58] sm:$0xf]
    %v6108 = vld [vmem:[#allocation13 + $0x5c] sm:$0xf]
    %v6109 = vld [vmem:[#allocation13 + $0x60] sm:$0xf]
    %v6110 = vld [vmem:[#allocation13 + $0x64] sm:$0xf]
    %v6111 = vld [vmem:[#allocation13 + $0x68] sm:$0xf]
    %v6112 = vld [vmem:[#allocation13 + $0x6c] sm:$0xf]
    %v6113 = vld [vmem:[#allocation13 + $0x70] sm:$0xf]
    %v6114 = vld [vmem:[#allocation13 + $0x74] sm:$0xf]
    %v6115 = vld [vmem:[#allocation13 + $0x78] sm:$0xf]
    %v6116 = vld [vmem:[#allocation13 + $0x7c] sm:$0xf]
    %v6117 = vld [vmem:[#allocation13 + $0x80] sm:$0xf]
    %v6118 = vld [vmem:[#allocation13 + $0x84] sm:$0xf]
    %v6119 = vld [vmem:[#allocation13 + $0x88] sm:$0xf]
    %v6120 = vld [vmem:[#allocation13 + $0x8c] sm:$0xf]
    %v6121 = vld [vmem:[#allocation13 + $0x90] sm:$0xf]
    %v6122 = vld [vmem:[#allocation13 + $0x94] sm:$0xf]
    %v6123 = vld [vmem:[#allocation13 + $0x98] sm:$0xf]
    %v6124 = vld [vmem:[#allocation13 + $0x9c] sm:$0xf]
    %v6125 = vld [vmem:[#allocation13 + $0xa0] sm:$0xf]
    %v6126 = vld [vmem:[#allocation13 + $0xa4] sm:$0xf]
    %v6127 = vld [vmem:[#allocation13 + $0xa8] sm:$0xf]
    %v6128 = vld [vmem:[#allocation13 + $0xac] sm:$0xf]
    %v6129 = vld [vmem:[#allocation13 + $0xb0] sm:$0xf]
    %v6130 = vld [vmem:[#allocation13 + $0xb4] sm:$0xf]
    %v6131 = vld [vmem:[#allocation13 + $0xb8] sm:$0xf]
    %v6132 = vld [vmem:[#allocation13 + $0xbc] sm:$0xf]
    %v6133 = vld [vmem:[#allocation13 + $0xc0] sm:$0xf]
    %v6134 = vld [vmem:[#allocation13 + $0xc4] sm:$0xf]
    %v6135 = vld [vmem:[#allocation13 + $0xc8] sm:$0xf]
    %v6136 = vld [vmem:[#allocation13 + $0xcc] sm:$0xf]
    %v6137 = vld [vmem:[#allocation13 + $0xd0] sm:$0xf]
    %v6138 = vld [vmem:[#allocation13 + $0xd4] sm:$0xf]
    %v6139 = vld [vmem:[#allocation13 + $0xd8] sm:$0xf]
    %v6140 = vld [vmem:[#allocation13 + $0xdc] sm:$0xf]
    %v6141 = vld [vmem:[#allocation13 + $0xe0] sm:$0xf]
    %v6142 = vld [vmem:[#allocation13 + $0xe4] sm:$0xf]
    %v6143 = vld [vmem:[#allocation13 + $0xe8] sm:$0xf]
    %v6144 = vld [vmem:[#allocation13 + $0xec] sm:$0xf]
    %v6145 = vld [vmem:[#allocation13 + $0xf0] sm:$0xf]
    %v6146 = vld [vmem:[#allocation13 + $0xf4] sm:$0xf]
    %v6147 = vld [vmem:[#allocation13 + $0xf8] sm:$0xf]
    %v6148 = vld [vmem:[#allocation13 + $0xfc] sm:$0xf]
    %v6149 = vld [vmem:[#allocation14] sm:$0x1]
    %v6151 = vlaneseq
    %v6152 = vshrl.u32 %v6151, 7
    %v6153 = vsub.s32 0, %v6152
    %v6154 = vrot.slane %v6149, %v6153
    %v6220 = vunpack.c.l.b16 %v6085
    %v6221 = vunpack.c.l.b16 %v6086
    %v6222 = vunpack.c.l.b16 %v6087
    %v6223 = vunpack.c.l.b16 %v6088
    %v6224 = vunpack.c.l.b16 %v6089
    %v6225 = vunpack.c.l.b16 %v6090
    %v6226 = vunpack.c.l.b16 %v6091
    %v6227 = vunpack.c.l.b16 %v6092
    %v6228 = vunpack.c.l.b16 %v6093
    %v6229 = vunpack.c.l.b16 %v6094
    %v6230 = vunpack.c.l.b16 %v6095
    %v6231 = vunpack.c.l.b16 %v6096
    %v6232 = vunpack.c.l.b16 %v6097
    %v6233 = vunpack.c.l.b16 %v6098
    %v6234 = vunpack.c.l.b16 %v6099
    %v6235 = vunpack.c.l.b16 %v6100
    %v6236 = vunpack.c.l.b16 %v6101
    %v6237 = vunpack.c.l.b16 %v6102
    %v6238 = vunpack.c.l.b16 %v6103
    %v6239 = vunpack.c.l.b16 %v6104
    %v6240 = vunpack.c.l.b16 %v6105
    %v6241 = vunpack.c.l.b16 %v6106
    %v6242 = vunpack.c.l.b16 %v6107
    %v6243 = vunpack.c.l.b16 %v6108
    %v6244 = vunpack.c.l.b16 %v6109
    %v6245 = vunpack.c.l.b16 %v6110
    %v6246 = vunpack.c.l.b16 %v6111
    %v6247 = vunpack.c.l.b16 %v6112
    %v6248 = vunpack.c.l.b16 %v6113
    %v6249 = vunpack.c.l.b16 %v6114
    %v6250 = vunpack.c.l.b16 %v6115
    %v6251 = vunpack.c.l.b16 %v6116
    %v6252 = vunpack.c.l.b16 %v6117
    %v6253 = vunpack.c.l.b16 %v6118
    %v6254 = vunpack.c.l.b16 %v6119
    %v6255 = vunpack.c.l.b16 %v6120
    %v6256 = vunpack.c.l.b16 %v6121
    %v6257 = vunpack.c.l.b16 %v6122
    %v6258 = vunpack.c.l.b16 %v6123
    %v6259 = vunpack.c.l.b16 %v6124
    %v6260 = vunpack.c.l.b16 %v6125
    %v6261 = vunpack.c.l.b16 %v6126
    %v6262 = vunpack.c.l.b16 %v6127
    %v6263 = vunpack.c.l.b16 %v6128
    %v6264 = vunpack.c.l.b16 %v6129
    %v6265 = vunpack.c.l.b16 %v6130
    %v6266 = vunpack.c.l.b16 %v6131
    %v6267 = vunpack.c.l.b16 %v6132
    %v6268 = vunpack.c.l.b16 %v6133
    %v6269 = vunpack.c.l.b16 %v6134
    %v6270 = vunpack.c.l.b16 %v6135
    %v6271 = vunpack.c.l.b16 %v6136
    %v6272 = vunpack.c.l.b16 %v6137
    %v6273 = vunpack.c.l.b16 %v6138
    %v6274 = vunpack.c.l.b16 %v6139
    %v6275 = vunpack.c.l.b16 %v6140
    %v6276 = vunpack.c.l.b16 %v6141
    %v6277 = vunpack.c.l.b16 %v6142
    %v6278 = vunpack.c.l.b16 %v6143
    %v6279 = vunpack.c.l.b16 %v6144
    %v6280 = vunpack.c.l.b16 %v6145
    %v6281 = vunpack.c.l.b16 %v6146
    %v6282 = vunpack.c.l.b16 %v6147
    %v6283 = vunpack.c.l.b16 %v6148
    %v6284 = vpack.c.b16 %v6221, %v6220
    %v6285 = vpack.c.b16 %v6223, %v6222
    %v6286 = vpack.c.b16 %v6225, %v6224
    %v6287 = vpack.c.b16 %v6227, %v6226
    %v6288 = vpack.c.b16 %v6229, %v6228
    %v6289 = vpack.c.b16 %v6231, %v6230
    %v6290 = vpack.c.b16 %v6233, %v6232
    %v6291 = vpack.c.b16 %v6235, %v6234
    %v6292 = vpack.c.b16 %v6237, %v6236
    %v6293 = vpack.c.b16 %v6239, %v6238
    %v6294 = vpack.c.b16 %v6241, %v6240
    %v6295 = vpack.c.b16 %v6243, %v6242
    %v6296 = vpack.c.b16 %v6245, %v6244
    %v6297 = vpack.c.b16 %v6247, %v6246
    %v6298 = vpack.c.b16 %v6249, %v6248
    %v6299 = vpack.c.b16 %v6251, %v6250
    %v6300 = vpack.c.b16 %v6253, %v6252
    %v6301 = vpack.c.b16 %v6255, %v6254
    %v6302 = vpack.c.b16 %v6257, %v6256
    %v6303 = vpack.c.b16 %v6259, %v6258
    %v6304 = vpack.c.b16 %v6261, %v6260
    %v6305 = vpack.c.b16 %v6263, %v6262
    %v6306 = vpack.c.b16 %v6265, %v6264
    %v6307 = vpack.c.b16 %v6267, %v6266
    %v6308 = vpack.c.b16 %v6269, %v6268
    %v6309 = vpack.c.b16 %v6271, %v6270
    %v6310 = vpack.c.b16 %v6273, %v6272
    %v6311 = vpack.c.b16 %v6275, %v6274
    %v6312 = vpack.c.b16 %v6277, %v6276
    %v6313 = vpack.c.b16 %v6279, %v6278
    %v6314 = vpack.c.b16 %v6281, %v6280
    %v6315 = vpack.c.b16 %v6283, %v6282
    %6348 = vmatprep.subr.bf16.mxu0 0
    %6349 = vmatpush1.bf16.msra.mxu0 %v6291
    %6350 = vmatprep.subr.bf16.mxu0 0
    %6351 = vmatpush1.bf16.msra.mxu0 %v6290
    %6352 = vmatprep.subr.bf16.mxu0 0
    %6353 = vmatpush1.bf16.msra.mxu0 %v6289
    %6354 = vmatprep.subr.bf16.mxu0 0
    %6355 = vmatpush1.bf16.msra.mxu0 %v6288
    %6356 = vmatprep.subr.bf16.mxu0 0
    %6357 = vmatpush1.bf16.msra.mxu0 %v6287
    %6358 = vmatprep.subr.bf16.mxu0 0
    %6359 = vmatpush1.bf16.msra.mxu0 %v6286
    %6360 = vmatprep.subr.bf16.mxu0 0
    %6361 = vmatpush1.bf16.msra.mxu0 %v6285
    %6362 = vmatprep.subr.bf16.mxu0 0
    %6363 = vmatpush1.bf16.msra.mxu0 %v6284
    %6364 = vmatprep.subr.bf16.mxu0 0
    %6365 = vmatpush2.bf16.msra.mxu0 %v6299
    %6366 = vmatprep.subr.bf16.mxu0 0
    %6367 = vmatpush2.bf16.msra.mxu0 %v6298
    %6368 = vmatprep.subr.bf16.mxu0 0
    %6369 = vmatpush2.bf16.msra.mxu0 %v6297
    %6370 = vmatprep.subr.bf16.mxu0 0
    %6371 = vmatpush2.bf16.msra.mxu0 %v6296
    %6372 = vmatprep.subr.bf16.mxu0 0
    %6373 = vmatpush2.bf16.msra.mxu0 %v6295
    %6374 = vmatprep.subr.bf16.mxu0 0
    %6375 = vmatpush2.bf16.msra.mxu0 %v6294
    %6376 = vmatprep.subr.bf16.mxu0 0
    %6377 = vmatpush2.bf16.msra.mxu0 %v6293
    %6378 = vmatprep.subr.bf16.mxu0 0
    %6379 = vmatpush2.bf16.msra.mxu0 %v6292
    %6380 = vmatprep.mubr.bf16.mxu0 %v6082
    %6381 = vmatmul.mubr.bf16.gmra.mxu0 %v6081
    %v6382 = vpop.f32.mrf.mxu0
    %v6383 = vadd.f32 %v6154, %v6382
    %v6384 = vpop.f32.mrf.mxu0
    %v6385 = vpop.f32.mrf.mxu0
    %v6386 = vpop.f32.mrf.mxu0
    %6387 = vdwg.mxu0
    %6388 = vmatprep.subr.bf16.mxu0 0
    %6389 = vmatpush1.bf16.msra.mxu0 %v6307
    %6390 = vmatprep.subr.bf16.mxu0 0
    %6391 = vmatpush1.bf16.msra.mxu0 %v6306
    %6392 = vmatprep.subr.bf16.mxu0 0
    %6393 = vmatpush1.bf16.msra.mxu0 %v6305
    %6394 = vmatprep.subr.bf16.mxu0 0
    %6395 = vmatpush1.bf16.msra.mxu0 %v6304
    %6396 = vmatprep.subr.bf16.mxu0 0
    %6397 = vmatpush1.bf16.msra.mxu0 %v6303
    %6398 = vmatprep.subr.bf16.mxu0 0
    %6399 = vmatpush1.bf16.msra.mxu0 %v6302
    %6400 = vmatprep.subr.bf16.mxu0 0
    %6401 = vmatpush1.bf16.msra.mxu0 %v6301
    %6402 = vmatprep.subr.bf16.mxu0 0
    %6403 = vmatpush1.bf16.msra.mxu0 %v6300
    %6404 = vmatprep.subr.bf16.mxu0 0
    %6405 = vmatpush2.bf16.msra.mxu0 %v6315
    %6406 = vmatprep.subr.bf16.mxu0 0
    %6407 = vmatpush2.bf16.msra.mxu0 %v6314
    %6408 = vmatprep.subr.bf16.mxu0 0
    %6409 = vmatpush2.bf16.msra.mxu0 %v6313
    %6410 = vmatprep.subr.bf16.mxu0 0
    %6411 = vmatpush2.bf16.msra.mxu0 %v6312
    %6412 = vmatprep.subr.bf16.mxu0 0
    %6413 = vmatpush2.bf16.msra.mxu0 %v6311
    %6414 = vmatprep.subr.bf16.mxu0 0
    %6415 = vmatpush2.bf16.msra.mxu0 %v6310
    %6416 = vmatprep.subr.bf16.mxu0 0
    %6417 = vmatpush2.bf16.msra.mxu0 %v6309
    %6418 = vmatprep.subr.bf16.mxu0 0
    %6419 = vmatpush2.bf16.msra.mxu0 %v6308
    %6420 = vmatprep.mubr.bf16.mxu0 %v6084
    %6421 = vmatmul.mubr.bf16.gmra.mxu0 %v6083
    %v6422 = vpop.f32.mrf.mxu0
    %v6423 = vadd.f32 %v6383, %v6422
    %v6424 = vpop.f32.mrf.mxu0
    %v6425 = vpop.f32.mrf.mxu0
    %v6426 = vpop.f32.mrf.mxu0
    %6427 = vdwg.mxu0
    %6428 = vst [vmem:[#allocation16] sm:$0xff] %v6423
    // Predicated region
    $region70: #{decoder_forward.1} parent=1 // pred_check
      _
    $region71: #{decoder_forward.1} parent=1 // pred_check_branch
      %6430 = sbr.rel (0) target = $region73
    $region72: #{decoder_forward.1} parent=1 // pred_region
      %s6432 = ssub.s32 128, 128
      %6433 = vsyncadd [#allocation4], %s6432
      %s6435 = sshll.u32 [#allocation16], 4
      %s6436 = int_to_ptr.vmem [resolvable:$true] %s6435
      %6438 = dma.vmem_to_hbm [thread:$0]  %s6436, 128, %s9, [#allocation4]
    $region73: #{decoder_forward.1} parent=1 // pred_fallthru
      _
    // Predicated region
    $region74: #{decoder_forward.1} parent=1 // pred_check
      _
    $region75: #{decoder_forward.1} parent=1 // pred_check_branch
      %6440 = sbr.rel (0) target = $region77
    $region76: #{decoder_forward.1} parent=1 // pred_region
      %6441 = dma.done [#allocation4], 128
    $region77: #{decoder_forward.1} parent=1 // pred_fallthru
      _
    %6442 = vsyncpa [#allocation3], 1
    %6443 = vsyncpa [#allocation6], 1
    %6444 = vsyncpa [#allocation9], 1
    %6445 = vsyncpa [#allocation12], 1
    %6446 = vsyncpa [#allocation15], 1
    %6447 = vsyncpa [#allocation4], 1

</llo_original>
